<compile_context>
chip_gen: v7x
topology: tpu7x:2x2x1
jax: 0.10.0
libtpu: 0.0.40
codegen_flags: <defaults>
</compile_context>

<pallas_src>
import math

import jax
import jax.numpy as jnp
from jax.experimental import pallas as pl
from jax.experimental.pallas import tpu as pltpu

BF16 = jnp.bfloat16
F32 = jnp.float32
H = 4      # attention heads
DH = 64    # head dim (HIDDEN_SIZE 256 / 4 heads)


# ----------------------------------------------------------------------------
# In-kernel helpers
# ----------------------------------------------------------------------------
def _relu_layernorm(v, g, b):
    """ReLU then LayerNorm (eps=1e-6, matching the module) over the last dim, f32."""
    v = jnp.maximum(v, 0.0)
    mu = jnp.mean(v, axis=-1, keepdims=True)
    vc = v - mu
    var = jnp.mean(vc * vc, axis=-1, keepdims=True)
    return vc * jax.lax.rsqrt(var + 1e-6) * g + b


def _conv1d_same(x_bf, w_ref, b_ref, sel_ref, sel_idx):
    """'same'-padded Conv1d, time-major, using precomputed 0/1 shift matrices.

    x:(T,Cin) bf16, w:(K,Cin,Cout) bf16, b:(1,Cout) f32, sel_ref:(S,T,T) bf16.
    sel_idx[k] = index of the shift matrix for tap k (None => shift 0 / identity).
    """
    T = x_bf.shape[0]
    acc = jnp.zeros((T, w_ref.shape[2]), F32) + b_ref[...]
    for k, si in enumerate(sel_idx):                       # static unroll over taps
        xs = x_bf if si is None else jnp.dot(
            sel_ref[si], x_bf, preferred_element_type=F32).astype(BF16)
        acc = acc + jnp.dot(xs, w_ref[k], preferred_element_type=F32)
    return acc


# ----------------------------------------------------------------------------
# Fully fused kernel: encoder + conditioning + cross attention + regression head
# ----------------------------------------------------------------------------
def pitch_kernel(x_ref, spk_ref, hid_ref, sel_a, sel_q,
                 c13w, c13b, c24w, c24b, headw, headb,
                 spkw, spkb, wkv, bkv,
                 wq, bq, wof, bof,
                 lng, lnb, fc1w, fc1b, ln1g, ln1b,
                 r1w, r1b, r2w, r2b,
                 pred_ref, heads_ref):
    K5 = [0, 1, None, 2, 3]     # tap -> shift-matrix index, kernel_size=5 / pad=2
    K3 = [0, None, 1]           # tap -> shift-matrix index, kernel_size=3 / pad=1

    # ---- WAV2VEC encoder: conv1|conv3 merged (Cout=256), conv2|conv4 block-diag ----
    x = x_ref[0]                                                           # (Ta,E) bf16
    h = jnp.maximum(_conv1d_same(x, c13w, c13b, sel_a, K5), 0.0)           # (Ta,256) f32
    g = jnp.maximum(_conv1d_same(h.astype(BF16), c24w, c24b, sel_a, K5), 0.0)

    # classification heads on the time-means (lanes 0:128 = emotion branch,
    # 128:256 = speaker branch); one padded block-diagonal matmul, sliced in wrapper.
    g_mean = jnp.mean(g, axis=0, keepdims=True)                            # (1,256) f32
    heads_ref[0] = (jnp.dot(g_mean.astype(BF16), headw[...],
                            preferred_element_type=F32) + headb[...])

    # speaker conditioning + folded (fc_k | fc_v) ∘ (MHA k/v in-proj) projection
    emo = g[:, :128]                                                       # (Ta,128) f32
    spk_t = jnp.dot(spk_ref[0].astype(BF16), spkw[...],
                    preferred_element_type=F32) + spkb[...]                # (1,128)
    emo_kv = (emo + spk_t).astype(BF16)                                    # (Ta,128)
    kv = jnp.dot(emo_kv, wkv[...], preferred_element_type=F32) + bkv[...]  # (Ta,512)

    kT = kv[:, :H * DH].T.astype(BF16)          # (256,Ta): one shared slab transpose
    v_bf = kv[:, H * DH:].astype(BF16)          # (Ta,256)

    # ---- cross attention (Q fold carries 1/sqrt(Dh); out_proj∘fc folded) ----
    hid = hid_ref[0]                                                       # (Tq,128) f32
    hid_bf = hid.astype(BF16)
    q_all = (jnp.dot(hid_bf, wq[...], preferred_element_type=F32)
             + bq[...]).astype(BF16)                                       # (Tq,256)

    ctx = []
    for hh in range(H):                                                    # static unroll
        lo, hi = hh * DH, (hh + 1) * DH
        s = jnp.dot(q_all[:, lo:hi], kT[lo:hi, :],
                    preferred_element_type=F32)                            # (Tq,Ta)
        s = s - jnp.max(s, axis=-1, keepdims=True)
        p = jnp.exp(s)
        p = p * pl.reciprocal(jnp.sum(p, axis=-1, keepdims=True), approx=True)
        ctx.append(jnp.dot(p.astype(BF16), v_bf[:, lo:hi],
                           preferred_element_type=F32).astype(BF16))       # (Tq,DH)
    ctx = jnp.concatenate(ctx, axis=-1)                                    # (Tq,256)

    skip = (jnp.dot(ctx, wof[...], preferred_element_type=F32)
            + bof[...] + hid)                                              # + query_i residual
    skip = _relu_layernorm(skip, lng[...], lnb[...])
    new = jnp.dot(skip.astype(BF16), fc1w[...],
                  preferred_element_type=F32) + fc1b[...] + skip
    fused = _relu_layernorm(new, ln1g[...], ln1b[...])

    # ---- regression head: cnn_reg1 (k=3) + LeakyReLU(0.01), cnn_reg2 (k=1, Cout=1) ----
    acc = _conv1d_same(fused.astype(BF16), r1w, r1b, sel_q, K3)            # (Tq,128)
    acc = jnp.where(acc >= 0.0, acc, 0.01 * acc)
    pred_ref[0] = jnp.sum(acc * r2w[...], axis=-1, keepdims=True) + r2b[...]


# ----------------------------------------------------------------------------
# Parameters (deterministic synthetic init — shapes follow the module __init__)
# ----------------------------------------------------------------------------
def init_params(key, *, wav_dim=32, emo_dim=128, output_classes=4):
    ks = iter(jax.random.split(key, 64))

    def w(shape, scale=0.02):
        return scale * jax.random.normal(next(ks), shape, F32)

    def z(shape):
        return jnp.zeros(shape, F32)

    p = {}
    emb = w((101, 128))
    p['embedding'] = emb.at[100].set(0.0)                      # padding_idx=100
    # WAV2VECModel
    p['conv1_w'] = w((5, wav_dim, emo_dim)); p['conv1_b'] = z((emo_dim,))
    p['conv2_w'] = w((5, emo_dim, emo_dim)); p['conv2_b'] = z((emo_dim,))
    p['conv3_w'] = w((5, wav_dim, emo_dim)); p['conv3_b'] = z((emo_dim,))
    p['conv4_w'] = w((5, emo_dim, emo_dim)); p['conv4_b'] = z((emo_dim,))
    p['out_w'] = w((emo_dim, output_classes)); p['out_b'] = z((output_classes,))
    p['out_spkr_w'] = w((emo_dim, 10)); p['out_spkr_b'] = z((10,))
    # speaker_linear
    p['spk_w'] = w((128, 128)); p['spk_b'] = z((128,))
    # CrossAttentionModel (hidden_dim_q = hidden_dim_k = 128, HIDDEN_SIZE = 256)
    p['fc_q_w'] = w((128, 256)); p['fc_q_b'] = z((256,))
    p['fc_k_w'] = w((128, 256)); p['fc_k_b'] = z((256,))
    p['fc_v_w'] = w((128, 256)); p['fc_v_b'] = z((256,))
    p['mha'] = {'wq': w((256, 256)), 'bq': z((256,)),
                'wk': w((256, 256)), 'bk': z((256,)),
                'wv': w((256, 256)), 'bv': z((256,)),
                'wo': w((256, 256)), 'bo': z((256,))}
    p['fc_w'] = w((256, 128)); p['fc_b'] = z((128,))
    p['fc1_w'] = w((128, 128)); p['fc1_b'] = z((128,))
    p['ln_g'] = jnp.ones((128,), F32); p['ln_b'] = z((128,))
    p['ln1_g'] = jnp.ones((128,), F32); p['ln1_b'] = z((128,))
    # regression head
    p['cnn1_w'] = w((3, 128, 128)); p['cnn1_b'] = z((128,))
    p['cnn2_w'] = w((1, 128, 1)); p['cnn2_b'] = z((1,))
    return p


# ----------------------------------------------------------------------------
# PitchModel.forward (eval mode: dropouts are no-ops; ReverseLayerF is identity)
# ----------------------------------------------------------------------------
def pitch_model_forward(p, wav_feats, tokens, speaker, lengths, alpha=1.0):
    B, Ta, E = wav_feats.shape
    Tq = tokens.shape[1]
    n_emo = p['out_w'].shape[1]
    n_spk = p['out_spkr_w'].shape[1]

    # ---- algebraic weight folding (no nonlinearity between the fused linears) ----
    mha = p['mha']
    scale = 1.0 / math.sqrt(DH)
    wq_f = (p['fc_q_w'] @ mha['wq']) * scale                              # (128,256)
    bq_f = ((p['fc_q_b'] @ mha['wq'] + mha['bq']) * scale).reshape(1, -1)  # (1,256)
    wk_f = p['fc_k_w'] @ mha['wk']
    bk_f = p['fc_k_b'] @ mha['wk'] + mha['bk']
    wv_f = p['fc_v_w'] @ mha['wv']
    bv_f = p['fc_v_b'] @ mha['wv'] + mha['bv']
    wkv = jnp.concatenate([wk_f, wv_f], axis=1)                           # (128,512)
    bkv = jnp.concatenate([bk_f, bv_f]).reshape(1, -1)                    # (1,512)
    w_of = mha['wo'] @ p['fc_w']                                          # (256,128)
    b_of = (mha['bo'] @ p['fc_w'] + p['fc_b']).reshape(1, -1)             # (1,128)

    # merged first conv layer (conv1|conv3 along Cout) + block-diagonal second layer
    c13w = jnp.concatenate([p['conv1_w'], p['conv3_w']], axis=2)          # (5,E,256)
    c13b = jnp.concatenate([p['conv1_b'], p['conv3_b']]).reshape(1, -1)
    c24w = jnp.zeros((5, 256, 256), F32)
    c24w = c24w.at[:, :128, :128].set(p['conv2_w']).at[:, 128:, 128:].set(p['conv4_w'])
    c24b = jnp.concatenate([p['conv2_b'], p['conv4_b']]).reshape(1, -1)

    # emotion/speaker classification heads: block-diagonal, zero-padded to 128 lanes
    headw = jnp.zeros((256, 256), F32)
    headw = headw.at[:128, :n_emo].set(p['out_w']) \
                 .at[128:, 128:128 + n_spk].set(p['out_spkr_w'])
    headb = jnp.zeros((1, 256), F32)
    headb = headb.at[0, :n_emo].set(p['out_b']) \
                 .at[0, 128:128 + n_spk].set(p['out_spkr_b'])

    # precomputed 0/1 shift matrices for the "same" convolutions (hoisted out of kernel)
    def shift_mats(T, ds):
        i = jnp.arange(T)[:, None]
        j = jnp.arange(T)[None, :]
        return jnp.stack([(j == i + d).astype(BF16) for d in ds])
    sel_a = shift_mats(Ta, (-2, -1, 1, 2))                                 # (4,Ta,Ta)
    sel_q = shift_mats(Tq, (-1, 1))                                        # (2,Tq,Tq)

    # token embedding (padding_idx=100 row is zero) — plain-JAX gather glue
    hidden = jnp.take(p['embedding'], tokens.astype(jnp.int32), axis=0)    # (B,Tq,128)

    bf = lambda a: a.astype(BF16)
    row = lambda a: a.reshape(1, -1)

    inputs = [
        wav_feats.astype(BF16),                   # (B,Ta,E)
        speaker.reshape(B, 1, 128),               # (B,1,128) f32
        hidden,                                   # (B,Tq,128) f32
        sel_a, sel_q,
        bf(c13w), c13b,
        bf(c24w), c24b,
        bf(headw), headb,
        bf(p['spk_w']), row(p['spk_b']),
        bf(wkv), bkv,
        bf(wq_f), bq_f,
        bf(w_of), b_of,
        row(p['ln_g']), row(p['ln_b']),
        bf(p['fc1_w']), row(p['fc1_b']),
        row(p['ln1_g']), row(p['ln1_b']),
        bf(p['cnn1_w']), row(p['cnn1_b']),
        p['cnn2_w'].reshape(1, -1), p['cnn2_b'].reshape(1, 1),
    ]

    def const_spec(a):
        nd = a.ndim
        return pl.BlockSpec(a.shape, lambda b, _nd=nd: (0,) * _nd)

    in_specs = [
        pl.BlockSpec((1, Ta, E), lambda b: (b, 0, 0)),
        pl.BlockSpec((1, 1, 128), lambda b: (b, 0, 0)),
        pl.BlockSpec((1, Tq, 128), lambda b: (b, 0, 0)),
    ] + [const_spec(a) for a in inputs[3:]]

    pred, heads = pl.pallas_call(
        pitch_kernel,
        out_shape=(jax.ShapeDtypeStruct((B, Tq, 1), F32),
                   jax.ShapeDtypeStruct((B, 1, 256), F32)),
        grid=(B,),
        in_specs=in_specs,
        out_specs=(pl.BlockSpec((1, Tq, 1), lambda b: (b, 0, 0)),
                   pl.BlockSpec((1, 1, 256), lambda b: (b, 0, 0))),
        compiler_params=pltpu.CompilerParams(dimension_semantics=("parallel",)),
    )(*inputs)

    emo_out = heads[:, 0, :n_emo]                                          # (B,4)
    spkr_out = heads[:, 0, 128:128 + n_spk]                                # (B,10)

    pred_pitch = pred[..., 0]                                              # (B,Tq)
    mask = jnp.arange(Tq)[None, :] < lengths[:, None]
    pred_pitch = jnp.where(mask, pred_pitch, 0.0)
    return pred_pitch, emo_out, spkr_out, mask.astype(jnp.int32)


# ----------------------------------------------------------------------------
if __name__ == "__main__":
    key = jax.random.PRNGKey(0)
    kp, kf, kt, ks = jax.random.split(key, 4)

    B, Ta, Tq, E = 2, 16, 8, 32        # batch, audio frames, token seq, wav2vec dim
    params = init_params(kp, wav_dim=E, emo_dim=128, output_classes=4)

    # TODO(synk): the pretrained Wav2Vec2Processor / Wav2Vec2ForCTC feature extractor
    # has no in-script Pallas equivalent; its output (sum of hidden states) is replaced
    # by deterministic synthetic features with the same layout.
    wav_feats = jax.random.normal(kf, (B, Ta, E), jnp.float32)
    tokens = jax.random.randint(kt, (B, Tq), 0, 101).astype(jnp.int32)
    speaker = jax.random.normal(ks, (B, 128), jnp.float32)
    lengths = jnp.array([8, 5], jnp.int32)

    outs = jax.jit(pitch_model_forward)(params, wav_feats, tokens, speaker, lengths)
    outs = jax.block_until_ready(outs)

    pred_pitch, emo_out, spkr_out, mask = outs
    assert pred_pitch.shape == (B, Tq)
    assert emo_out.shape == (B, 4)
    assert spkr_out.shape == (B, 10)
    assert mask.shape == (B, Tq)
    print("KERNEL_OK")
</pallas_src>

<mosaic_0001>
module attributes {stable_mosaic.version = 11 : i64} {
  func.func @pitch_kernel(%arg0: i32, %arg1: memref<1x16x32xbf16, #tpu.memory_space<vmem>>, %arg2: memref<1x1x128xf32, #tpu.memory_space<vmem>>, %arg3: memref<1x8x128xf32, #tpu.memory_space<vmem>>, %arg4: memref<4x16x16xbf16, #tpu.memory_space<vmem>>, %arg5: memref<2x8x8xbf16, #tpu.memory_space<vmem>>, %arg6: memref<5x32x256xbf16, #tpu.memory_space<vmem>>, %arg7: memref<1x256xf32, #tpu.memory_space<vmem>>, %arg8: memref<5x256x256xbf16, #tpu.memory_space<vmem>>, %arg9: memref<1x256xf32, #tpu.memory_space<vmem>>, %arg10: memref<256x256xbf16, #tpu.memory_space<vmem>>, %arg11: memref<1x256xf32, #tpu.memory_space<vmem>>, %arg12: memref<128x128xbf16, #tpu.memory_space<vmem>>, %arg13: memref<1x128xf32, #tpu.memory_space<vmem>>, %arg14: memref<128x512xbf16, #tpu.memory_space<vmem>>, %arg15: memref<1x512xf32, #tpu.memory_space<vmem>>, %arg16: memref<128x256xbf16, #tpu.memory_space<vmem>>, %arg17: memref<1x256xf32, #tpu.memory_space<vmem>>, %arg18: memref<256x128xbf16, #tpu.memory_space<vmem>>, %arg19: memref<1x128xf32, #tpu.memory_space<vmem>>, %arg20: memref<1x128xf32, #tpu.memory_space<vmem>>, %arg21: memref<1x128xf32, #tpu.memory_space<vmem>>, %arg22: memref<128x128xbf16, #tpu.memory_space<vmem>>, %arg23: memref<1x128xf32, #tpu.memory_space<vmem>>, %arg24: memref<1x128xf32, #tpu.memory_space<vmem>>, %arg25: memref<1x128xf32, #tpu.memory_space<vmem>>, %arg26: memref<3x128x128xbf16, #tpu.memory_space<vmem>>, %arg27: memref<1x128xf32, #tpu.memory_space<vmem>>, %arg28: memref<1x128xf32, #tpu.memory_space<vmem>>, %arg29: memref<1x1xf32, #tpu.memory_space<vmem>>, %arg30: memref<1x8x1xf32, #tpu.memory_space<vmem>>, %arg31: memref<1x1x256xf32, #tpu.memory_space<vmem>>) attributes {dimension_semantics = [#tpu.dimension_semantics<parallel>], iteration_bounds = array<i64: 2>, scalar_prefetch = 0 : i64, scratch_operands = 0 : i64, tpu.core_type = #tpu.core_type<tc>, window_params = [{transform_indices = @transform_0, window_bounds = array<i64: 1, 16, 32>}, {transform_indices = @transform_1, window_bounds = array<i64: 1, 1, 128>}, {transform_indices = @transform_2, window_bounds = array<i64: 1, 8, 128>}, {pipeline_mode = #tpu.pipeline_mode<synchronous>, transform_indices = @transform_3, window_bounds = array<i64: 4, 16, 16>}, {pipeline_mode = #tpu.pipeline_mode<synchronous>, transform_indices = @transform_4, window_bounds = array<i64: 2, 8, 8>}, {pipeline_mode = #tpu.pipeline_mode<synchronous>, transform_indices = @transform_5, window_bounds = array<i64: 5, 32, 256>}, {pipeline_mode = #tpu.pipeline_mode<synchronous>, transform_indices = @transform_6, window_bounds = array<i64: 1, 256>}, {pipeline_mode = #tpu.pipeline_mode<synchronous>, transform_indices = @transform_7, window_bounds = array<i64: 5, 256, 256>}, {pipeline_mode = #tpu.pipeline_mode<synchronous>, transform_indices = @transform_8, window_bounds = array<i64: 1, 256>}, {pipeline_mode = #tpu.pipeline_mode<synchronous>, transform_indices = @transform_9, window_bounds = array<i64: 256, 256>}, {pipeline_mode = #tpu.pipeline_mode<synchronous>, transform_indices = @transform_10, window_bounds = array<i64: 1, 256>}, {pipeline_mode = #tpu.pipeline_mode<synchronous>, transform_indices = @transform_11, window_bounds = array<i64: 128, 128>}, {pipeline_mode = #tpu.pipeline_mode<synchronous>, transform_indices = @transform_12, window_bounds = array<i64: 1, 128>}, {pipeline_mode = #tpu.pipeline_mode<synchronous>, transform_indices = @transform_13, window_bounds = array<i64: 128, 512>}, {pipeline_mode = #tpu.pipeline_mode<synchronous>, transform_indices = @transform_14, window_bounds = array<i64: 1, 512>}, {pipeline_mode = #tpu.pipeline_mode<synchronous>, transform_indices = @transform_15, window_bounds = array<i64: 128, 256>}, {pipeline_mode = #tpu.pipeline_mode<synchronous>, transform_indices = @transform_16, window_bounds = array<i64: 1, 256>}, {pipeline_mode = #tpu.pipeline_mode<synchronous>, transform_indices = @transform_17, window_bounds = array<i64: 256, 128>}, {pipeline_mode = #tpu.pipeline_mode<synchronous>, transform_indices = @transform_18, window_bounds = array<i64: 1, 128>}, {pipeline_mode = #tpu.pipeline_mode<synchronous>, transform_indices = @transform_19, window_bounds = array<i64: 1, 128>}, {pipeline_mode = #tpu.pipeline_mode<synchronous>, transform_indices = @transform_20, window_bounds = array<i64: 1, 128>}, {pipeline_mode = #tpu.pipeline_mode<synchronous>, transform_indices = @transform_21, window_bounds = array<i64: 128, 128>}, {pipeline_mode = #tpu.pipeline_mode<synchronous>, transform_indices = @transform_22, window_bounds = array<i64: 1, 128>}, {pipeline_mode = #tpu.pipeline_mode<synchronous>, transform_indices = @transform_23, window_bounds = array<i64: 1, 128>}, {pipeline_mode = #tpu.pipeline_mode<synchronous>, transform_indices = @transform_24, window_bounds = array<i64: 1, 128>}, {pipeline_mode = #tpu.pipeline_mode<synchronous>, transform_indices = @transform_25, window_bounds = array<i64: 3, 128, 128>}, {pipeline_mode = #tpu.pipeline_mode<synchronous>, transform_indices = @transform_26, window_bounds = array<i64: 1, 128>}, {pipeline_mode = #tpu.pipeline_mode<synchronous>, transform_indices = @transform_27, window_bounds = array<i64: 1, 128>}, {pipeline_mode = #tpu.pipeline_mode<synchronous>, transform_indices = @transform_28, window_bounds = array<i64: 1, 1>}, {transform_indices = @transform_29, window_bounds = array<i64: 1, 8, 1>}, {transform_indices = @transform_30, window_bounds = array<i64: 1, 1, 256>}]} {
    %c0 = arith.constant 0 : index
    %c0_0 = arith.constant 0 : index
    %c0_1 = arith.constant 0 : index
    %0 = vector.load %arg1[%c0, %c0_0, %c0_1] : memref<1x16x32xbf16, #tpu.memory_space<vmem>>, vector<1x16x32xbf16>
    %1 = vector.shape_cast %0 : vector<1x16x32xbf16> to vector<16x32xbf16>
    %cst = arith.constant 0.000000e+00 : f32
    %2 = vector.broadcast %cst : f32 to vector<16x256xf32>
    %c0_2 = arith.constant 0 : index
    %c0_3 = arith.constant 0 : index
    %3 = vector.load %arg7[%c0_2, %c0_3] : memref<1x256xf32, #tpu.memory_space<vmem>>, vector<1x256xf32>
    %4 = vector.broadcast %3 : vector<1x256xf32> to vector<16x256xf32>
    %5 = arith.addf %2, %4 : vector<16x256xf32>
    %c0_4 = arith.constant 0 : index
    %c0_5 = arith.constant 0 : index
    %c0_6 = arith.constant 0 : index
    %6 = vector.load %arg4[%c0_4, %c0_5, %c0_6] : memref<4x16x16xbf16, #tpu.memory_space<vmem>>, vector<1x16x16xbf16>
    %7 = vector.shape_cast %6 : vector<1x16x16xbf16> to vector<16x16xbf16>
    %cst_7 = arith.constant dense<0.000000e+00> : vector<16x32xf32>
    %8 = tpu.matmul %7, %1, %cst_7 {dimension_numbers = #tpu.dot_dimension_numbers<[1], [0], [0], [1], [0, 0, 1, 1], [], []>} : vector<16x16xbf16>, vector<16x32xbf16>, vector<16x32xf32> -> vector<16x32xf32>
    %9 = arith.truncf %8 : vector<16x32xf32> to vector<16x32xbf16>
    %c0_8 = arith.constant 0 : index
    %c0_9 = arith.constant 0 : index
    %c0_10 = arith.constant 0 : index
    %10 = vector.load %arg6[%c0_8, %c0_9, %c0_10] : memref<5x32x256xbf16, #tpu.memory_space<vmem>>, vector<1x32x256xbf16>
    %11 = vector.shape_cast %10 : vector<1x32x256xbf16> to vector<32x256xbf16>
    %cst_11 = arith.constant dense<0.000000e+00> : vector<16x256xf32>
    %12 = tpu.matmul %9, %11, %cst_11 {dimension_numbers = #tpu.dot_dimension_numbers<[1], [0], [0], [1], [0, 0, 1, 1], [], []>} : vector<16x32xbf16>, vector<32x256xbf16>, vector<16x256xf32> -> vector<16x256xf32>
    %13 = arith.addf %5, %12 : vector<16x256xf32>
    %c1 = arith.constant 1 : index
    %c0_12 = arith.constant 0 : index
    %c0_13 = arith.constant 0 : index
    %14 = vector.load %arg4[%c1, %c0_12, %c0_13] : memref<4x16x16xbf16, #tpu.memory_space<vmem>>, vector<1x16x16xbf16>
    %15 = vector.shape_cast %14 : vector<1x16x16xbf16> to vector<16x16xbf16>
    %cst_14 = arith.constant dense<0.000000e+00> : vector<16x32xf32>
    %16 = tpu.matmul %15, %1, %cst_14 {dimension_numbers = #tpu.dot_dimension_numbers<[1], [0], [0], [1], [0, 0, 1, 1], [], []>} : vector<16x16xbf16>, vector<16x32xbf16>, vector<16x32xf32> -> vector<16x32xf32>
    %17 = arith.truncf %16 : vector<16x32xf32> to vector<16x32xbf16>
    %c1_15 = arith.constant 1 : index
    %c0_16 = arith.constant 0 : index
    %c0_17 = arith.constant 0 : index
    %18 = vector.load %arg6[%c1_15, %c0_16, %c0_17] : memref<5x32x256xbf16, #tpu.memory_space<vmem>>, vector<1x32x256xbf16>
    %19 = vector.shape_cast %18 : vector<1x32x256xbf16> to vector<32x256xbf16>
    %cst_18 = arith.constant dense<0.000000e+00> : vector<16x256xf32>
    %20 = tpu.matmul %17, %19, %cst_18 {dimension_numbers = #tpu.dot_dimension_numbers<[1], [0], [0], [1], [0, 0, 1, 1], [], []>} : vector<16x32xbf16>, vector<32x256xbf16>, vector<16x256xf32> -> vector<16x256xf32>
    %21 = arith.addf %13, %20 : vector<16x256xf32>
    %c2 = arith.constant 2 : index
    %c0_19 = arith.constant 0 : index
    %c0_20 = arith.constant 0 : index
    %22 = vector.load %arg6[%c2, %c0_19, %c0_20] : memref<5x32x256xbf16, #tpu.memory_space<vmem>>, vector<1x32x256xbf16>
    %23 = vector.shape_cast %22 : vector<1x32x256xbf16> to vector<32x256xbf16>
    %cst_21 = arith.constant dense<0.000000e+00> : vector<16x256xf32>
    %24 = tpu.matmul %1, %23, %cst_21 {dimension_numbers = #tpu.dot_dimension_numbers<[1], [0], [0], [1], [0, 0, 1, 1], [], []>} : vector<16x32xbf16>, vector<32x256xbf16>, vector<16x256xf32> -> vector<16x256xf32>
    %25 = arith.addf %21, %24 : vector<16x256xf32>
    %c2_22 = arith.constant 2 : index
    %c0_23 = arith.constant 0 : index
    %c0_24 = arith.constant 0 : index
    %26 = vector.load %arg4[%c2_22, %c0_23, %c0_24] : memref<4x16x16xbf16, #tpu.memory_space<vmem>>, vector<1x16x16xbf16>
    %27 = vector.shape_cast %26 : vector<1x16x16xbf16> to vector<16x16xbf16>
    %cst_25 = arith.constant dense<0.000000e+00> : vector<16x32xf32>
    %28 = tpu.matmul %27, %1, %cst_25 {dimension_numbers = #tpu.dot_dimension_numbers<[1], [0], [0], [1], [0, 0, 1, 1], [], []>} : vector<16x16xbf16>, vector<16x32xbf16>, vector<16x32xf32> -> vector<16x32xf32>
    %29 = arith.truncf %28 : vector<16x32xf32> to vector<16x32xbf16>
    %c3 = arith.constant 3 : index
    %c0_26 = arith.constant 0 : index
    %c0_27 = arith.constant 0 : index
    %30 = vector.load %arg6[%c3, %c0_26, %c0_27] : memref<5x32x256xbf16, #tpu.memory_space<vmem>>, vector<1x32x256xbf16>
    %31 = vector.shape_cast %30 : vector<1x32x256xbf16> to vector<32x256xbf16>
    %cst_28 = arith.constant dense<0.000000e+00> : vector<16x256xf32>
    %32 = tpu.matmul %29, %31, %cst_28 {dimension_numbers = #tpu.dot_dimension_numbers<[1], [0], [0], [1], [0, 0, 1, 1], [], []>} : vector<16x32xbf16>, vector<32x256xbf16>, vector<16x256xf32> -> vector<16x256xf32>
    %33 = arith.addf %25, %32 : vector<16x256xf32>
    %c3_29 = arith.constant 3 : index
    %c0_30 = arith.constant 0 : index
    %c0_31 = arith.constant 0 : index
    %34 = vector.load %arg4[%c3_29, %c0_30, %c0_31] : memref<4x16x16xbf16, #tpu.memory_space<vmem>>, vector<1x16x16xbf16>
    %35 = vector.shape_cast %34 : vector<1x16x16xbf16> to vector<16x16xbf16>
    %cst_32 = arith.constant dense<0.000000e+00> : vector<16x32xf32>
    %36 = tpu.matmul %35, %1, %cst_32 {dimension_numbers = #tpu.dot_dimension_numbers<[1], [0], [0], [1], [0, 0, 1, 1], [], []>} : vector<16x16xbf16>, vector<16x32xbf16>, vector<16x32xf32> -> vector<16x32xf32>
    %37 = arith.truncf %36 : vector<16x32xf32> to vector<16x32xbf16>
    %c4 = arith.constant 4 : index
    %c0_33 = arith.constant 0 : index
    %c0_34 = arith.constant 0 : index
    %38 = vector.load %arg6[%c4, %c0_33, %c0_34] : memref<5x32x256xbf16, #tpu.memory_space<vmem>>, vector<1x32x256xbf16>
    %39 = vector.shape_cast %38 : vector<1x32x256xbf16> to vector<32x256xbf16>
    %cst_35 = arith.constant dense<0.000000e+00> : vector<16x256xf32>
    %40 = tpu.matmul %37, %39, %cst_35 {dimension_numbers = #tpu.dot_dimension_numbers<[1], [0], [0], [1], [0, 0, 1, 1], [], []>} : vector<16x32xbf16>, vector<32x256xbf16>, vector<16x256xf32> -> vector<16x256xf32>
    %41 = arith.addf %33, %40 : vector<16x256xf32>
    %cst_36 = arith.constant 0.000000e+00 : f32
    %42 = vector.broadcast %cst_36 : f32 to vector<16x256xf32>
    %43 = arith.maximumf %41, %42 : vector<16x256xf32>
    %44 = arith.truncf %43 : vector<16x256xf32> to vector<16x256xbf16>
    %cst_37 = arith.constant 0.000000e+00 : f32
    %45 = vector.broadcast %cst_37 : f32 to vector<16x256xf32>
    %c0_38 = arith.constant 0 : index
    %c0_39 = arith.constant 0 : index
    %46 = vector.load %arg9[%c0_38, %c0_39] : memref<1x256xf32, #tpu.memory_space<vmem>>, vector<1x256xf32>
    %47 = vector.broadcast %46 : vector<1x256xf32> to vector<16x256xf32>
    %48 = arith.addf %45, %47 : vector<16x256xf32>
    %c0_40 = arith.constant 0 : index
    %c0_41 = arith.constant 0 : index
    %c0_42 = arith.constant 0 : index
    %49 = vector.load %arg4[%c0_40, %c0_41, %c0_42] : memref<4x16x16xbf16, #tpu.memory_space<vmem>>, vector<1x16x16xbf16>
    %50 = vector.shape_cast %49 : vector<1x16x16xbf16> to vector<16x16xbf16>
    %cst_43 = arith.constant dense<0.000000e+00> : vector<16x256xf32>
    %51 = tpu.matmul %50, %44, %cst_43 {dimension_numbers = #tpu.dot_dimension_numbers<[1], [0], [0], [1], [0, 0, 1, 1], [], []>} : vector<16x16xbf16>, vector<16x256xbf16>, vector<16x256xf32> -> vector<16x256xf32>
    %52 = arith.truncf %51 : vector<16x256xf32> to vector<16x256xbf16>
    %c0_44 = arith.constant 0 : index
    %c0_45 = arith.constant 0 : index
    %c0_46 = arith.constant 0 : index
    %53 = vector.load %arg8[%c0_44, %c0_45, %c0_46] : memref<5x256x256xbf16, #tpu.memory_space<vmem>>, vector<1x256x256xbf16>
    %54 = vector.shape_cast %53 : vector<1x256x256xbf16> to vector<256x256xbf16>
    %cst_47 = arith.constant dense<0.000000e+00> : vector<16x256xf32>
    %55 = tpu.matmul %52, %54, %cst_47 {dimension_numbers = #tpu.dot_dimension_numbers<[1], [0], [0], [1], [0, 0, 1, 1], [], []>} : vector<16x256xbf16>, vector<256x256xbf16>, vector<16x256xf32> -> vector<16x256xf32>
    %56 = arith.addf %48, %55 : vector<16x256xf32>
    %c1_48 = arith.constant 1 : index
    %c0_49 = arith.constant 0 : index
    %c0_50 = arith.constant 0 : index
    %57 = vector.load %arg4[%c1_48, %c0_49, %c0_50] : memref<4x16x16xbf16, #tpu.memory_space<vmem>>, vector<1x16x16xbf16>
    %58 = vector.shape_cast %57 : vector<1x16x16xbf16> to vector<16x16xbf16>
    %cst_51 = arith.constant dense<0.000000e+00> : vector<16x256xf32>
    %59 = tpu.matmul %58, %44, %cst_51 {dimension_numbers = #tpu.dot_dimension_numbers<[1], [0], [0], [1], [0, 0, 1, 1], [], []>} : vector<16x16xbf16>, vector<16x256xbf16>, vector<16x256xf32> -> vector<16x256xf32>
    %60 = arith.truncf %59 : vector<16x256xf32> to vector<16x256xbf16>
    %c1_52 = arith.constant 1 : index
    %c0_53 = arith.constant 0 : index
    %c0_54 = arith.constant 0 : index
    %61 = vector.load %arg8[%c1_52, %c0_53, %c0_54] : memref<5x256x256xbf16, #tpu.memory_space<vmem>>, vector<1x256x256xbf16>
    %62 = vector.shape_cast %61 : vector<1x256x256xbf16> to vector<256x256xbf16>
    %cst_55 = arith.constant dense<0.000000e+00> : vector<16x256xf32>
    %63 = tpu.matmul %60, %62, %cst_55 {dimension_numbers = #tpu.dot_dimension_numbers<[1], [0], [0], [1], [0, 0, 1, 1], [], []>} : vector<16x256xbf16>, vector<256x256xbf16>, vector<16x256xf32> -> vector<16x256xf32>
    %64 = arith.addf %56, %63 : vector<16x256xf32>
    %c2_56 = arith.constant 2 : index
    %c0_57 = arith.constant 0 : index
    %c0_58 = arith.constant 0 : index
    %65 = vector.load %arg8[%c2_56, %c0_57, %c0_58] : memref<5x256x256xbf16, #tpu.memory_space<vmem>>, vector<1x256x256xbf16>
    %66 = vector.shape_cast %65 : vector<1x256x256xbf16> to vector<256x256xbf16>
    %cst_59 = arith.constant dense<0.000000e+00> : vector<16x256xf32>
    %67 = tpu.matmul %44, %66, %cst_59 {dimension_numbers = #tpu.dot_dimension_numbers<[1], [0], [0], [1], [0, 0, 1, 1], [], []>} : vector<16x256xbf16>, vector<256x256xbf16>, vector<16x256xf32> -> vector<16x256xf32>
    %68 = arith.addf %64, %67 : vector<16x256xf32>
    %c2_60 = arith.constant 2 : index
    %c0_61 = arith.constant 0 : index
    %c0_62 = arith.constant 0 : index
    %69 = vector.load %arg4[%c2_60, %c0_61, %c0_62] : memref<4x16x16xbf16, #tpu.memory_space<vmem>>, vector<1x16x16xbf16>
    %70 = vector.shape_cast %69 : vector<1x16x16xbf16> to vector<16x16xbf16>
    %cst_63 = arith.constant dense<0.000000e+00> : vector<16x256xf32>
    %71 = tpu.matmul %70, %44, %cst_63 {dimension_numbers = #tpu.dot_dimension_numbers<[1], [0], [0], [1], [0, 0, 1, 1], [], []>} : vector<16x16xbf16>, vector<16x256xbf16>, vector<16x256xf32> -> vector<16x256xf32>
    %72 = arith.truncf %71 : vector<16x256xf32> to vector<16x256xbf16>
    %c3_64 = arith.constant 3 : index
    %c0_65 = arith.constant 0 : index
    %c0_66 = arith.constant 0 : index
    %73 = vector.load %arg8[%c3_64, %c0_65, %c0_66] : memref<5x256x256xbf16, #tpu.memory_space<vmem>>, vector<1x256x256xbf16>
    %74 = vector.shape_cast %73 : vector<1x256x256xbf16> to vector<256x256xbf16>
    %cst_67 = arith.constant dense<0.000000e+00> : vector<16x256xf32>
    %75 = tpu.matmul %72, %74, %cst_67 {dimension_numbers = #tpu.dot_dimension_numbers<[1], [0], [0], [1], [0, 0, 1, 1], [], []>} : vector<16x256xbf16>, vector<256x256xbf16>, vector<16x256xf32> -> vector<16x256xf32>
    %76 = arith.addf %68, %75 : vector<16x256xf32>
    %c3_68 = arith.constant 3 : index
    %c0_69 = arith.constant 0 : index
    %c0_70 = arith.constant 0 : index
    %77 = vector.load %arg4[%c3_68, %c0_69, %c0_70] : memref<4x16x16xbf16, #tpu.memory_space<vmem>>, vector<1x16x16xbf16>
    %78 = vector.shape_cast %77 : vector<1x16x16xbf16> to vector<16x16xbf16>
    %cst_71 = arith.constant dense<0.000000e+00> : vector<16x256xf32>
    %79 = tpu.matmul %78, %44, %cst_71 {dimension_numbers = #tpu.dot_dimension_numbers<[1], [0], [0], [1], [0, 0, 1, 1], [], []>} : vector<16x16xbf16>, vector<16x256xbf16>, vector<16x256xf32> -> vector<16x256xf32>
    %80 = arith.truncf %79 : vector<16x256xf32> to vector<16x256xbf16>
    %c4_72 = arith.constant 4 : index
    %c0_73 = arith.constant 0 : index
    %c0_74 = arith.constant 0 : index
    %81 = vector.load %arg8[%c4_72, %c0_73, %c0_74] : memref<5x256x256xbf16, #tpu.memory_space<vmem>>, vector<1x256x256xbf16>
    %82 = vector.shape_cast %81 : vector<1x256x256xbf16> to vector<256x256xbf16>
    %cst_75 = arith.constant dense<0.000000e+00> : vector<16x256xf32>
    %83 = tpu.matmul %80, %82, %cst_75 {dimension_numbers = #tpu.dot_dimension_numbers<[1], [0], [0], [1], [0, 0, 1, 1], [], []>} : vector<16x256xbf16>, vector<256x256xbf16>, vector<16x256xf32> -> vector<16x256xf32>
    %84 = arith.addf %76, %83 : vector<16x256xf32>
    %cst_76 = arith.constant 0.000000e+00 : f32
    %85 = vector.broadcast %cst_76 : f32 to vector<16x256xf32>
    %86 = arith.maximumf %84, %85 : vector<16x256xf32>
    %cst_77 = arith.constant dense<0.000000e+00> : vector<256xf32>
    %87 = vector.multi_reduction <add>, %86, %cst_77 [0] : vector<16x256xf32> to vector<256xf32>
    %88 = vector.shape_cast %87 : vector<256xf32> to vector<1x256xf32>
    %cst_78 = arith.constant 1.600000e+01 : f32
    %89 = vector.broadcast %cst_78 : f32 to vector<1x256xf32>
    %90 = arith.divf %88, %89 : vector<1x256xf32>
    %91 = arith.truncf %90 : vector<1x256xf32> to vector<1x256xbf16>
    %c0_79 = arith.constant 0 : index
    %c0_80 = arith.constant 0 : index
    %92 = vector.load %arg10[%c0_79, %c0_80] : memref<256x256xbf16, #tpu.memory_space<vmem>>, vector<256x256xbf16>
    %cst_81 = arith.constant dense<0.000000e+00> : vector<1x256xf32>
    %93 = tpu.matmul %91, %92, %cst_81 {dimension_numbers = #tpu.dot_dimension_numbers<[1], [0], [0], [1], [0, 0, 1, 1], [], []>} : vector<1x256xbf16>, vector<256x256xbf16>, vector<1x256xf32> -> vector<1x256xf32>
    %c0_82 = arith.constant 0 : index
    %c0_83 = arith.constant 0 : index
    %94 = vector.load %arg11[%c0_82, %c0_83] : memref<1x256xf32, #tpu.memory_space<vmem>>, vector<1x256xf32>
    %95 = arith.addf %93, %94 : vector<1x256xf32>
    %c0_84 = arith.constant 0 : index
    %c0_85 = arith.constant 0 : index
    %c0_86 = arith.constant 0 : index
    %96 = vector.load %arg31[%c0_84, %c0_85, %c0_86] : memref<1x1x256xf32, #tpu.memory_space<vmem>>, vector<1x1x256xf32>
    %97 = vector.shape_cast %96 : vector<1x1x256xf32> to vector<1x256xf32>
    %98 = vector.shape_cast %95 : vector<1x256xf32> to vector<1x1x256xf32>
    tpu.vector_store %arg31[%c0_84, %c0_85, %c0_86], %98 {strides = array<i32>} : memref<1x1x256xf32, #tpu.memory_space<vmem>>, vector<1x1x256xf32>,
    %99 = vector.extract_strided_slice %86 {offsets = [0, 0], sizes = [16, 128], strides = [1, 1]} : vector<16x256xf32> to vector<16x128xf32>
    %c0_87 = arith.constant 0 : index
    %c0_88 = arith.constant 0 : index
    %c0_89 = arith.constant 0 : index
    %100 = vector.load %arg2[%c0_87, %c0_88, %c0_89] : memref<1x1x128xf32, #tpu.memory_space<vmem>>, vector<1x1x128xf32>
    %101 = vector.shape_cast %100 : vector<1x1x128xf32> to vector<1x128xf32>
    %102 = arith.truncf %101 : vector<1x128xf32> to vector<1x128xbf16>
    %c0_90 = arith.constant 0 : index
    %c0_91 = arith.constant 0 : index
    %103 = vector.load %arg12[%c0_90, %c0_91] : memref<128x128xbf16, #tpu.memory_space<vmem>>, vector<128x128xbf16>
    %cst_92 = arith.constant dense<0.000000e+00> : vector<1x128xf32>
    %104 = tpu.matmul %102, %103, %cst_92 {dimension_numbers = #tpu.dot_dimension_numbers<[1], [0], [0], [1], [0, 0, 1, 1], [], []>} : vector<1x128xbf16>, vector<128x128xbf16>, vector<1x128xf32> -> vector<1x128xf32>
    %c0_93 = arith.constant 0 : index
    %c0_94 = arith.constant 0 : index
    %105 = vector.load %arg13[%c0_93, %c0_94] : memref<1x128xf32, #tpu.memory_space<vmem>>, vector<1x128xf32>
    %106 = arith.addf %104, %105 : vector<1x128xf32>
    %107 = vector.broadcast %106 : vector<1x128xf32> to vector<16x128xf32>
    %108 = arith.addf %99, %107 : vector<16x128xf32>
    %109 = arith.truncf %108 : vector<16x128xf32> to vector<16x128xbf16>
    %c0_95 = arith.constant 0 : index
    %c0_96 = arith.constant 0 : index
    %110 = vector.load %arg14[%c0_95, %c0_96] : memref<128x512xbf16, #tpu.memory_space<vmem>>, vector<128x512xbf16>
    %cst_97 = arith.constant dense<0.000000e+00> : vector<16x512xf32>
    %111 = tpu.matmul %109, %110, %cst_97 {dimension_numbers = #tpu.dot_dimension_numbers<[1], [0], [0], [1], [0, 0, 1, 1], [], []>} : vector<16x128xbf16>, vector<128x512xbf16>, vector<16x512xf32> -> vector<16x512xf32>
    %c0_98 = arith.constant 0 : index
    %c0_99 = arith.constant 0 : index
    %112 = vector.load %arg15[%c0_98, %c0_99] : memref<1x512xf32, #tpu.memory_space<vmem>>, vector<1x512xf32>
    %113 = vector.broadcast %112 : vector<1x512xf32> to vector<16x512xf32>
    %114 = arith.addf %111, %113 : vector<16x512xf32>
    %115 = vector.extract_strided_slice %114 {offsets = [0, 0], sizes = [16, 256], strides = [1, 1]} : vector<16x512xf32> to vector<16x256xf32>
    %116 = tpu.transpose %115, [1, 0] : vector<16x256xf32> -> vector<256x16xf32>
    %117 = arith.truncf %116 : vector<256x16xf32> to vector<256x16xbf16>
    %118 = vector.extract_strided_slice %114 {offsets = [0, 256], sizes = [16, 256], strides = [1, 1]} : vector<16x512xf32> to vector<16x256xf32>
    %119 = arith.truncf %118 : vector<16x256xf32> to vector<16x256xbf16>
    %c0_100 = arith.constant 0 : index
    %c0_101 = arith.constant 0 : index
    %c0_102 = arith.constant 0 : index
    %120 = vector.load %arg3[%c0_100, %c0_101, %c0_102] : memref<1x8x128xf32, #tpu.memory_space<vmem>>, vector<1x8x128xf32>
    %121 = vector.shape_cast %120 : vector<1x8x128xf32> to vector<8x128xf32>
    %122 = arith.truncf %121 : vector<8x128xf32> to vector<8x128xbf16>
    %c0_103 = arith.constant 0 : index
    %c0_104 = arith.constant 0 : index
    %123 = vector.load %arg16[%c0_103, %c0_104] : memref<128x256xbf16, #tpu.memory_space<vmem>>, vector<128x256xbf16>
    %cst_105 = arith.constant dense<0.000000e+00> : vector<8x256xf32>
    %124 = tpu.matmul %122, %123, %cst_105 {dimension_numbers = #tpu.dot_dimension_numbers<[1], [0], [0], [1], [0, 0, 1, 1], [], []>} : vector<8x128xbf16>, vector<128x256xbf16>, vector<8x256xf32> -> vector<8x256xf32>
    %c0_106 = arith.constant 0 : index
    %c0_107 = arith.constant 0 : index
    %125 = vector.load %arg17[%c0_106, %c0_107] : memref<1x256xf32, #tpu.memory_space<vmem>>, vector<1x256xf32>
    %126 = vector.broadcast %125 : vector<1x256xf32> to vector<8x256xf32>
    %127 = arith.addf %124, %126 : vector<8x256xf32>
    %128 = arith.truncf %127 : vector<8x256xf32> to vector<8x256xbf16>
    %129 = vector.extract_strided_slice %128 {offsets = [0, 0], sizes = [8, 64], strides = [1, 1]} : vector<8x256xbf16> to vector<8x64xbf16>
    %130 = vector.extract_strided_slice %117 {offsets = [0, 0], sizes = [64, 16], strides = [1, 1]} : vector<256x16xbf16> to vector<64x16xbf16>
    %cst_108 = arith.constant dense<0.000000e+00> : vector<8x16xf32>
    %131 = tpu.matmul %129, %130, %cst_108 {dimension_numbers = #tpu.dot_dimension_numbers<[1], [0], [0], [1], [0, 0, 1, 1], [], []>} : vector<8x64xbf16>, vector<64x16xbf16>, vector<8x16xf32> -> vector<8x16xf32>
    %cst_109 = arith.constant dense<0xFF800000> : vector<8xf32>
    %132 = vector.multi_reduction <maximumf>, %131, %cst_109 [1] : vector<8x16xf32> to vector<8xf32>
    %133 = vector.shape_cast %132 : vector<8xf32> to vector<8x1xf32>
    %134 = vector.broadcast %133 : vector<8x1xf32> to vector<8x16xf32>
    %135 = arith.subf %131, %134 : vector<8x16xf32>
    %136 = math.exp %135 : vector<8x16xf32>
    %cst_110 = arith.constant dense<0.000000e+00> : vector<8xf32>
    %137 = vector.multi_reduction <add>, %136, %cst_110 [1] : vector<8x16xf32> to vector<8xf32>
    %138 = vector.shape_cast %137 : vector<8xf32> to vector<8x1xf32>
    %139 = tpu.reciprocal %138 {approx = true} : vector<8x1xf32> -> vector<8x1xf32>
    %140 = vector.broadcast %139 : vector<8x1xf32> to vector<8x16xf32>
    %141 = arith.mulf %136, %140 : vector<8x16xf32>
    %142 = arith.truncf %141 : vector<8x16xf32> to vector<8x16xbf16>
    %143 = vector.extract_strided_slice %119 {offsets = [0, 0], sizes = [16, 64], strides = [1, 1]} : vector<16x256xbf16> to vector<16x64xbf16>
    %cst_111 = arith.constant dense<0.000000e+00> : vector<8x64xf32>
    %144 = tpu.matmul %142, %143, %cst_111 {dimension_numbers = #tpu.dot_dimension_numbers<[1], [0], [0], [1], [0, 0, 1, 1], [], []>} : vector<8x16xbf16>, vector<16x64xbf16>, vector<8x64xf32> -> vector<8x64xf32>
    %145 = arith.truncf %144 : vector<8x64xf32> to vector<8x64xbf16>
    %146 = vector.extract_strided_slice %128 {offsets = [0, 64], sizes = [8, 64], strides = [1, 1]} : vector<8x256xbf16> to vector<8x64xbf16>
    %147 = vector.extract_strided_slice %117 {offsets = [64, 0], sizes = [64, 16], strides = [1, 1]} : vector<256x16xbf16> to vector<64x16xbf16>
    %cst_112 = arith.constant dense<0.000000e+00> : vector<8x16xf32>
    %148 = tpu.matmul %146, %147, %cst_112 {dimension_numbers = #tpu.dot_dimension_numbers<[1], [0], [0], [1], [0, 0, 1, 1], [], []>} : vector<8x64xbf16>, vector<64x16xbf16>, vector<8x16xf32> -> vector<8x16xf32>
    %cst_113 = arith.constant dense<0xFF800000> : vector<8xf32>
    %149 = vector.multi_reduction <maximumf>, %148, %cst_113 [1] : vector<8x16xf32> to vector<8xf32>
    %150 = vector.shape_cast %149 : vector<8xf32> to vector<8x1xf32>
    %151 = vector.broadcast %150 : vector<8x1xf32> to vector<8x16xf32>
    %152 = arith.subf %148, %151 : vector<8x16xf32>
    %153 = math.exp %152 : vector<8x16xf32>
    %cst_114 = arith.constant dense<0.000000e+00> : vector<8xf32>
    %154 = vector.multi_reduction <add>, %153, %cst_114 [1] : vector<8x16xf32> to vector<8xf32>
    %155 = vector.shape_cast %154 : vector<8xf32> to vector<8x1xf32>
    %156 = tpu.reciprocal %155 {approx = true} : vector<8x1xf32> -> vector<8x1xf32>
    %157 = vector.broadcast %156 : vector<8x1xf32> to vector<8x16xf32>
    %158 = arith.mulf %153, %157 : vector<8x16xf32>
    %159 = arith.truncf %158 : vector<8x16xf32> to vector<8x16xbf16>
    %160 = vector.extract_strided_slice %119 {offsets = [0, 64], sizes = [16, 64], strides = [1, 1]} : vector<16x256xbf16> to vector<16x64xbf16>
    %cst_115 = arith.constant dense<0.000000e+00> : vector<8x64xf32>
    %161 = tpu.matmul %159, %160, %cst_115 {dimension_numbers = #tpu.dot_dimension_numbers<[1], [0], [0], [1], [0, 0, 1, 1], [], []>} : vector<8x16xbf16>, vector<16x64xbf16>, vector<8x64xf32> -> vector<8x64xf32>
    %162 = arith.truncf %161 : vector<8x64xf32> to vector<8x64xbf16>
    %163 = vector.extract_strided_slice %128 {offsets = [0, 128], sizes = [8, 64], strides = [1, 1]} : vector<8x256xbf16> to vector<8x64xbf16>
    %164 = vector.extract_strided_slice %117 {offsets = [128, 0], sizes = [64, 16], strides = [1, 1]} : vector<256x16xbf16> to vector<64x16xbf16>
    %cst_116 = arith.constant dense<0.000000e+00> : vector<8x16xf32>
    %165 = tpu.matmul %163, %164, %cst_116 {dimension_numbers = #tpu.dot_dimension_numbers<[1], [0], [0], [1], [0, 0, 1, 1], [], []>} : vector<8x64xbf16>, vector<64x16xbf16>, vector<8x16xf32> -> vector<8x16xf32>
    %cst_117 = arith.constant dense<0xFF800000> : vector<8xf32>
    %166 = vector.multi_reduction <maximumf>, %165, %cst_117 [1] : vector<8x16xf32> to vector<8xf32>
    %167 = vector.shape_cast %166 : vector<8xf32> to vector<8x1xf32>
    %168 = vector.broadcast %167 : vector<8x1xf32> to vector<8x16xf32>
    %169 = arith.subf %165, %168 : vector<8x16xf32>
    %170 = math.exp %169 : vector<8x16xf32>
    %cst_118 = arith.constant dense<0.000000e+00> : vector<8xf32>
    %171 = vector.multi_reduction <add>, %170, %cst_118 [1] : vector<8x16xf32> to vector<8xf32>
    %172 = vector.shape_cast %171 : vector<8xf32> to vector<8x1xf32>
    %173 = tpu.reciprocal %172 {approx = true} : vector<8x1xf32> -> vector<8x1xf32>
    %174 = vector.broadcast %173 : vector<8x1xf32> to vector<8x16xf32>
    %175 = arith.mulf %170, %174 : vector<8x16xf32>
    %176 = arith.truncf %175 : vector<8x16xf32> to vector<8x16xbf16>
    %177 = vector.extract_strided_slice %119 {offsets = [0, 128], sizes = [16, 64], strides = [1, 1]} : vector<16x256xbf16> to vector<16x64xbf16>
    %cst_119 = arith.constant dense<0.000000e+00> : vector<8x64xf32>
    %178 = tpu.matmul %176, %177, %cst_119 {dimension_numbers = #tpu.dot_dimension_numbers<[1], [0], [0], [1], [0, 0, 1, 1], [], []>} : vector<8x16xbf16>, vector<16x64xbf16>, vector<8x64xf32> -> vector<8x64xf32>
    %179 = arith.truncf %178 : vector<8x64xf32> to vector<8x64xbf16>
    %180 = vector.extract_strided_slice %128 {offsets = [0, 192], sizes = [8, 64], strides = [1, 1]} : vector<8x256xbf16> to vector<8x64xbf16>
    %181 = vector.extract_strided_slice %117 {offsets = [192, 0], sizes = [64, 16], strides = [1, 1]} : vector<256x16xbf16> to vector<64x16xbf16>
    %cst_120 = arith.constant dense<0.000000e+00> : vector<8x16xf32>
    %182 = tpu.matmul %180, %181, %cst_120 {dimension_numbers = #tpu.dot_dimension_numbers<[1], [0], [0], [1], [0, 0, 1, 1], [], []>} : vector<8x64xbf16>, vector<64x16xbf16>, vector<8x16xf32> -> vector<8x16xf32>
    %cst_121 = arith.constant dense<0xFF800000> : vector<8xf32>
    %183 = vector.multi_reduction <maximumf>, %182, %cst_121 [1] : vector<8x16xf32> to vector<8xf32>
    %184 = vector.shape_cast %183 : vector<8xf32> to vector<8x1xf32>
    %185 = vector.broadcast %184 : vector<8x1xf32> to vector<8x16xf32>
    %186 = arith.subf %182, %185 : vector<8x16xf32>
    %187 = math.exp %186 : vector<8x16xf32>
    %cst_122 = arith.constant dense<0.000000e+00> : vector<8xf32>
    %188 = vector.multi_reduction <add>, %187, %cst_122 [1] : vector<8x16xf32> to vector<8xf32>
    %189 = vector.shape_cast %188 : vector<8xf32> to vector<8x1xf32>
    %190 = tpu.reciprocal %189 {approx = true} : vector<8x1xf32> -> vector<8x1xf32>
    %191 = vector.broadcast %190 : vector<8x1xf32> to vector<8x16xf32>
    %192 = arith.mulf %187, %191 : vector<8x16xf32>
    %193 = arith.truncf %192 : vector<8x16xf32> to vector<8x16xbf16>
    %194 = vector.extract_strided_slice %119 {offsets = [0, 192], sizes = [16, 64], strides = [1, 1]} : vector<16x256xbf16> to vector<16x64xbf16>
    %cst_123 = arith.constant dense<0.000000e+00> : vector<8x64xf32>
    %195 = tpu.matmul %193, %194, %cst_123 {dimension_numbers = #tpu.dot_dimension_numbers<[1], [0], [0], [1], [0, 0, 1, 1], [], []>} : vector<8x16xbf16>, vector<16x64xbf16>, vector<8x64xf32> -> vector<8x64xf32>
    %196 = arith.truncf %195 : vector<8x64xf32> to vector<8x64xbf16>
    %197 = tpu.concatenate %145, %162, %179, %196 in 1 : vector<8x64xbf16>, vector<8x64xbf16>, vector<8x64xbf16>, vector<8x64xbf16> -> vector<8x256xbf16>
    %c0_124 = arith.constant 0 : index
    %c0_125 = arith.constant 0 : index
    %198 = vector.load %arg18[%c0_124, %c0_125] : memref<256x128xbf16, #tpu.memory_space<vmem>>, vector<256x128xbf16>
    %cst_126 = arith.constant dense<0.000000e+00> : vector<8x128xf32>
    %199 = tpu.matmul %197, %198, %cst_126 {dimension_numbers = #tpu.dot_dimension_numbers<[1], [0], [0], [1], [0, 0, 1, 1], [], []>} : vector<8x256xbf16>, vector<256x128xbf16>, vector<8x128xf32> -> vector<8x128xf32>
    %c0_127 = arith.constant 0 : index
    %c0_128 = arith.constant 0 : index
    %200 = vector.load %arg19[%c0_127, %c0_128] : memref<1x128xf32, #tpu.memory_space<vmem>>, vector<1x128xf32>
    %201 = vector.broadcast %200 : vector<1x128xf32> to vector<8x128xf32>
    %202 = arith.addf %199, %201 : vector<8x128xf32>
    %203 = arith.addf %202, %121 : vector<8x128xf32>
    %c0_129 = arith.constant 0 : index
    %c0_130 = arith.constant 0 : index
    %204 = vector.load %arg20[%c0_129, %c0_130] : memref<1x128xf32, #tpu.memory_space<vmem>>, vector<1x128xf32>
    %c0_131 = arith.constant 0 : index
    %c0_132 = arith.constant 0 : index
    %205 = vector.load %arg21[%c0_131, %c0_132] : memref<1x128xf32, #tpu.memory_space<vmem>>, vector<1x128xf32>
    %cst_133 = arith.constant 0.000000e+00 : f32
    %206 = vector.broadcast %cst_133 : f32 to vector<8x128xf32>
    %207 = arith.maximumf %203, %206 : vector<8x128xf32>
    %cst_134 = arith.constant dense<0.000000e+00> : vector<8xf32>
    %208 = vector.multi_reduction <add>, %207, %cst_134 [1] : vector<8x128xf32> to vector<8xf32>
    %209 = vector.shape_cast %208 : vector<8xf32> to vector<8x1xf32>
    %cst_135 = arith.constant 1.280000e+02 : f32
    %210 = vector.broadcast %cst_135 : f32 to vector<8x1xf32>
    %211 = arith.divf %209, %210 : vector<8x1xf32>
    %212 = vector.broadcast %211 : vector<8x1xf32> to vector<8x128xf32>
    %213 = arith.subf %207, %212 : vector<8x128xf32>
    %214 = arith.mulf %213, %213 : vector<8x128xf32>
    %cst_136 = arith.constant dense<0.000000e+00> : vector<8xf32>
    %215 = vector.multi_reduction <add>, %214, %cst_136 [1] : vector<8x128xf32> to vector<8xf32>
    %216 = vector.shape_cast %215 : vector<8xf32> to vector<8x1xf32>
    %cst_137 = arith.constant 1.280000e+02 : f32
    %217 = vector.broadcast %cst_137 : f32 to vector<8x1xf32>
    %218 = arith.divf %216, %217 : vector<8x1xf32>
    %cst_138 = arith.constant 9.99999997E-7 : f32
    %219 = vector.broadcast %cst_138 : f32 to vector<8x1xf32>
    %220 = arith.addf %218, %219 : vector<8x1xf32>
    %221 = math.rsqrt %220 : vector<8x1xf32>
    %222 = vector.broadcast %221 : vector<8x1xf32> to vector<8x128xf32>
    %223 = arith.mulf %213, %222 : vector<8x128xf32>
    %224 = vector.broadcast %204 : vector<1x128xf32> to vector<8x128xf32>
    %225 = arith.mulf %223, %224 : vector<8x128xf32>
    %226 = vector.broadcast %205 : vector<1x128xf32> to vector<8x128xf32>
    %227 = arith.addf %225, %226 : vector<8x128xf32>
    %228 = arith.truncf %227 : vector<8x128xf32> to vector<8x128xbf16>
    %c0_139 = arith.constant 0 : index
    %c0_140 = arith.constant 0 : index
    %229 = vector.load %arg22[%c0_139, %c0_140] : memref<128x128xbf16, #tpu.memory_space<vmem>>, vector<128x128xbf16>
    %cst_141 = arith.constant dense<0.000000e+00> : vector<8x128xf32>
    %230 = tpu.matmul %228, %229, %cst_141 {dimension_numbers = #tpu.dot_dimension_numbers<[1], [0], [0], [1], [0, 0, 1, 1], [], []>} : vector<8x128xbf16>, vector<128x128xbf16>, vector<8x128xf32> -> vector<8x128xf32>
    %c0_142 = arith.constant 0 : index
    %c0_143 = arith.constant 0 : index
    %231 = vector.load %arg23[%c0_142, %c0_143] : memref<1x128xf32, #tpu.memory_space<vmem>>, vector<1x128xf32>
    %232 = vector.broadcast %231 : vector<1x128xf32> to vector<8x128xf32>
    %233 = arith.addf %230, %232 : vector<8x128xf32>
    %234 = arith.addf %233, %227 : vector<8x128xf32>
    %c0_144 = arith.constant 0 : index
    %c0_145 = arith.constant 0 : index
    %235 = vector.load %arg24[%c0_144, %c0_145] : memref<1x128xf32, #tpu.memory_space<vmem>>, vector<1x128xf32>
    %c0_146 = arith.constant 0 : index
    %c0_147 = arith.constant 0 : index
    %236 = vector.load %arg25[%c0_146, %c0_147] : memref<1x128xf32, #tpu.memory_space<vmem>>, vector<1x128xf32>
    %cst_148 = arith.constant 0.000000e+00 : f32
    %237 = vector.broadcast %cst_148 : f32 to vector<8x128xf32>
    %238 = arith.maximumf %234, %237 : vector<8x128xf32>
    %cst_149 = arith.constant dense<0.000000e+00> : vector<8xf32>
    %239 = vector.multi_reduction <add>, %238, %cst_149 [1] : vector<8x128xf32> to vector<8xf32>
    %240 = vector.shape_cast %239 : vector<8xf32> to vector<8x1xf32>
    %cst_150 = arith.constant 1.280000e+02 : f32
    %241 = vector.broadcast %cst_150 : f32 to vector<8x1xf32>
    %242 = arith.divf %240, %241 : vector<8x1xf32>
    %243 = vector.broadcast %242 : vector<8x1xf32> to vector<8x128xf32>
    %244 = arith.subf %238, %243 : vector<8x128xf32>
    %245 = arith.mulf %244, %244 : vector<8x128xf32>
    %cst_151 = arith.constant dense<0.000000e+00> : vector<8xf32>
    %246 = vector.multi_reduction <add>, %245, %cst_151 [1] : vector<8x128xf32> to vector<8xf32>
    %247 = vector.shape_cast %246 : vector<8xf32> to vector<8x1xf32>
    %cst_152 = arith.constant 1.280000e+02 : f32
    %248 = vector.broadcast %cst_152 : f32 to vector<8x1xf32>
    %249 = arith.divf %247, %248 : vector<8x1xf32>
    %cst_153 = arith.constant 9.99999997E-7 : f32
    %250 = vector.broadcast %cst_153 : f32 to vector<8x1xf32>
    %251 = arith.addf %249, %250 : vector<8x1xf32>
    %252 = math.rsqrt %251 : vector<8x1xf32>
    %253 = vector.broadcast %252 : vector<8x1xf32> to vector<8x128xf32>
    %254 = arith.mulf %244, %253 : vector<8x128xf32>
    %255 = vector.broadcast %235 : vector<1x128xf32> to vector<8x128xf32>
    %256 = arith.mulf %254, %255 : vector<8x128xf32>
    %257 = vector.broadcast %236 : vector<1x128xf32> to vector<8x128xf32>
    %258 = arith.addf %256, %257 : vector<8x128xf32>
    %259 = arith.truncf %258 : vector<8x128xf32> to vector<8x128xbf16>
    %cst_154 = arith.constant 0.000000e+00 : f32
    %260 = vector.broadcast %cst_154 : f32 to vector<8x128xf32>
    %c0_155 = arith.constant 0 : index
    %c0_156 = arith.constant 0 : index
    %261 = vector.load %arg27[%c0_155, %c0_156] : memref<1x128xf32, #tpu.memory_space<vmem>>, vector<1x128xf32>
    %262 = vector.broadcast %261 : vector<1x128xf32> to vector<8x128xf32>
    %263 = arith.addf %260, %262 : vector<8x128xf32>
    %c0_157 = arith.constant 0 : index
    %c0_158 = arith.constant 0 : index
    %c0_159 = arith.constant 0 : index
    %264 = vector.load %arg5[%c0_157, %c0_158, %c0_159] : memref<2x8x8xbf16, #tpu.memory_space<vmem>>, vector<1x8x8xbf16>
    %265 = vector.shape_cast %264 : vector<1x8x8xbf16> to vector<8x8xbf16>
    %cst_160 = arith.constant dense<0.000000e+00> : vector<8x128xf32>
    %266 = tpu.matmul %265, %259, %cst_160 {dimension_numbers = #tpu.dot_dimension_numbers<[1], [0], [0], [1], [0, 0, 1, 1], [], []>} : vector<8x8xbf16>, vector<8x128xbf16>, vector<8x128xf32> -> vector<8x128xf32>
    %267 = arith.truncf %266 : vector<8x128xf32> to vector<8x128xbf16>
    %c0_161 = arith.constant 0 : index
    %c0_162 = arith.constant 0 : index
    %c0_163 = arith.constant 0 : index
    %268 = vector.load %arg26[%c0_161, %c0_162, %c0_163] : memref<3x128x128xbf16, #tpu.memory_space<vmem>>, vector<1x128x128xbf16>
    %269 = vector.shape_cast %268 : vector<1x128x128xbf16> to vector<128x128xbf16>
    %cst_164 = arith.constant dense<0.000000e+00> : vector<8x128xf32>
    %270 = tpu.matmul %267, %269, %cst_164 {dimension_numbers = #tpu.dot_dimension_numbers<[1], [0], [0], [1], [0, 0, 1, 1], [], []>} : vector<8x128xbf16>, vector<128x128xbf16>, vector<8x128xf32> -> vector<8x128xf32>
    %271 = arith.addf %263, %270 : vector<8x128xf32>
    %c1_165 = arith.constant 1 : index
    %c0_166 = arith.constant 0 : index
    %c0_167 = arith.constant 0 : index
    %272 = vector.load %arg26[%c1_165, %c0_166, %c0_167] : memref<3x128x128xbf16, #tpu.memory_space<vmem>>, vector<1x128x128xbf16>
    %273 = vector.shape_cast %272 : vector<1x128x128xbf16> to vector<128x128xbf16>
    %cst_168 = arith.constant dense<0.000000e+00> : vector<8x128xf32>
    %274 = tpu.matmul %259, %273, %cst_168 {dimension_numbers = #tpu.dot_dimension_numbers<[1], [0], [0], [1], [0, 0, 1, 1], [], []>} : vector<8x128xbf16>, vector<128x128xbf16>, vector<8x128xf32> -> vector<8x128xf32>
    %275 = arith.addf %271, %274 : vector<8x128xf32>
    %c1_169 = arith.constant 1 : index
    %c0_170 = arith.constant 0 : index
    %c0_171 = arith.constant 0 : index
    %276 = vector.load %arg5[%c1_169, %c0_170, %c0_171] : memref<2x8x8xbf16, #tpu.memory_space<vmem>>, vector<1x8x8xbf16>
    %277 = vector.shape_cast %276 : vector<1x8x8xbf16> to vector<8x8xbf16>
    %cst_172 = arith.constant dense<0.000000e+00> : vector<8x128xf32>
    %278 = tpu.matmul %277, %259, %cst_172 {dimension_numbers = #tpu.dot_dimension_numbers<[1], [0], [0], [1], [0, 0, 1, 1], [], []>} : vector<8x8xbf16>, vector<8x128xbf16>, vector<8x128xf32> -> vector<8x128xf32>
    %279 = arith.truncf %278 : vector<8x128xf32> to vector<8x128xbf16>
    %c2_173 = arith.constant 2 : index
    %c0_174 = arith.constant 0 : index
    %c0_175 = arith.constant 0 : index
    %280 = vector.load %arg26[%c2_173, %c0_174, %c0_175] : memref<3x128x128xbf16, #tpu.memory_space<vmem>>, vector<1x128x128xbf16>
    %281 = vector.shape_cast %280 : vector<1x128x128xbf16> to vector<128x128xbf16>
    %cst_176 = arith.constant dense<0.000000e+00> : vector<8x128xf32>
    %282 = tpu.matmul %279, %281, %cst_176 {dimension_numbers = #tpu.dot_dimension_numbers<[1], [0], [0], [1], [0, 0, 1, 1], [], []>} : vector<8x128xbf16>, vector<128x128xbf16>, vector<8x128xf32> -> vector<8x128xf32>
    %283 = arith.addf %275, %282 : vector<8x128xf32>
    %cst_177 = arith.constant 0.000000e+00 : f32
    %284 = vector.broadcast %cst_177 : f32 to vector<8x128xf32>
    %285 = arith.cmpf oge, %283, %284 : vector<8x128xf32>
    %cst_178 = arith.constant 0.00999999977 : f32
    %286 = vector.broadcast %cst_178 : f32 to vector<8x128xf32>
    %287 = arith.mulf %286, %283 : vector<8x128xf32>
    %288 = arith.select %285, %283, %287 : vector<8x128xi1>, vector<8x128xf32>
    %c0_179 = arith.constant 0 : index
    %c0_180 = arith.constant 0 : index
    %289 = vector.load %arg28[%c0_179, %c0_180] : memref<1x128xf32, #tpu.memory_space<vmem>>, vector<1x128xf32>
    %290 = vector.broadcast %289 : vector<1x128xf32> to vector<8x128xf32>
    %291 = arith.mulf %288, %290 : vector<8x128xf32>
    %cst_181 = arith.constant dense<0.000000e+00> : vector<8xf32>
    %292 = vector.multi_reduction <add>, %291, %cst_181 [1] : vector<8x128xf32> to vector<8xf32>
    %293 = vector.shape_cast %292 : vector<8xf32> to vector<8x1xf32>
    %c0_182 = arith.constant 0 : index
    %c0_183 = arith.constant 0 : index
    %294 = vector.load %arg29[%c0_182, %c0_183] : memref<1x1xf32, #tpu.memory_space<vmem>>, vector<1x1xf32>
    %295 = vector.broadcast %294 : vector<1x1xf32> to vector<8x1xf32>
    %296 = arith.addf %293, %295 : vector<8x1xf32>
    %c0_184 = arith.constant 0 : index
    %c0_185 = arith.constant 0 : index
    %c0_186 = arith.constant 0 : index
    %297 = vector.load %arg30[%c0_184, %c0_185, %c0_186] : memref<1x8x1xf32, #tpu.memory_space<vmem>>, vector<1x8x1xf32>
    %298 = vector.shape_cast %297 : vector<1x8x1xf32> to vector<8x1xf32>
    %299 = vector.shape_cast %296 : vector<8x1xf32> to vector<1x8x1xf32>
    tpu.vector_store %arg30[%c0_184, %c0_185, %c0_186], %299 {strides = array<i32>} : memref<1x8x1xf32, #tpu.memory_space<vmem>>, vector<1x8x1xf32>,
    return
  }
  func.func @transform_0(%arg0: i32) -> (i32, i32, i32) {
    %c0_i32 = arith.constant 0 : i32
    %c0_i32_0 = arith.constant 0 : i32
    %c0_i32_1 = arith.constant 0 : i32
    return %arg0, %c0_i32, %c0_i32_0 : i32, i32, i32
  }
  func.func @transform_1(%arg0: i32) -> (i32, i32, i32) {
    %c0_i32 = arith.constant 0 : i32
    %c0_i32_0 = arith.constant 0 : i32
    %c0_i32_1 = arith.constant 0 : i32
    return %arg0, %c0_i32, %c0_i32_0 : i32, i32, i32
  }
  func.func @transform_2(%arg0: i32) -> (i32, i32, i32) {
    %c0_i32 = arith.constant 0 : i32
    %c0_i32_0 = arith.constant 0 : i32
    %c0_i32_1 = arith.constant 0 : i32
    return %arg0, %c0_i32, %c0_i32_0 : i32, i32, i32
  }
  func.func @transform_3(%arg0: i32) -> (i32, i32, i32) {
    %c0_i32 = arith.constant 0 : i32
    %c0_i32_0 = arith.constant 0 : i32
    %c0_i32_1 = arith.constant 0 : i32
    %c0_i32_2 = arith.constant 0 : i32
    return %c0_i32, %c0_i32_0, %c0_i32_1 : i32, i32, i32
  }
  func.func @transform_4(%arg0: i32) -> (i32, i32, i32) {
    %c0_i32 = arith.constant 0 : i32
    %c0_i32_0 = arith.constant 0 : i32
    %c0_i32_1 = arith.constant 0 : i32
    %c0_i32_2 = arith.constant 0 : i32
    return %c0_i32, %c0_i32_0, %c0_i32_1 : i32, i32, i32
  }
  func.func @transform_5(%arg0: i32) -> (i32, i32, i32) {
    %c0_i32 = arith.constant 0 : i32
    %c0_i32_0 = arith.constant 0 : i32
    %c0_i32_1 = arith.constant 0 : i32
    %c0_i32_2 = arith.constant 0 : i32
    return %c0_i32, %c0_i32_0, %c0_i32_1 : i32, i32, i32
  }
  func.func @transform_6(%arg0: i32) -> (i32, i32) {
    %c0_i32 = arith.constant 0 : i32
    %c0_i32_0 = arith.constant 0 : i32
    %c0_i32_1 = arith.constant 0 : i32
    return %c0_i32, %c0_i32_0 : i32, i32
  }
  func.func @transform_7(%arg0: i32) -> (i32, i32, i32) {
    %c0_i32 = arith.constant 0 : i32
    %c0_i32_0 = arith.constant 0 : i32
    %c0_i32_1 = arith.constant 0 : i32
    %c0_i32_2 = arith.constant 0 : i32
    return %c0_i32, %c0_i32_0, %c0_i32_1 : i32, i32, i32
  }
  func.func @transform_8(%arg0: i32) -> (i32, i32) {
    %c0_i32 = arith.constant 0 : i32
    %c0_i32_0 = arith.constant 0 : i32
    %c0_i32_1 = arith.constant 0 : i32
    return %c0_i32, %c0_i32_0 : i32, i32
  }
  func.func @transform_9(%arg0: i32) -> (i32, i32) {
    %c0_i32 = arith.constant 0 : i32
    %c0_i32_0 = arith.constant 0 : i32
    %c0_i32_1 = arith.constant 0 : i32
    return %c0_i32, %c0_i32_0 : i32, i32
  }
  func.func @transform_10(%arg0: i32) -> (i32, i32) {
    %c0_i32 = arith.constant 0 : i32
    %c0_i32_0 = arith.constant 0 : i32
    %c0_i32_1 = arith.constant 0 : i32
    return %c0_i32, %c0_i32_0 : i32, i32
  }
  func.func @transform_11(%arg0: i32) -> (i32, i32) {
    %c0_i32 = arith.constant 0 : i32
    %c0_i32_0 = arith.constant 0 : i32
    %c0_i32_1 = arith.constant 0 : i32
    return %c0_i32, %c0_i32_0 : i32, i32
  }
  func.func @transform_12(%arg0: i32) -> (i32, i32) {
    %c0_i32 = arith.constant 0 : i32
    %c0_i32_0 = arith.constant 0 : i32
    %c0_i32_1 = arith.constant 0 : i32
    return %c0_i32, %c0_i32_0 : i32, i32
  }
  func.func @transform_13(%arg0: i32) -> (i32, i32) {
    %c0_i32 = arith.constant 0 : i32
    %c0_i32_0 = arith.constant 0 : i32
    %c0_i32_1 = arith.constant 0 : i32
    return %c0_i32, %c0_i32_0 : i32, i32
  }
  func.func @transform_14(%arg0: i32) -> (i32, i32) {
    %c0_i32 = arith.constant 0 : i32
    %c0_i32_0 = arith.constant 0 : i32
    %c0_i32_1 = arith.constant 0 : i32
    return %c0_i32, %c0_i32_0 : i32, i32
  }
  func.func @transform_15(%arg0: i32) -> (i32, i32) {
    %c0_i32 = arith.constant 0 : i32
    %c0_i32_0 = arith.constant 0 : i32
    %c0_i32_1 = arith.constant 0 : i32
    return %c0_i32, %c0_i32_0 : i32, i32
  }
  func.func @transform_16(%arg0: i32) -> (i32, i32) {
    %c0_i32 = arith.constant 0 : i32
    %c0_i32_0 = arith.constant 0 : i32
    %c0_i32_1 = arith.constant 0 : i32
    return %c0_i32, %c0_i32_0 : i32, i32
  }
  func.func @transform_17(%arg0: i32) -> (i32, i32) {
    %c0_i32 = arith.constant 0 : i32
    %c0_i32_0 = arith.constant 0 : i32
    %c0_i32_1 = arith.constant 0 : i32
    return %c0_i32, %c0_i32_0 : i32, i32
  }
  func.func @transform_18(%arg0: i32) -> (i32, i32) {
    %c0_i32 = arith.constant 0 : i32
    %c0_i32_0 = arith.constant 0 : i32
    %c0_i32_1 = arith.constant 0 : i32
    return %c0_i32, %c0_i32_0 : i32, i32
  }
  func.func @transform_19(%arg0: i32) -> (i32, i32) {
    %c0_i32 = arith.constant 0 : i32
    %c0_i32_0 = arith.constant 0 : i32
    %c0_i32_1 = arith.constant 0 : i32
    return %c0_i32, %c0_i32_0 : i32, i32
  }
  func.func @transform_20(%arg0: i32) -> (i32, i32) {
    %c0_i32 = arith.constant 0 : i32
    %c0_i32_0 = arith.constant 0 : i32
    %c0_i32_1 = arith.constant 0 : i32
    return %c0_i32, %c0_i32_0 : i32, i32
  }
  func.func @transform_21(%arg0: i32) -> (i32, i32) {
    %c0_i32 = arith.constant 0 : i32
    %c0_i32_0 = arith.constant 0 : i32
    %c0_i32_1 = arith.constant 0 : i32
    return %c0_i32, %c0_i32_0 : i32, i32
  }
  func.func @transform_22(%arg0: i32) -> (i32, i32) {
    %c0_i32 = arith.constant 0 : i32
    %c0_i32_0 = arith.constant 0 : i32
    %c0_i32_1 = arith.constant 0 : i32
    return %c0_i32, %c0_i32_0 : i32, i32
  }
  func.func @transform_23(%arg0: i32) -> (i32, i32) {
    %c0_i32 = arith.constant 0 : i32
    %c0_i32_0 = arith.constant 0 : i32
    %c0_i32_1 = arith.constant 0 : i32
    return %c0_i32, %c0_i32_0 : i32, i32
  }
  func.func @transform_24(%arg0: i32) -> (i32, i32) {
    %c0_i32 = arith.constant 0 : i32
    %c0_i32_0 = arith.constant 0 : i32
    %c0_i32_1 = arith.constant 0 : i32
    return %c0_i32, %c0_i32_0 : i32, i32
  }
  func.func @transform_25(%arg0: i32) -> (i32, i32, i32) {
    %c0_i32 = arith.constant 0 : i32
    %c0_i32_0 = arith.constant 0 : i32
    %c0_i32_1 = arith.constant 0 : i32
    %c0_i32_2 = arith.constant 0 : i32
    return %c0_i32, %c0_i32_0, %c0_i32_1 : i32, i32, i32
  }
  func.func @transform_26(%arg0: i32) -> (i32, i32) {
    %c0_i32 = arith.constant 0 : i32
    %c0_i32_0 = arith.constant 0 : i32
    %c0_i32_1 = arith.constant 0 : i32
    return %c0_i32, %c0_i32_0 : i32, i32
  }
  func.func @transform_27(%arg0: i32) -> (i32, i32) {
    %c0_i32 = arith.constant 0 : i32
    %c0_i32_0 = arith.constant 0 : i32
    %c0_i32_1 = arith.constant 0 : i32
    return %c0_i32, %c0_i32_0 : i32, i32
  }
  func.func @transform_28(%arg0: i32) -> (i32, i32) {
    %c0_i32 = arith.constant 0 : i32
    %c0_i32_0 = arith.constant 0 : i32
    %c0_i32_1 = arith.constant 0 : i32
    return %c0_i32, %c0_i32_0 : i32, i32
  }
  func.func @transform_29(%arg0: i32) -> (i32, i32, i32) {
    %c0_i32 = arith.constant 0 : i32
    %c0_i32_0 = arith.constant 0 : i32
    %c0_i32_1 = arith.constant 0 : i32
    return %arg0, %c0_i32, %c0_i32_0 : i32, i32, i32
  }
  func.func @transform_30(%arg0: i32) -> (i32, i32, i32) {
    %c0_i32 = arith.constant 0 : i32
    %c0_i32_0 = arith.constant 0 : i32
    %c0_i32_1 = arith.constant 0 : i32
    return %arg0, %c0_i32, %c0_i32_0 : i32, i32, i32
  }
}

</mosaic_0001>

<llo_original>
// kernel: pitch_model_forward.1
$region0: #{pitch_model_forward.1}
  #allocation0 [shape = 'u32[]', space=smem, size = 0x4, offset = 0x4, fixed_abs, tag = 'smem constant byte address 0x4 - core index']
  #allocation1 [shape = 'u32[144,128]{1,0:T(1,128)}', space=vmem, size = 0x12000, scoped, tag = 'internal scratch']
  #allocation2 [shape = 'f32[1,1]{1,0:T(1,128)S(1)}', space=vmem, size = 0x200, scoped, tag = 'scoped memory for pitch_model_forward.1']
  %s0 = inlined_call_operand.smem [shape: u32[31], index: -1, kind: input, shape index: {}]
  %s1 = sld [smem:[%s0]]
  %s2 = scalar_lea.smem %s0, 1
  %s3 = sld [smem:[%s2]]
  %s4 = scalar_lea.smem %s0, 2
  %s5 = sld [smem:[%s4]]
  %s6 = scalar_lea.smem %s0, 3
  %s7 = sld [smem:[%s6]]
  %s8 = scalar_lea.smem %s0, 4
  %s9 = sld [smem:[%s8]]
  %s10 = scalar_lea.smem %s0, 5
  %s11 = sld [smem:[%s10]]
  %s12 = scalar_lea.smem %s0, 6
  %s13 = sld [smem:[%s12]]
  %s14 = scalar_lea.smem %s0, 7
  %s15 = sld [smem:[%s14]]
  %s16 = scalar_lea.smem %s0, 8
  %s17 = sld [smem:[%s16]]
  %s18 = scalar_lea.smem %s0, 9
  %s19 = sld [smem:[%s18]]
  %s20 = scalar_lea.smem %s0, 10
  %s21 = sld [smem:[%s20]]
  %s22 = scalar_lea.smem %s0, 11
  %s23 = sld [smem:[%s22]]
  %s24 = scalar_lea.smem %s0, 12
  %s25 = sld [smem:[%s24]]
  %s26 = scalar_lea.smem %s0, 13
  %s27 = sld [smem:[%s26]]
  %s28 = scalar_lea.smem %s0, 14
  %s29 = sld [smem:[%s28]]
  %s30 = scalar_lea.smem %s0, 15
  %s31 = sld [smem:[%s30]]
  %s32 = scalar_lea.smem %s0, 16
  %s33 = sld [smem:[%s32]]
  %s34 = scalar_lea.smem %s0, 17
  %s35 = sld [smem:[%s34]]
  %s36 = scalar_lea.smem %s0, 18
  %s37 = sld [smem:[%s36]]
  %s38 = scalar_lea.smem %s0, 19
  %s39 = sld [smem:[%s38]]
  %s40 = scalar_lea.smem %s0, 20
  %s41 = sld [smem:[%s40]]
  %s42 = scalar_lea.smem %s0, 21
  %s43 = sld [smem:[%s42]]
  %s44 = scalar_lea.smem %s0, 22
  %s45 = sld [smem:[%s44]]
  %s46 = scalar_lea.smem %s0, 23
  %s47 = sld [smem:[%s46]]
  %s48 = scalar_lea.smem %s0, 24
  %s49 = sld [smem:[%s48]]
  %s50 = scalar_lea.smem %s0, 25
  %s51 = sld [smem:[%s50]]
  %s52 = scalar_lea.smem %s0, 26
  %s53 = sld [smem:[%s52]]
  %s54 = scalar_lea.smem %s0, 27
  %s55 = sld [smem:[%s54]]
  %s56 = scalar_lea.smem %s0, 28
  %s57 = sld [smem:[%s56]]
  %s58 = scalar_lea.smem %s0, 29
  %s59 = sld [smem:[%s58]]
  %s60 = scalar_lea.smem %s0, 30
  %s61 = sld [smem:[%s60]]
  %62 = xla_tuple %s59, %s61
  %s63 = sld [smem:[#allocation0]]
  $region157: #{pitch_model_forward.1} parent=0
    _
  %s65 = ssub.s32 1, %s63
  %s66 = scalar_select 0, %s65, %s63
  %v67 = vstv %s57
  %68 = vst [vmem:[#allocation2] sm:$0x1] %v67
  loop: start=0, step=1, limit=4
  $region2: #{pitch_model_forward.1} parent=0 // loop_pre_header
    _
  $region3: #{pitch_model_forward.1} parent=0 // loop_header
    %s70 = sphi 0, %s74
    %p71 = scmp.ge.s32.totalorder %s70, 4
    %s80 = sphi 0, %s82
    %s83 = sphi 0, %s80
    %s84 = sphi 0, %s83
    %s100 = sphi 0, %s84
    %s106 = sphi 0, %s108
    %s109 = sphi 0, %s106
    %s110 = sphi 0, %s109
    %s126 = sphi 0, %s110
    %s132 = sphi 0, %s134
    %s135 = sphi 0, %s132
    %s136 = sphi 0, %s135
    %s152 = sphi 0, %s136
    %s156 = sphi 0, %s156
    %s158 = sphi 0, %s156
    %s159 = sphi 0, %s158
    %s173 = sphi 0, %s159
    %s177 = sphi 0, %s177
    %s179 = sphi 0, %s177
    %s180 = sphi 0, %s179
    %s194 = sphi 0, %s180
    %s198 = sphi 0, %s198
    %s200 = sphi 0, %s198
    %s201 = sphi 0, %s200
    %s215 = sphi 0, %s201
    %s219 = sphi 0, %s219
    %s221 = sphi 0, %s219
    %s222 = sphi 0, %s221
    %s236 = sphi 0, %s222
    %s240 = sphi 0, %s240
    %s242 = sphi 0, %s240
    %s243 = sphi 0, %s242
    %s257 = sphi 0, %s243
    %s261 = sphi 0, %s261
    %s263 = sphi 0, %s261
    %s264 = sphi 0, %s263
    %s278 = sphi 0, %s264
    %s282 = sphi 0, %s282
    %s284 = sphi 0, %s282
    %s285 = sphi 0, %s284
    %s299 = sphi 0, %s285
    %s303 = sphi 0, %s303
    %s305 = sphi 0, %s303
    %s306 = sphi 0, %s305
    %s320 = sphi 0, %s306
    %s324 = sphi 0, %s324
    %s326 = sphi 0, %s324
    %s327 = sphi 0, %s326
    %s341 = sphi 0, %s327
    %s345 = sphi 0, %s345
    %s347 = sphi 0, %s345
    %s348 = sphi 0, %s347
    %s362 = sphi 0, %s348
    %s366 = sphi 0, %s366
    %s368 = sphi 0, %s366
    %s369 = sphi 0, %s368
    %s383 = sphi 0, %s369
    %s387 = sphi 0, %s387
    %s389 = sphi 0, %s387
    %s390 = sphi 0, %s389
    %s404 = sphi 0, %s390
    %s408 = sphi 0, %s408
    %s410 = sphi 0, %s408
    %s411 = sphi 0, %s410
    %s425 = sphi 0, %s411
    %s429 = sphi 0, %s429
    %s431 = sphi 0, %s429
    %s432 = sphi 0, %s431
    %s446 = sphi 0, %s432
    %s450 = sphi 0, %s450
    %s452 = sphi 0, %s450
    %s453 = sphi 0, %s452
    %s467 = sphi 0, %s453
    %s471 = sphi 0, %s471
    %s473 = sphi 0, %s471
    %s474 = sphi 0, %s473
    %s488 = sphi 0, %s474
    %s492 = sphi 0, %s492
    %s494 = sphi 0, %s492
    %s495 = sphi 0, %s494
    %s509 = sphi 0, %s495
    %s513 = sphi 0, %s513
    %s515 = sphi 0, %s513
    %s516 = sphi 0, %s515
    %s530 = sphi 0, %s516
    %s534 = sphi 0, %s534
    %s536 = sphi 0, %s534
    %s537 = sphi 0, %s536
    %s551 = sphi 0, %s537
    %s555 = sphi 0, %s555
    %s557 = sphi 0, %s555
    %s558 = sphi 0, %s557
    %s572 = sphi 0, %s558
    %s576 = sphi 0, %s576
    %s578 = sphi 0, %s576
    %s579 = sphi 0, %s578
    %s593 = sphi 0, %s579
    %s597 = sphi 0, %s597
    %s599 = sphi 0, %s597
    %s600 = sphi 0, %s599
    %s614 = sphi 0, %s600
    %s618 = sphi 0, %s618
    %s620 = sphi 0, %s618
    %s621 = sphi 0, %s620
    %s635 = sphi 0, %s621
    %s639 = sphi 0, %s639
    %s641 = sphi 0, %s639
    %s642 = sphi 0, %s641
    %s656 = sphi 0, %s642
    %s660 = sphi 0, %s660
    %s662 = sphi 0, %s660
    %s663 = sphi 0, %s662
    %s677 = sphi 0, %s663
    %s681 = sphi 0, %s681
    %s683 = sphi 0, %s681
    %s684 = sphi 0, %s683
    %s698 = sphi 0, %s684
    %s704 = sphi 0, %s706
    %s707 = sphi 0, %s704
    %s708 = sphi 0, %s707
    %s724 = sphi 0, %s708
    %s730 = sphi 0, %s732
    %s733 = sphi 0, %s730
    %s734 = sphi 0, %s733
    %s750 = sphi 0, %s734
  $region4: #{pitch_model_forward.1} parent=0 // loop_header_branch
    %73 = sbr.rel (%p71) target = $region8
  $region5: #{pitch_model_forward.1} parent=0 // loop_body
    %s75 = ssub.s32 %s70, 1
    %s76 = ssub.s32 %s70, 2
    %s77 = sadd.s32 %s70, 1
    %s78 = ssub.s32 %s70, %s77
    %p79 = scmp.eq.s32.totalorder %s78, 0
    %s81 = sadd.s32 %s80, 1
    %s82 = scalar_select %p79, %s80, %s81
    %p85 = pneg %p79
    %p86 = scmp.eq.s32.totalorder %s70, 1
    %p87 = por %p85, %p86
    %p88 = scmp.ne.s32.totalorder %s80, %s83
    %p89 = scmp.eq.s32.totalorder %s70, 0
    %p90 = por %p88, %p89
    %p91 = scmp.ne.s32.totalorder %s80, %s83
    %p92 = scmp.eq.s32.totalorder %s75, 1
    %p93 = por %p91, %p92
    %p94 = scmp.ne.s32.totalorder %s83, %s84
    %p95 = scmp.eq.s32.totalorder %s75, 0
    %p96 = por %p94, %p95
    %p97 = scmp.ne.s32.totalorder %s83, %s84
    %p98 = scmp.eq.s32.totalorder %s76, 1
    %p99 = por %p97, %p98
    %p101 = scmp.ne.s32.totalorder %s84, %s100
    %p102 = scmp.eq.s32.totalorder %s76, 0
    %p103 = por %p101, %p102
    %s104 = ssub.s32 %s70, %s77
    %p105 = scmp.eq.s32.totalorder %s104, 0
    %s107 = sadd.s32 %s106, 1
    %s108 = scalar_select %p105, %s106, %s107
    %p111 = pneg %p105
    %p112 = scmp.eq.s32.totalorder %s70, 1
    %p113 = por %p111, %p112
    %p114 = scmp.ne.s32.totalorder %s106, %s109
    %p115 = scmp.eq.s32.totalorder %s70, 0
    %p116 = por %p114, %p115
    %p117 = scmp.ne.s32.totalorder %s106, %s109
    %p118 = scmp.eq.s32.totalorder %s75, 1
    %p119 = por %p117, %p118
    %p120 = scmp.ne.s32.totalorder %s109, %s110
    %p121 = scmp.eq.s32.totalorder %s75, 0
    %p122 = por %p120, %p121
    %p123 = scmp.ne.s32.totalorder %s109, %s110
    %p124 = scmp.eq.s32.totalorder %s76, 1
    %p125 = por %p123, %p124
    %p127 = scmp.ne.s32.totalorder %s110, %s126
    %p128 = scmp.eq.s32.totalorder %s76, 0
    %p129 = por %p127, %p128
    %s130 = ssub.s32 %s70, %s77
    %p131 = scmp.eq.s32.totalorder %s130, 0
    %s133 = sadd.s32 %s132, 1
    %s134 = scalar_select %p131, %s132, %s133
    %p137 = pneg %p131
    %p138 = scmp.eq.s32.totalorder %s70, 1
    %p139 = por %p137, %p138
    %p140 = scmp.ne.s32.totalorder %s132, %s135
    %p141 = scmp.eq.s32.totalorder %s70, 0
    %p142 = por %p140, %p141
    %p143 = scmp.ne.s32.totalorder %s132, %s135
    %p144 = scmp.eq.s32.totalorder %s75, 1
    %p145 = por %p143, %p144
    %p146 = scmp.ne.s32.totalorder %s135, %s136
    %p147 = scmp.eq.s32.totalorder %s75, 0
    %p148 = por %p146, %p147
    %p149 = scmp.ne.s32.totalorder %s135, %s136
    %p150 = scmp.eq.s32.totalorder %s76, 1
    %p151 = por %p149, %p150
    %p153 = scmp.ne.s32.totalorder %s136, %s152
    %p154 = scmp.eq.s32.totalorder %s76, 0
    %p155 = por %p153, %p154
    %s157 = sadd.s32 %s156, 1
    %p160 = scmp.eq.s32.totalorder %s70, 1
    %p161 = scmp.ne.s32.totalorder %s156, %s158
    %p162 = scmp.eq.s32.totalorder %s70, 0
    %p163 = por %p161, %p162
    %p164 = scmp.ne.s32.totalorder %s156, %s158
    %p165 = scmp.eq.s32.totalorder %s75, 1
    %p166 = por %p164, %p165
    %p167 = scmp.ne.s32.totalorder %s158, %s159
    %p168 = scmp.eq.s32.totalorder %s75, 0
    %p169 = por %p167, %p168
    %p170 = scmp.ne.s32.totalorder %s158, %s159
    %p171 = scmp.eq.s32.totalorder %s76, 1
    %p172 = por %p170, %p171
    %p174 = scmp.ne.s32.totalorder %s159, %s173
    %p175 = scmp.eq.s32.totalorder %s76, 0
    %p176 = por %p174, %p175
    %s178 = sadd.s32 %s177, 1
    %p181 = scmp.eq.s32.totalorder %s70, 1
    %p182 = scmp.ne.s32.totalorder %s177, %s179
    %p183 = scmp.eq.s32.totalorder %s70, 0
    %p184 = por %p182, %p183
    %p185 = scmp.ne.s32.totalorder %s177, %s179
    %p186 = scmp.eq.s32.totalorder %s75, 1
    %p187 = por %p185, %p186
    %p188 = scmp.ne.s32.totalorder %s179, %s180
    %p189 = scmp.eq.s32.totalorder %s75, 0
    %p190 = por %p188, %p189
    %p191 = scmp.ne.s32.totalorder %s179, %s180
    %p192 = scmp.eq.s32.totalorder %s76, 1
    %p193 = por %p191, %p192
    %p195 = scmp.ne.s32.totalorder %s180, %s194
    %p196 = scmp.eq.s32.totalorder %s76, 0
    %p197 = por %p195, %p196
    %s199 = sadd.s32 %s198, 1
    %p202 = scmp.eq.s32.totalorder %s70, 1
    %p203 = scmp.ne.s32.totalorder %s198, %s200
    %p204 = scmp.eq.s32.totalorder %s70, 0
    %p205 = por %p203, %p204
    %p206 = scmp.ne.s32.totalorder %s198, %s200
    %p207 = scmp.eq.s32.totalorder %s75, 1
    %p208 = por %p206, %p207
    %p209 = scmp.ne.s32.totalorder %s200, %s201
    %p210 = scmp.eq.s32.totalorder %s75, 0
    %p211 = por %p209, %p210
    %p212 = scmp.ne.s32.totalorder %s200, %s201
    %p213 = scmp.eq.s32.totalorder %s76, 1
    %p214 = por %p212, %p213
    %p216 = scmp.ne.s32.totalorder %s201, %s215
    %p217 = scmp.eq.s32.totalorder %s76, 0
    %p218 = por %p216, %p217
    %s220 = sadd.s32 %s219, 1
    %p223 = scmp.eq.s32.totalorder %s70, 1
    %p224 = scmp.ne.s32.totalorder %s219, %s221
    %p225 = scmp.eq.s32.totalorder %s70, 0
    %p226 = por %p224, %p225
    %p227 = scmp.ne.s32.totalorder %s219, %s221
    %p228 = scmp.eq.s32.totalorder %s75, 1
    %p229 = por %p227, %p228
    %p230 = scmp.ne.s32.totalorder %s221, %s222
    %p231 = scmp.eq.s32.totalorder %s75, 0
    %p232 = por %p230, %p231
    %p233 = scmp.ne.s32.totalorder %s221, %s222
    %p234 = scmp.eq.s32.totalorder %s76, 1
    %p235 = por %p233, %p234
    %p237 = scmp.ne.s32.totalorder %s222, %s236
    %p238 = scmp.eq.s32.totalorder %s76, 0
    %p239 = por %p237, %p238
    %s241 = sadd.s32 %s240, 1
    %p244 = scmp.eq.s32.totalorder %s70, 1
    %p245 = scmp.ne.s32.totalorder %s240, %s242
    %p246 = scmp.eq.s32.totalorder %s70, 0
    %p247 = por %p245, %p246
    %p248 = scmp.ne.s32.totalorder %s240, %s242
    %p249 = scmp.eq.s32.totalorder %s75, 1
    %p250 = por %p248, %p249
    %p251 = scmp.ne.s32.totalorder %s242, %s243
    %p252 = scmp.eq.s32.totalorder %s75, 0
    %p253 = por %p251, %p252
    %p254 = scmp.ne.s32.totalorder %s242, %s243
    %p255 = scmp.eq.s32.totalorder %s76, 1
    %p256 = por %p254, %p255
    %p258 = scmp.ne.s32.totalorder %s243, %s257
    %p259 = scmp.eq.s32.totalorder %s76, 0
    %p260 = por %p258, %p259
    %s262 = sadd.s32 %s261, 1
    %p265 = scmp.eq.s32.totalorder %s70, 1
    %p266 = scmp.ne.s32.totalorder %s261, %s263
    %p267 = scmp.eq.s32.totalorder %s70, 0
    %p268 = por %p266, %p267
    %p269 = scmp.ne.s32.totalorder %s261, %s263
    %p270 = scmp.eq.s32.totalorder %s75, 1
    %p271 = por %p269, %p270
    %p272 = scmp.ne.s32.totalorder %s263, %s264
    %p273 = scmp.eq.s32.totalorder %s75, 0
    %p274 = por %p272, %p273
    %p275 = scmp.ne.s32.totalorder %s263, %s264
    %p276 = scmp.eq.s32.totalorder %s76, 1
    %p277 = por %p275, %p276
    %p279 = scmp.ne.s32.totalorder %s264, %s278
    %p280 = scmp.eq.s32.totalorder %s76, 0
    %p281 = por %p279, %p280
    %s283 = sadd.s32 %s282, 1
    %p286 = scmp.eq.s32.totalorder %s70, 1
    %p287 = scmp.ne.s32.totalorder %s282, %s284
    %p288 = scmp.eq.s32.totalorder %s70, 0
    %p289 = por %p287, %p288
    %p290 = scmp.ne.s32.totalorder %s282, %s284
    %p291 = scmp.eq.s32.totalorder %s75, 1
    %p292 = por %p290, %p291
    %p293 = scmp.ne.s32.totalorder %s284, %s285
    %p294 = scmp.eq.s32.totalorder %s75, 0
    %p295 = por %p293, %p294
    %p296 = scmp.ne.s32.totalorder %s284, %s285
    %p297 = scmp.eq.s32.totalorder %s76, 1
    %p298 = por %p296, %p297
    %p300 = scmp.ne.s32.totalorder %s285, %s299
    %p301 = scmp.eq.s32.totalorder %s76, 0
    %p302 = por %p300, %p301
    %s304 = sadd.s32 %s303, 1
    %p307 = scmp.eq.s32.totalorder %s70, 1
    %p308 = scmp.ne.s32.totalorder %s303, %s305
    %p309 = scmp.eq.s32.totalorder %s70, 0
    %p310 = por %p308, %p309
    %p311 = scmp.ne.s32.totalorder %s303, %s305
    %p312 = scmp.eq.s32.totalorder %s75, 1
    %p313 = por %p311, %p312
    %p314 = scmp.ne.s32.totalorder %s305, %s306
    %p315 = scmp.eq.s32.totalorder %s75, 0
    %p316 = por %p314, %p315
    %p317 = scmp.ne.s32.totalorder %s305, %s306
    %p318 = scmp.eq.s32.totalorder %s76, 1
    %p319 = por %p317, %p318
    %p321 = scmp.ne.s32.totalorder %s306, %s320
    %p322 = scmp.eq.s32.totalorder %s76, 0
    %p323 = por %p321, %p322
    %s325 = sadd.s32 %s324, 1
    %p328 = scmp.eq.s32.totalorder %s70, 1
    %p329 = scmp.ne.s32.totalorder %s324, %s326
    %p330 = scmp.eq.s32.totalorder %s70, 0
    %p331 = por %p329, %p330
    %p332 = scmp.ne.s32.totalorder %s324, %s326
    %p333 = scmp.eq.s32.totalorder %s75, 1
    %p334 = por %p332, %p333
    %p335 = scmp.ne.s32.totalorder %s326, %s327
    %p336 = scmp.eq.s32.totalorder %s75, 0
    %p337 = por %p335, %p336
    %p338 = scmp.ne.s32.totalorder %s326, %s327
    %p339 = scmp.eq.s32.totalorder %s76, 1
    %p340 = por %p338, %p339
    %p342 = scmp.ne.s32.totalorder %s327, %s341
    %p343 = scmp.eq.s32.totalorder %s76, 0
    %p344 = por %p342, %p343
    %s346 = sadd.s32 %s345, 1
    %p349 = scmp.eq.s32.totalorder %s70, 1
    %p350 = scmp.ne.s32.totalorder %s345, %s347
    %p351 = scmp.eq.s32.totalorder %s70, 0
    %p352 = por %p350, %p351
    %p353 = scmp.ne.s32.totalorder %s345, %s347
    %p354 = scmp.eq.s32.totalorder %s75, 1
    %p355 = por %p353, %p354
    %p356 = scmp.ne.s32.totalorder %s347, %s348
    %p357 = scmp.eq.s32.totalorder %s75, 0
    %p358 = por %p356, %p357
    %p359 = scmp.ne.s32.totalorder %s347, %s348
    %p360 = scmp.eq.s32.totalorder %s76, 1
    %p361 = por %p359, %p360
    %p363 = scmp.ne.s32.totalorder %s348, %s362
    %p364 = scmp.eq.s32.totalorder %s76, 0
    %p365 = por %p363, %p364
    %s367 = sadd.s32 %s366, 1
    %p370 = scmp.eq.s32.totalorder %s70, 1
    %p371 = scmp.ne.s32.totalorder %s366, %s368
    %p372 = scmp.eq.s32.totalorder %s70, 0
    %p373 = por %p371, %p372
    %p374 = scmp.ne.s32.totalorder %s366, %s368
    %p375 = scmp.eq.s32.totalorder %s75, 1
    %p376 = por %p374, %p375
    %p377 = scmp.ne.s32.totalorder %s368, %s369
    %p378 = scmp.eq.s32.totalorder %s75, 0
    %p379 = por %p377, %p378
    %p380 = scmp.ne.s32.totalorder %s368, %s369
    %p381 = scmp.eq.s32.totalorder %s76, 1
    %p382 = por %p380, %p381
    %p384 = scmp.ne.s32.totalorder %s369, %s383
    %p385 = scmp.eq.s32.totalorder %s76, 0
    %p386 = por %p384, %p385
    %s388 = sadd.s32 %s387, 1
    %p391 = scmp.eq.s32.totalorder %s70, 1
    %p392 = scmp.ne.s32.totalorder %s387, %s389
    %p393 = scmp.eq.s32.totalorder %s70, 0
    %p394 = por %p392, %p393
    %p395 = scmp.ne.s32.totalorder %s387, %s389
    %p396 = scmp.eq.s32.totalorder %s75, 1
    %p397 = por %p395, %p396
    %p398 = scmp.ne.s32.totalorder %s389, %s390
    %p399 = scmp.eq.s32.totalorder %s75, 0
    %p400 = por %p398, %p399
    %p401 = scmp.ne.s32.totalorder %s389, %s390
    %p402 = scmp.eq.s32.totalorder %s76, 1
    %p403 = por %p401, %p402
    %p405 = scmp.ne.s32.totalorder %s390, %s404
    %p406 = scmp.eq.s32.totalorder %s76, 0
    %p407 = por %p405, %p406
    %s409 = sadd.s32 %s408, 1
    %p412 = scmp.eq.s32.totalorder %s70, 1
    %p413 = scmp.ne.s32.totalorder %s408, %s410
    %p414 = scmp.eq.s32.totalorder %s70, 0
    %p415 = por %p413, %p414
    %p416 = scmp.ne.s32.totalorder %s408, %s410
    %p417 = scmp.eq.s32.totalorder %s75, 1
    %p418 = por %p416, %p417
    %p419 = scmp.ne.s32.totalorder %s410, %s411
    %p420 = scmp.eq.s32.totalorder %s75, 0
    %p421 = por %p419, %p420
    %p422 = scmp.ne.s32.totalorder %s410, %s411
    %p423 = scmp.eq.s32.totalorder %s76, 1
    %p424 = por %p422, %p423
    %p426 = scmp.ne.s32.totalorder %s411, %s425
    %p427 = scmp.eq.s32.totalorder %s76, 0
    %p428 = por %p426, %p427
    %s430 = sadd.s32 %s429, 1
    %p433 = scmp.eq.s32.totalorder %s70, 1
    %p434 = scmp.ne.s32.totalorder %s429, %s431
    %p435 = scmp.eq.s32.totalorder %s70, 0
    %p436 = por %p434, %p435
    %p437 = scmp.ne.s32.totalorder %s429, %s431
    %p438 = scmp.eq.s32.totalorder %s75, 1
    %p439 = por %p437, %p438
    %p440 = scmp.ne.s32.totalorder %s431, %s432
    %p441 = scmp.eq.s32.totalorder %s75, 0
    %p442 = por %p440, %p441
    %p443 = scmp.ne.s32.totalorder %s431, %s432
    %p444 = scmp.eq.s32.totalorder %s76, 1
    %p445 = por %p443, %p444
    %p447 = scmp.ne.s32.totalorder %s432, %s446
    %p448 = scmp.eq.s32.totalorder %s76, 0
    %p449 = por %p447, %p448
    %s451 = sadd.s32 %s450, 1
    %p454 = scmp.eq.s32.totalorder %s70, 1
    %p455 = scmp.ne.s32.totalorder %s450, %s452
    %p456 = scmp.eq.s32.totalorder %s70, 0
    %p457 = por %p455, %p456
    %p458 = scmp.ne.s32.totalorder %s450, %s452
    %p459 = scmp.eq.s32.totalorder %s75, 1
    %p460 = por %p458, %p459
    %p461 = scmp.ne.s32.totalorder %s452, %s453
    %p462 = scmp.eq.s32.totalorder %s75, 0
    %p463 = por %p461, %p462
    %p464 = scmp.ne.s32.totalorder %s452, %s453
    %p465 = scmp.eq.s32.totalorder %s76, 1
    %p466 = por %p464, %p465
    %p468 = scmp.ne.s32.totalorder %s453, %s467
    %p469 = scmp.eq.s32.totalorder %s76, 0
    %p470 = por %p468, %p469
    %s472 = sadd.s32 %s471, 1
    %p475 = scmp.eq.s32.totalorder %s70, 1
    %p476 = scmp.ne.s32.totalorder %s471, %s473
    %p477 = scmp.eq.s32.totalorder %s70, 0
    %p478 = por %p476, %p477
    %p479 = scmp.ne.s32.totalorder %s471, %s473
    %p480 = scmp.eq.s32.totalorder %s75, 1
    %p481 = por %p479, %p480
    %p482 = scmp.ne.s32.totalorder %s473, %s474
    %p483 = scmp.eq.s32.totalorder %s75, 0
    %p484 = por %p482, %p483
    %p485 = scmp.ne.s32.totalorder %s473, %s474
    %p486 = scmp.eq.s32.totalorder %s76, 1
    %p487 = por %p485, %p486
    %p489 = scmp.ne.s32.totalorder %s474, %s488
    %p490 = scmp.eq.s32.totalorder %s76, 0
    %p491 = por %p489, %p490
    %s493 = sadd.s32 %s492, 1
    %p496 = scmp.eq.s32.totalorder %s70, 1
    %p497 = scmp.ne.s32.totalorder %s492, %s494
    %p498 = scmp.eq.s32.totalorder %s70, 0
    %p499 = por %p497, %p498
    %p500 = scmp.ne.s32.totalorder %s492, %s494
    %p501 = scmp.eq.s32.totalorder %s75, 1
    %p502 = por %p500, %p501
    %p503 = scmp.ne.s32.totalorder %s494, %s495
    %p504 = scmp.eq.s32.totalorder %s75, 0
    %p505 = por %p503, %p504
    %p506 = scmp.ne.s32.totalorder %s494, %s495
    %p507 = scmp.eq.s32.totalorder %s76, 1
    %p508 = por %p506, %p507
    %p510 = scmp.ne.s32.totalorder %s495, %s509
    %p511 = scmp.eq.s32.totalorder %s76, 0
    %p512 = por %p510, %p511
    %s514 = sadd.s32 %s513, 1
    %p517 = scmp.eq.s32.totalorder %s70, 1
    %p518 = scmp.ne.s32.totalorder %s513, %s515
    %p519 = scmp.eq.s32.totalorder %s70, 0
    %p520 = por %p518, %p519
    %p521 = scmp.ne.s32.totalorder %s513, %s515
    %p522 = scmp.eq.s32.totalorder %s75, 1
    %p523 = por %p521, %p522
    %p524 = scmp.ne.s32.totalorder %s515, %s516
    %p525 = scmp.eq.s32.totalorder %s75, 0
    %p526 = por %p524, %p525
    %p527 = scmp.ne.s32.totalorder %s515, %s516
    %p528 = scmp.eq.s32.totalorder %s76, 1
    %p529 = por %p527, %p528
    %p531 = scmp.ne.s32.totalorder %s516, %s530
    %p532 = scmp.eq.s32.totalorder %s76, 0
    %p533 = por %p531, %p532
    %s535 = sadd.s32 %s534, 1
    %p538 = scmp.eq.s32.totalorder %s70, 1
    %p539 = scmp.ne.s32.totalorder %s534, %s536
    %p540 = scmp.eq.s32.totalorder %s70, 0
    %p541 = por %p539, %p540
    %p542 = scmp.ne.s32.totalorder %s534, %s536
    %p543 = scmp.eq.s32.totalorder %s75, 1
    %p544 = por %p542, %p543
    %p545 = scmp.ne.s32.totalorder %s536, %s537
    %p546 = scmp.eq.s32.totalorder %s75, 0
    %p547 = por %p545, %p546
    %p548 = scmp.ne.s32.totalorder %s536, %s537
    %p549 = scmp.eq.s32.totalorder %s76, 1
    %p550 = por %p548, %p549
    %p552 = scmp.ne.s32.totalorder %s537, %s551
    %p553 = scmp.eq.s32.totalorder %s76, 0
    %p554 = por %p552, %p553
    %s556 = sadd.s32 %s555, 1
    %p559 = scmp.eq.s32.totalorder %s70, 1
    %p560 = scmp.ne.s32.totalorder %s555, %s557
    %p561 = scmp.eq.s32.totalorder %s70, 0
    %p562 = por %p560, %p561
    %p563 = scmp.ne.s32.totalorder %s555, %s557
    %p564 = scmp.eq.s32.totalorder %s75, 1
    %p565 = por %p563, %p564
    %p566 = scmp.ne.s32.totalorder %s557, %s558
    %p567 = scmp.eq.s32.totalorder %s75, 0
    %p568 = por %p566, %p567
    %p569 = scmp.ne.s32.totalorder %s557, %s558
    %p570 = scmp.eq.s32.totalorder %s76, 1
    %p571 = por %p569, %p570
    %p573 = scmp.ne.s32.totalorder %s558, %s572
    %p574 = scmp.eq.s32.totalorder %s76, 0
    %p575 = por %p573, %p574
    %s577 = sadd.s32 %s576, 1
    %p580 = scmp.eq.s32.totalorder %s70, 1
    %p581 = scmp.ne.s32.totalorder %s576, %s578
    %p582 = scmp.eq.s32.totalorder %s70, 0
    %p583 = por %p581, %p582
    %p584 = scmp.ne.s32.totalorder %s576, %s578
    %p585 = scmp.eq.s32.totalorder %s75, 1
    %p586 = por %p584, %p585
    %p587 = scmp.ne.s32.totalorder %s578, %s579
    %p588 = scmp.eq.s32.totalorder %s75, 0
    %p589 = por %p587, %p588
    %p590 = scmp.ne.s32.totalorder %s578, %s579
    %p591 = scmp.eq.s32.totalorder %s76, 1
    %p592 = por %p590, %p591
    %p594 = scmp.ne.s32.totalorder %s579, %s593
    %p595 = scmp.eq.s32.totalorder %s76, 0
    %p596 = por %p594, %p595
    %s598 = sadd.s32 %s597, 1
    %p601 = scmp.eq.s32.totalorder %s70, 1
    %p602 = scmp.ne.s32.totalorder %s597, %s599
    %p603 = scmp.eq.s32.totalorder %s70, 0
    %p604 = por %p602, %p603
    %p605 = scmp.ne.s32.totalorder %s597, %s599
    %p606 = scmp.eq.s32.totalorder %s75, 1
    %p607 = por %p605, %p606
    %p608 = scmp.ne.s32.totalorder %s599, %s600
    %p609 = scmp.eq.s32.totalorder %s75, 0
    %p610 = por %p608, %p609
    %p611 = scmp.ne.s32.totalorder %s599, %s600
    %p612 = scmp.eq.s32.totalorder %s76, 1
    %p613 = por %p611, %p612
    %p615 = scmp.ne.s32.totalorder %s600, %s614
    %p616 = scmp.eq.s32.totalorder %s76, 0
    %p617 = por %p615, %p616
    %s619 = sadd.s32 %s618, 1
    %p622 = scmp.eq.s32.totalorder %s70, 1
    %p623 = scmp.ne.s32.totalorder %s618, %s620
    %p624 = scmp.eq.s32.totalorder %s70, 0
    %p625 = por %p623, %p624
    %p626 = scmp.ne.s32.totalorder %s618, %s620
    %p627 = scmp.eq.s32.totalorder %s75, 1
    %p628 = por %p626, %p627
    %p629 = scmp.ne.s32.totalorder %s620, %s621
    %p630 = scmp.eq.s32.totalorder %s75, 0
    %p631 = por %p629, %p630
    %p632 = scmp.ne.s32.totalorder %s620, %s621
    %p633 = scmp.eq.s32.totalorder %s76, 1
    %p634 = por %p632, %p633
    %p636 = scmp.ne.s32.totalorder %s621, %s635
    %p637 = scmp.eq.s32.totalorder %s76, 0
    %p638 = por %p636, %p637
    %s640 = sadd.s32 %s639, 1
    %p643 = scmp.eq.s32.totalorder %s70, 1
    %p644 = scmp.ne.s32.totalorder %s639, %s641
    %p645 = scmp.eq.s32.totalorder %s70, 0
    %p646 = por %p644, %p645
    %p647 = scmp.ne.s32.totalorder %s639, %s641
    %p648 = scmp.eq.s32.totalorder %s75, 1
    %p649 = por %p647, %p648
    %p650 = scmp.ne.s32.totalorder %s641, %s642
    %p651 = scmp.eq.s32.totalorder %s75, 0
    %p652 = por %p650, %p651
    %p653 = scmp.ne.s32.totalorder %s641, %s642
    %p654 = scmp.eq.s32.totalorder %s76, 1
    %p655 = por %p653, %p654
    %p657 = scmp.ne.s32.totalorder %s642, %s656
    %p658 = scmp.eq.s32.totalorder %s76, 0
    %p659 = por %p657, %p658
    %s661 = sadd.s32 %s660, 1
    %p664 = scmp.eq.s32.totalorder %s70, 1
    %p665 = scmp.ne.s32.totalorder %s660, %s662
    %p666 = scmp.eq.s32.totalorder %s70, 0
    %p667 = por %p665, %p666
    %p668 = scmp.ne.s32.totalorder %s660, %s662
    %p669 = scmp.eq.s32.totalorder %s75, 1
    %p670 = por %p668, %p669
    %p671 = scmp.ne.s32.totalorder %s662, %s663
    %p672 = scmp.eq.s32.totalorder %s75, 0
    %p673 = por %p671, %p672
    %p674 = scmp.ne.s32.totalorder %s662, %s663
    %p675 = scmp.eq.s32.totalorder %s76, 1
    %p676 = por %p674, %p675
    %p678 = scmp.ne.s32.totalorder %s663, %s677
    %p679 = scmp.eq.s32.totalorder %s76, 0
    %p680 = por %p678, %p679
    %s682 = sadd.s32 %s681, 1
    %p685 = scmp.eq.s32.totalorder %s70, 1
    %p686 = scmp.ne.s32.totalorder %s681, %s683
    %p687 = scmp.eq.s32.totalorder %s70, 0
    %p688 = por %p686, %p687
    %p689 = scmp.ne.s32.totalorder %s681, %s683
    %p690 = scmp.eq.s32.totalorder %s75, 1
    %p691 = por %p689, %p690
    %p692 = scmp.ne.s32.totalorder %s683, %s684
    %p693 = scmp.eq.s32.totalorder %s75, 0
    %p694 = por %p692, %p693
    %p695 = scmp.ne.s32.totalorder %s683, %s684
    %p696 = scmp.eq.s32.totalorder %s76, 1
    %p697 = por %p695, %p696
    %p699 = scmp.ne.s32.totalorder %s684, %s698
    %p700 = scmp.eq.s32.totalorder %s76, 0
    %p701 = por %p699, %p700
    %s702 = ssub.s32 %s70, %s77
    %p703 = scmp.eq.s32.totalorder %s702, 0
    %s705 = sadd.s32 %s704, 1
    %s706 = scalar_select %p703, %s704, %s705
    %p709 = pneg %p703
    %p710 = scmp.eq.s32.totalorder %s70, 1
    %p711 = por %p709, %p710
    %p712 = scmp.ne.s32.totalorder %s704, %s707
    %p713 = scmp.eq.s32.totalorder %s70, 0
    %p714 = por %p712, %p713
    %p715 = scmp.ne.s32.totalorder %s704, %s707
    %p716 = scmp.eq.s32.totalorder %s75, 1
    %p717 = por %p715, %p716
    %p718 = scmp.ne.s32.totalorder %s707, %s708
    %p719 = scmp.eq.s32.totalorder %s75, 0
    %p720 = por %p718, %p719
    %p721 = scmp.ne.s32.totalorder %s707, %s708
    %p722 = scmp.eq.s32.totalorder %s76, 1
    %p723 = por %p721, %p722
    %p725 = scmp.ne.s32.totalorder %s708, %s724
    %p726 = scmp.eq.s32.totalorder %s76, 0
    %p727 = por %p725, %p726
    %s728 = ssub.s32 %s70, %s77
    %p729 = scmp.eq.s32.totalorder %s728, 0
    %s731 = sadd.s32 %s730, 1
    %s732 = scalar_select %p729, %s730, %s731
    %p735 = pneg %p729
    %p736 = scmp.eq.s32.totalorder %s70, 1
    %p737 = por %p735, %p736
    %p738 = scmp.ne.s32.totalorder %s730, %s733
    %p739 = scmp.eq.s32.totalorder %s70, 0
    %p740 = por %p738, %p739
    %p741 = scmp.ne.s32.totalorder %s730, %s733
    %p742 = scmp.eq.s32.totalorder %s75, 1
    %p743 = por %p741, %p742
    %p744 = scmp.ne.s32.totalorder %s733, %s734
    %p745 = scmp.eq.s32.totalorder %s75, 0
    %p746 = por %p744, %p745
    %p747 = scmp.ne.s32.totalorder %s733, %s734
    %p748 = scmp.eq.s32.totalorder %s76, 1
    %p749 = por %p747, %p748
    %p751 = scmp.ne.s32.totalorder %s734, %s750
    %p752 = scmp.eq.s32.totalorder %s76, 0
    %p753 = por %p751, %p752
    %p754 = scmp.le.s32.totalorder 1, %s70
    %p755 = scmp.lt.s32.totalorder %s70, 3
    %p756 = pnand %p754, %p755
    %p757 = pneg %p756
    // Predicated region
    $region9: #{pitch_model_forward.1} parent=5 // pred_check
      _
    $region10: #{pitch_model_forward.1} parent=5 // pred_check_branch
      %759 = sbr.rel (%p756) target = $region12
    $region11: #{pitch_model_forward.1} parent=5 // pred_region
      %s760 = ssub.s32 %s70, 1
      // Predicated region
      $region13: #{pitch_model_forward.1} parent=11 // pred_check
        %p761 = pneg %p169
      $region14: #{pitch_model_forward.1} parent=11 // pred_check_branch
        %763 = sbr.rel (%p761) target = $region16
      $region15: #{pitch_model_forward.1} parent=11 // pred_region
        _
      $region16: #{pitch_model_forward.1} parent=11 // pred_fallthru
        _
      // Predicated region
      $region17: #{pitch_model_forward.1} parent=11 // pred_check
        %p764 = pneg %p190
      $region18: #{pitch_model_forward.1} parent=11 // pred_check_branch
        %766 = sbr.rel (%p764) target = $region20
      $region19: #{pitch_model_forward.1} parent=11 // pred_region
        _
      $region20: #{pitch_model_forward.1} parent=11 // pred_fallthru
        _
      // Predicated region
      $region21: #{pitch_model_forward.1} parent=11 // pred_check
        %p767 = pneg %p211
      $region22: #{pitch_model_forward.1} parent=11 // pred_check_branch
        %769 = sbr.rel (%p767) target = $region24
      $region23: #{pitch_model_forward.1} parent=11 // pred_region
        _
      $region24: #{pitch_model_forward.1} parent=11 // pred_fallthru
        _
      // Predicated region
      $region25: #{pitch_model_forward.1} parent=11 // pred_check
        %p770 = pneg %p232
      $region26: #{pitch_model_forward.1} parent=11 // pred_check_branch
        %772 = sbr.rel (%p770) target = $region28
      $region27: #{pitch_model_forward.1} parent=11 // pred_region
        _
      $region28: #{pitch_model_forward.1} parent=11 // pred_fallthru
        _
      // Predicated region
      $region29: #{pitch_model_forward.1} parent=11 // pred_check
        %p773 = pneg %p253
      $region30: #{pitch_model_forward.1} parent=11 // pred_check_branch
        %775 = sbr.rel (%p773) target = $region32
      $region31: #{pitch_model_forward.1} parent=11 // pred_region
        _
      $region32: #{pitch_model_forward.1} parent=11 // pred_fallthru
        _
      // Predicated region
      $region33: #{pitch_model_forward.1} parent=11 // pred_check
        %p776 = pneg %p274
      $region34: #{pitch_model_forward.1} parent=11 // pred_check_branch
        %778 = sbr.rel (%p776) target = $region36
      $region35: #{pitch_model_forward.1} parent=11 // pred_region
        _
      $region36: #{pitch_model_forward.1} parent=11 // pred_fallthru
        _
      // Predicated region
      $region37: #{pitch_model_forward.1} parent=11 // pred_check
        %p779 = pneg %p295
      $region38: #{pitch_model_forward.1} parent=11 // pred_check_branch
        %781 = sbr.rel (%p779) target = $region40
      $region39: #{pitch_model_forward.1} parent=11 // pred_region
        _
      $region40: #{pitch_model_forward.1} parent=11 // pred_fallthru
        _
      // Predicated region
      $region41: #{pitch_model_forward.1} parent=11 // pred_check
        %p782 = pneg %p316
      $region42: #{pitch_model_forward.1} parent=11 // pred_check_branch
        %784 = sbr.rel (%p782) target = $region44
      $region43: #{pitch_model_forward.1} parent=11 // pred_region
        _
      $region44: #{pitch_model_forward.1} parent=11 // pred_fallthru
        _
      // Predicated region
      $region45: #{pitch_model_forward.1} parent=11 // pred_check
        %p785 = pneg %p337
      $region46: #{pitch_model_forward.1} parent=11 // pred_check_branch
        %787 = sbr.rel (%p785) target = $region48
      $region47: #{pitch_model_forward.1} parent=11 // pred_region
        _
      $region48: #{pitch_model_forward.1} parent=11 // pred_fallthru
        _
      // Predicated region
      $region49: #{pitch_model_forward.1} parent=11 // pred_check
        %p788 = pneg %p358
      $region50: #{pitch_model_forward.1} parent=11 // pred_check_branch
        %790 = sbr.rel (%p788) target = $region52
      $region51: #{pitch_model_forward.1} parent=11 // pred_region
        _
      $region52: #{pitch_model_forward.1} parent=11 // pred_fallthru
        _
      // Predicated region
      $region53: #{pitch_model_forward.1} parent=11 // pred_check
        %p791 = pneg %p379
      $region54: #{pitch_model_forward.1} parent=11 // pred_check_branch
        %793 = sbr.rel (%p791) target = $region56
      $region55: #{pitch_model_forward.1} parent=11 // pred_region
        _
      $region56: #{pitch_model_forward.1} parent=11 // pred_fallthru
        _
      // Predicated region
      $region57: #{pitch_model_forward.1} parent=11 // pred_check
        %p794 = pneg %p400
      $region58: #{pitch_model_forward.1} parent=11 // pred_check_branch
        %796 = sbr.rel (%p794) target = $region60
      $region59: #{pitch_model_forward.1} parent=11 // pred_region
        _
      $region60: #{pitch_model_forward.1} parent=11 // pred_fallthru
        _
      // Predicated region
      $region61: #{pitch_model_forward.1} parent=11 // pred_check
        %p797 = pneg %p421
      $region62: #{pitch_model_forward.1} parent=11 // pred_check_branch
        %799 = sbr.rel (%p797) target = $region64
      $region63: #{pitch_model_forward.1} parent=11 // pred_region
        _
      $region64: #{pitch_model_forward.1} parent=11 // pred_fallthru
        _
      // Predicated region
      $region65: #{pitch_model_forward.1} parent=11 // pred_check
        %p800 = pneg %p442
      $region66: #{pitch_model_forward.1} parent=11 // pred_check_branch
        %802 = sbr.rel (%p800) target = $region68
      $region67: #{pitch_model_forward.1} parent=11 // pred_region
        _
      $region68: #{pitch_model_forward.1} parent=11 // pred_fallthru
        _
      // Predicated region
      $region69: #{pitch_model_forward.1} parent=11 // pred_check
        %p803 = pneg %p463
      $region70: #{pitch_model_forward.1} parent=11 // pred_check_branch
        %805 = sbr.rel (%p803) target = $region72
      $region71: #{pitch_model_forward.1} parent=11 // pred_region
        _
      $region72: #{pitch_model_forward.1} parent=11 // pred_fallthru
        _
      // Predicated region
      $region73: #{pitch_model_forward.1} parent=11 // pred_check
        %p806 = pneg %p484
      $region74: #{pitch_model_forward.1} parent=11 // pred_check_branch
        %808 = sbr.rel (%p806) target = $region76
      $region75: #{pitch_model_forward.1} parent=11 // pred_region
        _
      $region76: #{pitch_model_forward.1} parent=11 // pred_fallthru
        _
      // Predicated region
      $region77: #{pitch_model_forward.1} parent=11 // pred_check
        %p809 = pneg %p505
      $region78: #{pitch_model_forward.1} parent=11 // pred_check_branch
        %811 = sbr.rel (%p809) target = $region80
      $region79: #{pitch_model_forward.1} parent=11 // pred_region
        _
      $region80: #{pitch_model_forward.1} parent=11 // pred_fallthru
        _
      // Predicated region
      $region81: #{pitch_model_forward.1} parent=11 // pred_check
        %p812 = pneg %p526
      $region82: #{pitch_model_forward.1} parent=11 // pred_check_branch
        %814 = sbr.rel (%p812) target = $region84
      $region83: #{pitch_model_forward.1} parent=11 // pred_region
        _
      $region84: #{pitch_model_forward.1} parent=11 // pred_fallthru
        _
      // Predicated region
      $region85: #{pitch_model_forward.1} parent=11 // pred_check
        %p815 = pneg %p547
      $region86: #{pitch_model_forward.1} parent=11 // pred_check_branch
        %817 = sbr.rel (%p815) target = $region88
      $region87: #{pitch_model_forward.1} parent=11 // pred_region
        _
      $region88: #{pitch_model_forward.1} parent=11 // pred_fallthru
        _
      // Predicated region
      $region89: #{pitch_model_forward.1} parent=11 // pred_check
        %p818 = pneg %p568
      $region90: #{pitch_model_forward.1} parent=11 // pred_check_branch
        %820 = sbr.rel (%p818) target = $region92
      $region91: #{pitch_model_forward.1} parent=11 // pred_region
        _
      $region92: #{pitch_model_forward.1} parent=11 // pred_fallthru
        _
      // Predicated region
      $region93: #{pitch_model_forward.1} parent=11 // pred_check
        %p821 = pneg %p589
      $region94: #{pitch_model_forward.1} parent=11 // pred_check_branch
        %823 = sbr.rel (%p821) target = $region96
      $region95: #{pitch_model_forward.1} parent=11 // pred_region
        _
      $region96: #{pitch_model_forward.1} parent=11 // pred_fallthru
        _
      // Predicated region
      $region97: #{pitch_model_forward.1} parent=11 // pred_check
        %p824 = pneg %p610
      $region98: #{pitch_model_forward.1} parent=11 // pred_check_branch
        %826 = sbr.rel (%p824) target = $region100
      $region99: #{pitch_model_forward.1} parent=11 // pred_region
        _
      $region100: #{pitch_model_forward.1} parent=11 // pred_fallthru
        _
      // Predicated region
      $region101: #{pitch_model_forward.1} parent=11 // pred_check
        %p827 = pneg %p631
      $region102: #{pitch_model_forward.1} parent=11 // pred_check_branch
        %829 = sbr.rel (%p827) target = $region104
      $region103: #{pitch_model_forward.1} parent=11 // pred_region
        _
      $region104: #{pitch_model_forward.1} parent=11 // pred_fallthru
        _
      // Predicated region
      $region105: #{pitch_model_forward.1} parent=11 // pred_check
        %p830 = pneg %p652
      $region106: #{pitch_model_forward.1} parent=11 // pred_check_branch
        %832 = sbr.rel (%p830) target = $region108
      $region107: #{pitch_model_forward.1} parent=11 // pred_region
        _
      $region108: #{pitch_model_forward.1} parent=11 // pred_fallthru
        _
      // Predicated region
      $region109: #{pitch_model_forward.1} parent=11 // pred_check
        %p833 = pneg %p673
      $region110: #{pitch_model_forward.1} parent=11 // pred_check_branch
        %835 = sbr.rel (%p833) target = $region112
      $region111: #{pitch_model_forward.1} parent=11 // pred_region
        _
      $region112: #{pitch_model_forward.1} parent=11 // pred_fallthru
        _
      // Predicated region
      $region113: #{pitch_model_forward.1} parent=11 // pred_check
        %p836 = pneg %p694
      $region114: #{pitch_model_forward.1} parent=11 // pred_check_branch
        %838 = sbr.rel (%p836) target = $region116
      $region115: #{pitch_model_forward.1} parent=11 // pred_region
        _
      $region116: #{pitch_model_forward.1} parent=11 // pred_fallthru
        _
    $region12: #{pitch_model_forward.1} parent=5 // pred_fallthru
      _
    %p839 = scmp.lt.s32.totalorder %s70, 2
    // Predicated region
    $region117: #{pitch_model_forward.1} parent=5 // pred_check
      %p840 = pneg %p839
    $region118: #{pitch_model_forward.1} parent=5 // pred_check_branch
      %842 = sbr.rel (%p840) target = $region120
    $region119: #{pitch_model_forward.1} parent=5 // pred_region
      // Predicated region
      $region121: #{pitch_model_forward.1} parent=119 // pred_check
        %p843 = pneg %p90
      $region122: #{pitch_model_forward.1} parent=119 // pred_check_branch
        %845 = sbr.rel (%p843) target = $region124
      $region123: #{pitch_model_forward.1} parent=119 // pred_region
        %p846 = scmp.lt.s32.totalorder %s70, 1
        %s847 = scalar_select %p846, %s70, 1
        %s848 = smul.addr %s847, 2
        %s849 = smul.addr %s848, 4
        %s850 = scalar_lea.vmem %s1, %s849
      $region124: #{pitch_model_forward.1} parent=119 // pred_fallthru
        _
      // Predicated region
      $region125: #{pitch_model_forward.1} parent=119 // pred_check
        %p851 = pneg %p116
      $region126: #{pitch_model_forward.1} parent=119 // pred_check_branch
        %853 = sbr.rel (%p851) target = $region128
      $region127: #{pitch_model_forward.1} parent=119 // pred_region
        %p854 = scmp.lt.s32.totalorder %s70, 1
        %s855 = scalar_select %p854, %s70, 1
        %s856 = scalar_lea.vmem %s3, %s855
      $region128: #{pitch_model_forward.1} parent=119 // pred_fallthru
        _
      // Predicated region
      $region129: #{pitch_model_forward.1} parent=119 // pred_check
        %p857 = pneg %p142
      $region130: #{pitch_model_forward.1} parent=119 // pred_check_branch
        %859 = sbr.rel (%p857) target = $region132
      $region131: #{pitch_model_forward.1} parent=119 // pred_region
        %p860 = scmp.lt.s32.totalorder %s70, 1
        %s861 = scalar_select %p860, %s70, 1
        %s862 = smul.addr %s861, 8
        %s863 = scalar_lea.vmem %s5, %s862
      $region132: #{pitch_model_forward.1} parent=119 // pred_fallthru
        _
    $region120: #{pitch_model_forward.1} parent=5 // pred_fallthru
      _
    %p864 = scmp.le.s32.totalorder 1, %s70
    %p865 = scmp.lt.s32.totalorder %s70, 3
    %p866 = pnand %p864, %p865
    %p867 = pneg %p866
    // Predicated region
    $region133: #{pitch_model_forward.1} parent=5 // pred_check
      _
    $region134: #{pitch_model_forward.1} parent=5 // pred_check_branch
      %869 = sbr.rel (%p866) target = $region136
    $region135: #{pitch_model_forward.1} parent=5 // pred_region
      %s870 = ssub.s32 %s70, 1
      %p871 = scmp.lt.s32.totalorder %s75, 1
      %s872 = scalar_select %p871, %s75, 1
      %s873 = smul.addr %s872, 2
      %s874 = smul.addr %s873, 4
      %s875 = scalar_lea.vmem %s1, %s874
      %p876 = pneg %p96
      %p877 = pneg %p93
      %p878 = scmp.lt.s32.totalorder %s75, 1
      %s879 = scalar_select %p878, %s75, 1
      %s880 = scalar_lea.vmem %s3, %s879
      %p881 = pneg %p122
      %p882 = pneg %p119
      %p883 = scmp.lt.s32.totalorder %s75, 1
      %s884 = scalar_select %p883, %s75, 1
      %s885 = smul.addr %s884, 8
      %s886 = scalar_lea.vmem %s5, %s885
      %p887 = pneg %p148
      %p888 = pneg %p145
      %p889 = pneg %p169
      %p890 = pneg %p166
      %p891 = pneg %p190
      %p892 = pneg %p187
      %p893 = pneg %p211
      %p894 = pneg %p208
      %p895 = pneg %p232
      %p896 = pneg %p229
      %p897 = pneg %p253
      %p898 = pneg %p250
      %p899 = pneg %p274
      %p900 = pneg %p271
      %p901 = pneg %p295
      %p902 = pneg %p292
      %p903 = pneg %p316
      %p904 = pneg %p313
      %p905 = pneg %p337
      %p906 = pneg %p334
      %p907 = pneg %p358
      %p908 = pneg %p355
      %p909 = pneg %p379
      %p910 = pneg %p376
      %p911 = pneg %p400
      %p912 = pneg %p397
      %p913 = pneg %p421
      %p914 = pneg %p418
      %p915 = pneg %p442
      %p916 = pneg %p439
      %p917 = pneg %p463
      %p918 = pneg %p460
      %p919 = pneg %p484
      %p920 = pneg %p481
      %p921 = pneg %p505
      %p922 = pneg %p502
      %p923 = pneg %p526
      %p924 = pneg %p523
      %p925 = pneg %p547
      %p926 = pneg %p544
      %p927 = pneg %p568
      %p928 = pneg %p565
      %p929 = pneg %p589
      %p930 = pneg %p586
      %p931 = pneg %p610
      %p932 = pneg %p607
      %p933 = pneg %p631
      %p934 = pneg %p628
      %p935 = pneg %p652
      %p936 = pneg %p649
      %p937 = pneg %p673
      %p938 = pneg %p670
      %p939 = pneg %p694
      %p940 = pneg %p691
      %p941 = pneg %p720
      %p942 = pneg %p717
      %p943 = scmp.lt.s32.totalorder %s75, 1
      %s944 = scalar_select %p943, %s75, 1
      %s945 = smul.addr %s944, 8
      %s946 = scalar_lea.vmem %s59, %s945
      %p947 = pneg %p746
      %p948 = pneg %p743
      %p949 = scmp.lt.s32.totalorder %s75, 1
      %s950 = scalar_select %p949, %s75, 1
      %s951 = smul.addr %s950, 2
      %s952 = scalar_lea.vmem %s61, %s951
      %p953 = scmp.lt.s32.totalorder %s75, 1
      %s954 = scalar_select %p953, %s75, 1
      %s955 = smul.addr %s954, 2
      %s956 = smul.addr %s955, 4
      %s957 = scalar_lea.vmem %s1, %s956
      %p958 = scmp.lt.s32.totalorder %s75, 1
      %s959 = scalar_select %p958, %s75, 1
      %s960 = scalar_lea.vmem %s3, %s959
      %p961 = scmp.lt.s32.totalorder %s75, 1
      %s962 = scalar_select %p961, %s75, 1
      %s963 = smul.addr %s962, 8
      %s964 = scalar_lea.vmem %s5, %s963
      %p965 = scmp.lt.s32.totalorder %s75, 1
      %s966 = scalar_select %p965, %s75, 1
      %s967 = smul.addr %s966, 8
      %s968 = scalar_lea.vmem %s59, %s967
      %p969 = scmp.lt.s32.totalorder %s75, 1
      %s970 = scalar_select %p969, %s75, 1
      %s971 = smul.addr %s970, 2
      %s972 = scalar_lea.vmem %s61, %s971
      %v974 = vld [vmem:[%s957] sm:$0xf]
      %v975 = vld [vmem:[%s957 + $0x4] sm:$0xf]
      %v976 = vld [vmem:[%s13] sm:$0x3]
      %v978 = vlaneseq
      %v979 = vshrl.u32 %v978, 7
      %v980 = vsub.s32 0, %v979
      %v981 = vrot.slane %v976, %v980
      %v982 = vlaneseq
      %v983 = vshrl.u32 %v982, 7
      %v984 = vsub.s32 1, %v983
      %v985 = vrot.slane %v976, %v984
      %v988 = vadd.f32 %v981, 0.0
      %v989 = vadd.f32 %v985, 0.0
      %v990 = vld [vmem:[%s7] sm:$0xf]
      %v991 = vld [vmem:[%s7 + $0x4] sm:$0xf]
      %v994 = vunpack.c.l.b16 %v990
      %v995 = vunpack.c.l.b16 %v991
      %v996 = vpack.c.b16 %v995, %v994
      %v999 = vunpack.c.l.b16 %v974
      %v1000 = vunpack.c.l.b16 %v975
      %v1001 = vpack.c.b16 %v1000, %v999
      %vm1003 = vcmask 130048
      %v1005 = vsel %vm1003, %v996, 0
      %1007 = vmatprep.subr.bf16.mxu0 0
      %1008 = vmatpush1.bf16.msra.mxu0 %v1001
      %1009 = vmatprep.subr.bf16.mxu0 0
      %1010 = vmatpush1.bf16.msra.mxu0 0
      %1011 = vmatprep.subr.bf16.mxu0 0
      %1012 = vmatpush1.bf16.msra.mxu0 0
      %1013 = vmatprep.subr.bf16.mxu0 0
      %1014 = vmatpush1.bf16.msra.mxu0 0
      %1015 = vmatprep.subr.bf16.mxu0 0
      %1016 = vmatpush1.bf16.msra.mxu0 0
      %1017 = vmatprep.subr.bf16.mxu0 0
      %1018 = vmatpush1.bf16.msra.mxu0 0
      %1019 = vmatprep.subr.bf16.mxu0 0
      %1020 = vmatpush1.bf16.msra.mxu0 0
      %1021 = vmatprep.subr.bf16.mxu0 0
      %1022 = vmatpush1.bf16.msra.mxu0 0
      %1023 = vmatprep.subr.bf16.mxu0 0
      %1024 = vmatpush1.bf16.msra.mxu0 0
      %1025 = vmatprep.subr.bf16.mxu0 0
      %1026 = vmatpush1.bf16.msra.mxu0 0
      %1027 = vmatprep.subr.bf16.mxu0 0
      %1028 = vmatpush1.bf16.msra.mxu0 0
      %1029 = vmatprep.subr.bf16.mxu0 0
      %1030 = vmatpush1.bf16.msra.mxu0 0
      %1031 = vmatprep.subr.bf16.mxu0 0
      %1032 = vmatpush1.bf16.msra.mxu0 0
      %1033 = vmatprep.subr.bf16.mxu0 0
      %1034 = vmatpush1.bf16.msra.mxu0 0
      %1035 = vmatprep.subr.bf16.mxu0 0
      %1036 = vmatpush1.bf16.msra.mxu0 0
      %1037 = vmatprep.subr.bf16.mxu0 0
      %1038 = vmatpush1.bf16.msra.mxu0 0
      %1039 = vmatprep.mubr.bf16.mxu0 0
      %1040 = vmatmul.mubr.bf16.gmra.mrb[0].mxu0 %v1005
      %v1041 = vpop.f32.mrb[0].mxu0
      %v1042 = vadd.f32 0.0, %v1041
      %v1043 = vpop.f32.mrb[0].mxu0
      %v1044 = vpop.f32.mrb[0].mxu0
      %v1045 = vadd.f32 0.0, %v1044
      %v1046 = vpop.f32.mrb[0].mxu0
      %1047 = vdwg.mxu0
      %v1048 = vpack.c.bf16 %v1045, %v1042
      %v1049 = vld [vmem:[%s11] sm:$0xff]
      %v1050 = vld [vmem:[%s11 + $0x8] sm:$0xff]
      %v1051 = vld [vmem:[%s11 + $0x10] sm:$0xff]
      %v1052 = vld [vmem:[%s11 + $0x18] sm:$0xff]
      %v1057 = vunpack.c.l.b16 %v1049
      %v1058 = vunpack.c.h.b16 %v1049
      %v1059 = vunpack.c.l.b16 %v1050
      %v1060 = vunpack.c.h.b16 %v1050
      %v1061 = vunpack.c.l.b16 %v1051
      %v1062 = vunpack.c.h.b16 %v1051
      %v1063 = vunpack.c.l.b16 %v1052
      %v1064 = vunpack.c.h.b16 %v1052
      %v1065 = vpack.c.b16 %v1059, %v1057
      %v1066 = vpack.c.b16 %v1060, %v1058
      %v1067 = vpack.c.b16 %v1063, %v1061
      %v1068 = vpack.c.b16 %v1064, %v1062
      %vm1073 = vcmask 261120
      %v1075 = vsel %vm1073, %v1048, 0
      %1077 = vmatprep.subr.bf16.mxu0 %v1066
      %1078 = vmatpush1.bf16.msra.mxu0 %v1065
      %1079 = vmatprep.subr.bf16.mxu0 %v1068
      %1080 = vmatpush1.bf16.msra.mxu0 %v1067
      %1081 = vmatprep.subr.bf16.mxu0 0
      %1082 = vmatpush1.bf16.msra.mxu0 0
      %1083 = vmatprep.subr.bf16.mxu0 0
      %1084 = vmatpush1.bf16.msra.mxu0 0
      %1085 = vmatprep.subr.bf16.mxu0 0
      %1086 = vmatpush1.bf16.msra.mxu0 0
      %1087 = vmatprep.subr.bf16.mxu0 0
      %1088 = vmatpush1.bf16.msra.mxu0 0
      %1089 = vmatprep.subr.bf16.mxu0 0
      %1090 = vmatpush1.bf16.msra.mxu0 0
      %1091 = vmatprep.subr.bf16.mxu0 0
      %1092 = vmatpush1.bf16.msra.mxu0 0
      %1093 = vmatprep.subr.bf16.mxu0 0
      %1094 = vmatpush1.bf16.msra.mxu0 0
      %1095 = vmatprep.subr.bf16.mxu0 0
      %1096 = vmatpush1.bf16.msra.mxu0 0
      %1097 = vmatprep.subr.bf16.mxu0 0
      %1098 = vmatpush1.bf16.msra.mxu0 0
      %1099 = vmatprep.subr.bf16.mxu0 0
      %1100 = vmatpush1.bf16.msra.mxu0 0
      %1101 = vmatprep.subr.bf16.mxu0 0
      %1102 = vmatpush1.bf16.msra.mxu0 0
      %1103 = vmatprep.subr.bf16.mxu0 0
      %1104 = vmatpush1.bf16.msra.mxu0 0
      %1105 = vmatprep.subr.bf16.mxu0 0
      %1106 = vmatpush1.bf16.msra.mxu0 0
      %1107 = vmatprep.subr.bf16.mxu0 0
      %1108 = vmatpush1.bf16.msra.mxu0 0
      %1109 = vmatprep.mubr.bf16.mxu0 0
      %1110 = vmatmul.mubr.bf16.gmra.mrb[0].mxu0 %v1075
      %v1111 = vpop.f32.mrb[0].mxu0
      %v1112 = vadd.f32 0.0, %v1111
      %v1113 = vpop.f32.mrb[0].mxu0
      %v1114 = vadd.f32 0.0, %v1113
      %v1115 = vpop.f32.mrb[0].mxu0
      %v1116 = vadd.f32 0.0, %v1115
      %v1117 = vpop.f32.mrb[0].mxu0
      %v1118 = vadd.f32 0.0, %v1117
      %1119 = vdwg.mxu0
      %v1120 = vadd.f32 %v988, %v1112
      %v1121 = vadd.f32 %v989, %v1114
      %v1122 = vadd.f32 %v988, %v1116
      %v1123 = vadd.f32 %v989, %v1118
      %s1124 = scalar_lea.vmem %s7, 8
      %v1125 = vld [vmem:[%s1124] sm:$0xf]
      %v1126 = vld [vmem:[%s1124 + $0x4] sm:$0xf]
      %v1129 = vunpack.c.l.b16 %v1125
      %v1130 = vunpack.c.l.b16 %v1126
      %v1131 = vpack.c.b16 %v1130, %v1129
      %v1133 = vsel %vm1003, %v1131, 0
      %1135 = vmatprep.subr.bf16.mxu0 0
      %1136 = vmatpush1.bf16.msra.mxu0 %v1001
      %1137 = vmatprep.subr.bf16.mxu0 0
      %1138 = vmatpush1.bf16.msra.mxu0 0
      %1139 = vmatprep.subr.bf16.mxu0 0
      %1140 = vmatpush1.bf16.msra.mxu0 0
      %1141 = vmatprep.subr.bf16.mxu0 0
      %1142 = vmatpush1.bf16.msra.mxu0 0
      %1143 = vmatprep.subr.bf16.mxu0 0
      %1144 = vmatpush1.bf16.msra.mxu0 0
      %1145 = vmatprep.subr.bf16.mxu0 0
      %1146 = vmatpush1.bf16.msra.mxu0 0
      %1147 = vmatprep.subr.bf16.mxu0 0
      %1148 = vmatpush1.bf16.msra.mxu0 0
      %1149 = vmatprep.subr.bf16.mxu0 0
      %1150 = vmatpush1.bf16.msra.mxu0 0
      %1151 = vmatprep.subr.bf16.mxu0 0
      %1152 = vmatpush1.bf16.msra.mxu0 0
      %1153 = vmatprep.subr.bf16.mxu0 0
      %1154 = vmatpush1.bf16.msra.mxu0 0
      %1155 = vmatprep.subr.bf16.mxu0 0
      %1156 = vmatpush1.bf16.msra.mxu0 0
      %1157 = vmatprep.subr.bf16.mxu0 0
      %1158 = vmatpush1.bf16.msra.mxu0 0
      %1159 = vmatprep.subr.bf16.mxu0 0
      %1160 = vmatpush1.bf16.msra.mxu0 0
      %1161 = vmatprep.subr.bf16.mxu0 0
      %1162 = vmatpush1.bf16.msra.mxu0 0
      %1163 = vmatprep.subr.bf16.mxu0 0
      %1164 = vmatpush1.bf16.msra.mxu0 0
      %1165 = vmatprep.subr.bf16.mxu0 0
      %1166 = vmatpush1.bf16.msra.mxu0 0
      %1167 = vmatprep.mubr.bf16.mxu0 0
      %1168 = vmatmul.mubr.bf16.gmra.mrb[0].mxu0 %v1133
      %v1169 = vpop.f32.mrb[0].mxu0
      %v1170 = vadd.f32 0.0, %v1169
      %v1171 = vpop.f32.mrb[0].mxu0
      %v1172 = vpop.f32.mrb[0].mxu0
      %v1173 = vadd.f32 0.0, %v1172
      %v1174 = vpop.f32.mrb[0].mxu0
      %1175 = vdwg.mxu0
      %v1176 = vpack.c.bf16 %v1173, %v1170
      %s1177 = scalar_lea.vmem %s11, 32
      %v1178 = vld [vmem:[%s1177] sm:$0xff]
      %v1179 = vld [vmem:[%s1177 + $0x8] sm:$0xff]
      %v1180 = vld [vmem:[%s1177 + $0x10] sm:$0xff]
      %v1181 = vld [vmem:[%s1177 + $0x18] sm:$0xff]
      %v1186 = vunpack.c.l.b16 %v1178
      %v1187 = vunpack.c.h.b16 %v1178
      %v1188 = vunpack.c.l.b16 %v1179
      %v1189 = vunpack.c.h.b16 %v1179
      %v1190 = vunpack.c.l.b16 %v1180
      %v1191 = vunpack.c.h.b16 %v1180
      %v1192 = vunpack.c.l.b16 %v1181
      %v1193 = vunpack.c.h.b16 %v1181
      %v1194 = vpack.c.b16 %v1188, %v1186
      %v1195 = vpack.c.b16 %v1189, %v1187
      %v1196 = vpack.c.b16 %v1192, %v1190
      %v1197 = vpack.c.b16 %v1193, %v1191
      %v1203 = vsel %vm1073, %v1176, 0
      %1205 = vmatprep.subr.bf16.mxu0 %v1195
      %1206 = vmatpush1.bf16.msra.mxu0 %v1194
      %1207 = vmatprep.subr.bf16.mxu0 %v1197
      %1208 = vmatpush1.bf16.msra.mxu0 %v1196
      %1209 = vmatprep.subr.bf16.mxu0 0
      %1210 = vmatpush1.bf16.msra.mxu0 0
      %1211 = vmatprep.subr.bf16.mxu0 0
      %1212 = vmatpush1.bf16.msra.mxu0 0
      %1213 = vmatprep.subr.bf16.mxu0 0
      %1214 = vmatpush1.bf16.msra.mxu0 0
      %1215 = vmatprep.subr.bf16.mxu0 0
      %1216 = vmatpush1.bf16.msra.mxu0 0
      %1217 = vmatprep.subr.bf16.mxu0 0
      %1218 = vmatpush1.bf16.msra.mxu0 0
      %1219 = vmatprep.subr.bf16.mxu0 0
      %1220 = vmatpush1.bf16.msra.mxu0 0
      %1221 = vmatprep.subr.bf16.mxu0 0
      %1222 = vmatpush1.bf16.msra.mxu0 0
      %1223 = vmatprep.subr.bf16.mxu0 0
      %1224 = vmatpush1.bf16.msra.mxu0 0
      %1225 = vmatprep.subr.bf16.mxu0 0
      %1226 = vmatpush1.bf16.msra.mxu0 0
      %1227 = vmatprep.subr.bf16.mxu0 0
      %1228 = vmatpush1.bf16.msra.mxu0 0
      %1229 = vmatprep.subr.bf16.mxu0 0
      %1230 = vmatpush1.bf16.msra.mxu0 0
      %1231 = vmatprep.subr.bf16.mxu0 0
      %1232 = vmatpush1.bf16.msra.mxu0 0
      %1233 = vmatprep.subr.bf16.mxu0 0
      %1234 = vmatpush1.bf16.msra.mxu0 0
      %1235 = vmatprep.subr.bf16.mxu0 0
      %1236 = vmatpush1.bf16.msra.mxu0 0
      %1237 = vmatprep.mubr.bf16.mxu0 0
      %1238 = vmatmul.mubr.bf16.gmra.mrb[0].mxu0 %v1203
      %v1239 = vpop.f32.mrb[0].mxu0
      %v1240 = vadd.f32 0.0, %v1239
      %v1241 = vpop.f32.mrb[0].mxu0
      %v1242 = vadd.f32 0.0, %v1241
      %v1243 = vpop.f32.mrb[0].mxu0
      %v1244 = vadd.f32 0.0, %v1243
      %v1245 = vpop.f32.mrb[0].mxu0
      %v1246 = vadd.f32 0.0, %v1245
      %1247 = vdwg.mxu0
      %v1248 = vadd.f32 %v1120, %v1240
      %v1249 = vadd.f32 %v1121, %v1242
      %v1250 = vadd.f32 %v1122, %v1244
      %v1251 = vadd.f32 %v1123, %v1246
      %s1252 = scalar_lea.vmem %s11, 64
      %v1253 = vld [vmem:[%s1252] sm:$0xff]
      %v1254 = vld [vmem:[%s1252 + $0x8] sm:$0xff]
      %v1255 = vld [vmem:[%s1252 + $0x10] sm:$0xff]
      %v1256 = vld [vmem:[%s1252 + $0x18] sm:$0xff]
      %v1261 = vunpack.c.l.b16 %v1253
      %v1262 = vunpack.c.h.b16 %v1253
      %v1263 = vunpack.c.l.b16 %v1254
      %v1264 = vunpack.c.h.b16 %v1254
      %v1265 = vunpack.c.l.b16 %v1255
      %v1266 = vunpack.c.h.b16 %v1255
      %v1267 = vunpack.c.l.b16 %v1256
      %v1268 = vunpack.c.h.b16 %v1256
      %v1269 = vpack.c.b16 %v1263, %v1261
      %v1270 = vpack.c.b16 %v1264, %v1262
      %v1271 = vpack.c.b16 %v1267, %v1265
      %v1272 = vpack.c.b16 %v1268, %v1266
      %v1278 = vsel %vm1073, %v1001, 0
      %1280 = vmatprep.subr.bf16.mxu0 %v1270
      %1281 = vmatpush1.bf16.msra.mxu0 %v1269
      %1282 = vmatprep.subr.bf16.mxu0 %v1272
      %1283 = vmatpush1.bf16.msra.mxu0 %v1271
      %1284 = vmatprep.subr.bf16.mxu0 0
      %1285 = vmatpush1.bf16.msra.mxu0 0
      %1286 = vmatprep.subr.bf16.mxu0 0
      %1287 = vmatpush1.bf16.msra.mxu0 0
      %1288 = vmatprep.subr.bf16.mxu0 0
      %1289 = vmatpush1.bf16.msra.mxu0 0
      %1290 = vmatprep.subr.bf16.mxu0 0
      %1291 = vmatpush1.bf16.msra.mxu0 0
      %1292 = vmatprep.subr.bf16.mxu0 0
      %1293 = vmatpush1.bf16.msra.mxu0 0
      %1294 = vmatprep.subr.bf16.mxu0 0
      %1295 = vmatpush1.bf16.msra.mxu0 0
      %1296 = vmatprep.subr.bf16.mxu0 0
      %1297 = vmatpush1.bf16.msra.mxu0 0
      %1298 = vmatprep.subr.bf16.mxu0 0
      %1299 = vmatpush1.bf16.msra.mxu0 0
      %1300 = vmatprep.subr.bf16.mxu0 0
      %1301 = vmatpush1.bf16.msra.mxu0 0
      %1302 = vmatprep.subr.bf16.mxu0 0
      %1303 = vmatpush1.bf16.msra.mxu0 0
      %1304 = vmatprep.subr.bf16.mxu0 0
      %1305 = vmatpush1.bf16.msra.mxu0 0
      %1306 = vmatprep.subr.bf16.mxu0 0
      %1307 = vmatpush1.bf16.msra.mxu0 0
      %1308 = vmatprep.subr.bf16.mxu0 0
      %1309 = vmatpush1.bf16.msra.mxu0 0
      %1310 = vmatprep.subr.bf16.mxu0 0
      %1311 = vmatpush1.bf16.msra.mxu0 0
      %1312 = vmatprep.mubr.bf16.mxu0 0
      %1313 = vmatmul.mubr.bf16.gmra.mrb[0].mxu0 %v1278
      %v1314 = vpop.f32.mrb[0].mxu0
      %v1315 = vadd.f32 0.0, %v1314
      %v1316 = vpop.f32.mrb[0].mxu0
      %v1317 = vadd.f32 0.0, %v1316
      %v1318 = vpop.f32.mrb[0].mxu0
      %v1319 = vadd.f32 0.0, %v1318
      %v1320 = vpop.f32.mrb[0].mxu0
      %v1321 = vadd.f32 0.0, %v1320
      %1322 = vdwg.mxu0
      %v1323 = vadd.f32 %v1248, %v1315
      %v1324 = vadd.f32 %v1249, %v1317
      %v1325 = vadd.f32 %v1250, %v1319
      %v1326 = vadd.f32 %v1251, %v1321
      %s1327 = scalar_lea.vmem %s7, 16
      %v1328 = vld [vmem:[%s1327] sm:$0xf]
      %v1329 = vld [vmem:[%s1327 + $0x4] sm:$0xf]
      %v1332 = vunpack.c.l.b16 %v1328
      %v1333 = vunpack.c.l.b16 %v1329
      %v1334 = vpack.c.b16 %v1333, %v1332
      %v1336 = vsel %vm1003, %v1334, 0
      %1338 = vmatprep.subr.bf16.mxu0 0
      %1339 = vmatpush1.bf16.msra.mxu0 %v1001
      %1340 = vmatprep.subr.bf16.mxu0 0
      %1341 = vmatpush1.bf16.msra.mxu0 0
      %1342 = vmatprep.subr.bf16.mxu0 0
      %1343 = vmatpush1.bf16.msra.mxu0 0
      %1344 = vmatprep.subr.bf16.mxu0 0
      %1345 = vmatpush1.bf16.msra.mxu0 0
      %1346 = vmatprep.subr.bf16.mxu0 0
      %1347 = vmatpush1.bf16.msra.mxu0 0
      %1348 = vmatprep.subr.bf16.mxu0 0
      %1349 = vmatpush1.bf16.msra.mxu0 0
      %1350 = vmatprep.subr.bf16.mxu0 0
      %1351 = vmatpush1.bf16.msra.mxu0 0
      %1352 = vmatprep.subr.bf16.mxu0 0
      %1353 = vmatpush1.bf16.msra.mxu0 0
      %1354 = vmatprep.subr.bf16.mxu0 0
      %1355 = vmatpush1.bf16.msra.mxu0 0
      %1356 = vmatprep.subr.bf16.mxu0 0
      %1357 = vmatpush1.bf16.msra.mxu0 0
      %1358 = vmatprep.subr.bf16.mxu0 0
      %1359 = vmatpush1.bf16.msra.mxu0 0
      %1360 = vmatprep.subr.bf16.mxu0 0
      %1361 = vmatpush1.bf16.msra.mxu0 0
      %1362 = vmatprep.subr.bf16.mxu0 0
      %1363 = vmatpush1.bf16.msra.mxu0 0
      %1364 = vmatprep.subr.bf16.mxu0 0
      %1365 = vmatpush1.bf16.msra.mxu0 0
      %1366 = vmatprep.subr.bf16.mxu0 0
      %1367 = vmatpush1.bf16.msra.mxu0 0
      %1368 = vmatprep.subr.bf16.mxu0 0
      %1369 = vmatpush1.bf16.msra.mxu0 0
      %1370 = vmatprep.mubr.bf16.mxu0 0
      %1371 = vmatmul.mubr.bf16.gmra.mrb[0].mxu0 %v1336
      %v1372 = vpop.f32.mrb[0].mxu0
      %v1373 = vadd.f32 0.0, %v1372
      %v1374 = vpop.f32.mrb[0].mxu0
      %v1375 = vpop.f32.mrb[0].mxu0
      %v1376 = vadd.f32 0.0, %v1375
      %v1377 = vpop.f32.mrb[0].mxu0
      %1378 = vdwg.mxu0
      %v1379 = vpack.c.bf16 %v1376, %v1373
      %s1380 = scalar_lea.vmem %s11, 96
      %v1381 = vld [vmem:[%s1380] sm:$0xff]
      %v1382 = vld [vmem:[%s1380 + $0x8] sm:$0xff]
      %v1383 = vld [vmem:[%s1380 + $0x10] sm:$0xff]
      %v1384 = vld [vmem:[%s1380 + $0x18] sm:$0xff]
      %v1389 = vunpack.c.l.b16 %v1381
      %v1390 = vunpack.c.h.b16 %v1381
      %v1391 = vunpack.c.l.b16 %v1382
      %v1392 = vunpack.c.h.b16 %v1382
      %v1393 = vunpack.c.l.b16 %v1383
      %v1394 = vunpack.c.h.b16 %v1383
      %v1395 = vunpack.c.l.b16 %v1384
      %v1396 = vunpack.c.h.b16 %v1384
      %v1397 = vpack.c.b16 %v1391, %v1389
      %v1398 = vpack.c.b16 %v1392, %v1390
      %v1399 = vpack.c.b16 %v1395, %v1393
      %v1400 = vpack.c.b16 %v1396, %v1394
      %v1406 = vsel %vm1073, %v1379, 0
      %1408 = vmatprep.subr.bf16.mxu0 %v1398
      %1409 = vmatpush1.bf16.msra.mxu0 %v1397
      %1410 = vmatprep.subr.bf16.mxu0 %v1400
      %1411 = vmatpush1.bf16.msra.mxu0 %v1399
      %1412 = vmatprep.subr.bf16.mxu0 0
      %1413 = vmatpush1.bf16.msra.mxu0 0
      %1414 = vmatprep.subr.bf16.mxu0 0
      %1415 = vmatpush1.bf16.msra.mxu0 0
      %1416 = vmatprep.subr.bf16.mxu0 0
      %1417 = vmatpush1.bf16.msra.mxu0 0
      %1418 = vmatprep.subr.bf16.mxu0 0
      %1419 = vmatpush1.bf16.msra.mxu0 0
      %1420 = vmatprep.subr.bf16.mxu0 0
      %1421 = vmatpush1.bf16.msra.mxu0 0
      %1422 = vmatprep.subr.bf16.mxu0 0
      %1423 = vmatpush1.bf16.msra.mxu0 0
      %1424 = vmatprep.subr.bf16.mxu0 0
      %1425 = vmatpush1.bf16.msra.mxu0 0
      %1426 = vmatprep.subr.bf16.mxu0 0
      %1427 = vmatpush1.bf16.msra.mxu0 0
      %1428 = vmatprep.subr.bf16.mxu0 0
      %1429 = vmatpush1.bf16.msra.mxu0 0
      %1430 = vmatprep.subr.bf16.mxu0 0
      %1431 = vmatpush1.bf16.msra.mxu0 0
      %1432 = vmatprep.subr.bf16.mxu0 0
      %1433 = vmatpush1.bf16.msra.mxu0 0
      %1434 = vmatprep.subr.bf16.mxu0 0
      %1435 = vmatpush1.bf16.msra.mxu0 0
      %1436 = vmatprep.subr.bf16.mxu0 0
      %1437 = vmatpush1.bf16.msra.mxu0 0
      %1438 = vmatprep.subr.bf16.mxu0 0
      %1439 = vmatpush1.bf16.msra.mxu0 0
      %1440 = vmatprep.mubr.bf16.mxu0 0
      %1441 = vmatmul.mubr.bf16.gmra.mrb[0].mxu0 %v1406
      %v1442 = vpop.f32.mrb[0].mxu0
      %v1443 = vadd.f32 0.0, %v1442
      %v1444 = vpop.f32.mrb[0].mxu0
      %v1445 = vadd.f32 0.0, %v1444
      %v1446 = vpop.f32.mrb[0].mxu0
      %v1447 = vadd.f32 0.0, %v1446
      %v1448 = vpop.f32.mrb[0].mxu0
      %v1449 = vadd.f32 0.0, %v1448
      %1450 = vdwg.mxu0
      %v1451 = vadd.f32 %v1323, %v1443
      %v1452 = vadd.f32 %v1324, %v1445
      %v1453 = vadd.f32 %v1325, %v1447
      %v1454 = vadd.f32 %v1326, %v1449
      %s1455 = scalar_lea.vmem %s7, 24
      %v1456 = vld [vmem:[%s1455] sm:$0xf]
      %v1457 = vld [vmem:[%s1455 + $0x4] sm:$0xf]
      %v1460 = vunpack.c.l.b16 %v1456
      %v1461 = vunpack.c.l.b16 %v1457
      %v1462 = vpack.c.b16 %v1461, %v1460
      %v1464 = vsel %vm1003, %v1462, 0
      %1466 = vmatprep.subr.bf16.mxu0 0
      %1467 = vmatpush1.bf16.msra.mxu0 %v1001
      %1468 = vmatprep.subr.bf16.mxu0 0
      %1469 = vmatpush1.bf16.msra.mxu0 0
      %1470 = vmatprep.subr.bf16.mxu0 0
      %1471 = vmatpush1.bf16.msra.mxu0 0
      %1472 = vmatprep.subr.bf16.mxu0 0
      %1473 = vmatpush1.bf16.msra.mxu0 0
      %1474 = vmatprep.subr.bf16.mxu0 0
      %1475 = vmatpush1.bf16.msra.mxu0 0
      %1476 = vmatprep.subr.bf16.mxu0 0
      %1477 = vmatpush1.bf16.msra.mxu0 0
      %1478 = vmatprep.subr.bf16.mxu0 0
      %1479 = vmatpush1.bf16.msra.mxu0 0
      %1480 = vmatprep.subr.bf16.mxu0 0
      %1481 = vmatpush1.bf16.msra.mxu0 0
      %1482 = vmatprep.subr.bf16.mxu0 0
      %1483 = vmatpush1.bf16.msra.mxu0 0
      %1484 = vmatprep.subr.bf16.mxu0 0
      %1485 = vmatpush1.bf16.msra.mxu0 0
      %1486 = vmatprep.subr.bf16.mxu0 0
      %1487 = vmatpush1.bf16.msra.mxu0 0
      %1488 = vmatprep.subr.bf16.mxu0 0
      %1489 = vmatpush1.bf16.msra.mxu0 0
      %1490 = vmatprep.subr.bf16.mxu0 0
      %1491 = vmatpush1.bf16.msra.mxu0 0
      %1492 = vmatprep.subr.bf16.mxu0 0
      %1493 = vmatpush1.bf16.msra.mxu0 0
      %1494 = vmatprep.subr.bf16.mxu0 0
      %1495 = vmatpush1.bf16.msra.mxu0 0
      %1496 = vmatprep.subr.bf16.mxu0 0
      %1497 = vmatpush1.bf16.msra.mxu0 0
      %1498 = vmatprep.mubr.bf16.mxu0 0
      %1499 = vmatmul.mubr.bf16.gmra.mrb[0].mxu0 %v1464
      %v1500 = vpop.f32.mrb[0].mxu0
      %v1501 = vadd.f32 0.0, %v1500
      %v1502 = vpop.f32.mrb[0].mxu0
      %v1503 = vpop.f32.mrb[0].mxu0
      %v1504 = vadd.f32 0.0, %v1503
      %v1505 = vpop.f32.mrb[0].mxu0
      %1506 = vdwg.mxu0
      %v1507 = vpack.c.bf16 %v1504, %v1501
      %s1508 = scalar_lea.vmem %s11, 128
      %v1509 = vld [vmem:[%s1508] sm:$0xff]
      %v1510 = vld [vmem:[%s1508 + $0x8] sm:$0xff]
      %v1511 = vld [vmem:[%s1508 + $0x10] sm:$0xff]
      %v1512 = vld [vmem:[%s1508 + $0x18] sm:$0xff]
      %v1517 = vunpack.c.l.b16 %v1509
      %v1518 = vunpack.c.h.b16 %v1509
      %v1519 = vunpack.c.l.b16 %v1510
      %v1520 = vunpack.c.h.b16 %v1510
      %v1521 = vunpack.c.l.b16 %v1511
      %v1522 = vunpack.c.h.b16 %v1511
      %v1523 = vunpack.c.l.b16 %v1512
      %v1524 = vunpack.c.h.b16 %v1512
      %v1525 = vpack.c.b16 %v1519, %v1517
      %v1526 = vpack.c.b16 %v1520, %v1518
      %v1527 = vpack.c.b16 %v1523, %v1521
      %v1528 = vpack.c.b16 %v1524, %v1522
      %v1534 = vsel %vm1073, %v1507, 0
      %1536 = vmatprep.subr.bf16.mxu0 %v1526
      %1537 = vmatpush1.bf16.msra.mxu0 %v1525
      %1538 = vmatprep.subr.bf16.mxu0 %v1528
      %1539 = vmatpush1.bf16.msra.mxu0 %v1527
      %1540 = vmatprep.subr.bf16.mxu0 0
      %1541 = vmatpush1.bf16.msra.mxu0 0
      %1542 = vmatprep.subr.bf16.mxu0 0
      %1543 = vmatpush1.bf16.msra.mxu0 0
      %1544 = vmatprep.subr.bf16.mxu0 0
      %1545 = vmatpush1.bf16.msra.mxu0 0
      %1546 = vmatprep.subr.bf16.mxu0 0
      %1547 = vmatpush1.bf16.msra.mxu0 0
      %1548 = vmatprep.subr.bf16.mxu0 0
      %1549 = vmatpush1.bf16.msra.mxu0 0
      %1550 = vmatprep.subr.bf16.mxu0 0
      %1551 = vmatpush1.bf16.msra.mxu0 0
      %1552 = vmatprep.subr.bf16.mxu0 0
      %1553 = vmatpush1.bf16.msra.mxu0 0
      %1554 = vmatprep.subr.bf16.mxu0 0
      %1555 = vmatpush1.bf16.msra.mxu0 0
      %1556 = vmatprep.subr.bf16.mxu0 0
      %1557 = vmatpush1.bf16.msra.mxu0 0
      %1558 = vmatprep.subr.bf16.mxu0 0
      %1559 = vmatpush1.bf16.msra.mxu0 0
      %1560 = vmatprep.subr.bf16.mxu0 0
      %1561 = vmatpush1.bf16.msra.mxu0 0
      %1562 = vmatprep.subr.bf16.mxu0 0
      %1563 = vmatpush1.bf16.msra.mxu0 0
      %1564 = vmatprep.subr.bf16.mxu0 0
      %1565 = vmatpush1.bf16.msra.mxu0 0
      %1566 = vmatprep.subr.bf16.mxu0 0
      %1567 = vmatpush1.bf16.msra.mxu0 0
      %1568 = vmatprep.mubr.bf16.mxu0 0
      %1569 = vmatmul.mubr.bf16.gmra.mrb[0].mxu0 %v1534
      %v1570 = vpop.f32.mrb[0].mxu0
      %v1571 = vadd.f32 0.0, %v1570
      %v1572 = vpop.f32.mrb[0].mxu0
      %v1573 = vadd.f32 0.0, %v1572
      %v1574 = vpop.f32.mrb[0].mxu0
      %v1575 = vadd.f32 0.0, %v1574
      %v1576 = vpop.f32.mrb[0].mxu0
      %v1577 = vadd.f32 0.0, %v1576
      %1578 = vdwg.mxu0
      %v1579 = vadd.f32 %v1451, %v1571
      %v1580 = vadd.f32 %v1452, %v1573
      %v1581 = vadd.f32 %v1453, %v1575
      %v1582 = vadd.f32 %v1454, %v1577
      %v1583 = vmax.f32 %v1579, 0.0
      %v1584 = vmax.f32 %v1580, 0.0
      %v1585 = vmax.f32 %v1581, 0.0
      %v1586 = vmax.f32 %v1582, 0.0
      %v1587 = vpack.c.bf16 %v1585, %v1583
      %v1588 = vpack.c.bf16 %v1586, %v1584
      %v1589 = vld [vmem:[%s17] sm:$0x3]
      %v1591 = vlaneseq
      %v1592 = vshrl.u32 %v1591, 7
      %v1593 = vsub.s32 0, %v1592
      %v1594 = vrot.slane %v1589, %v1593
      %v1595 = vlaneseq
      %v1596 = vshrl.u32 %v1595, 7
      %v1597 = vsub.s32 1, %v1596
      %v1598 = vrot.slane %v1589, %v1597
      %v1601 = vadd.f32 %v1594, 0.0
      %v1602 = vadd.f32 %v1598, 0.0
      %1603 = vmatprep.subr.bf16.mxu0 %v1588
      %1604 = vmatpush1.bf16.msra.mxu0 %v1587
      %1605 = vmatprep.subr.bf16.mxu0 0
      %1606 = vmatpush1.bf16.msra.mxu0 0
      %1607 = vmatprep.subr.bf16.mxu0 0
      %1608 = vmatpush1.bf16.msra.mxu0 0
      %1609 = vmatprep.subr.bf16.mxu0 0
      %1610 = vmatpush1.bf16.msra.mxu0 0
      %1611 = vmatprep.subr.bf16.mxu0 0
      %1612 = vmatpush1.bf16.msra.mxu0 0
      %1613 = vmatprep.subr.bf16.mxu0 0
      %1614 = vmatpush1.bf16.msra.mxu0 0
      %1615 = vmatprep.subr.bf16.mxu0 0
      %1616 = vmatpush1.bf16.msra.mxu0 0
      %1617 = vmatprep.subr.bf16.mxu0 0
      %1618 = vmatpush1.bf16.msra.mxu0 0
      %1619 = vmatprep.subr.bf16.mxu0 0
      %1620 = vmatpush1.bf16.msra.mxu0 0
      %1621 = vmatprep.subr.bf16.mxu0 0
      %1622 = vmatpush1.bf16.msra.mxu0 0
      %1623 = vmatprep.subr.bf16.mxu0 0
      %1624 = vmatpush1.bf16.msra.mxu0 0
      %1625 = vmatprep.subr.bf16.mxu0 0
      %1626 = vmatpush1.bf16.msra.mxu0 0
      %1627 = vmatprep.subr.bf16.mxu0 0
      %1628 = vmatpush1.bf16.msra.mxu0 0
      %1629 = vmatprep.subr.bf16.mxu0 0
      %1630 = vmatpush1.bf16.msra.mxu0 0
      %1631 = vmatprep.subr.bf16.mxu0 0
      %1632 = vmatpush1.bf16.msra.mxu0 0
      %1633 = vmatprep.subr.bf16.mxu0 0
      %1634 = vmatpush1.bf16.msra.mxu0 0
      %1635 = vmatprep.mubr.bf16.mxu0 0
      %1636 = vmatmul.mubr.bf16.gmra.mrb[0].mxu0 %v1005
      %v1637 = vpop.f32.mrb[0].mxu0
      %v1638 = vadd.f32 0.0, %v1637
      %v1639 = vpop.f32.mrb[0].mxu0
      %v1640 = vadd.f32 0.0, %v1639
      %v1641 = vpop.f32.mrb[0].mxu0
      %v1642 = vadd.f32 0.0, %v1641
      %v1643 = vpop.f32.mrb[0].mxu0
      %v1644 = vadd.f32 0.0, %v1643
      %1645 = vdwg.mxu0
      %v1646 = vpack.c.bf16 %v1642, %v1638
      %v1647 = vpack.c.bf16 %v1644, %v1640
      %v1648 = vld [vmem:[%s15] sm:$0xff]
      %v1649 = vld [vmem:[%s15 + $0x8] sm:$0xff]
      %v1650 = vld [vmem:[%s15 + $0x10] sm:$0xff]
      %v1651 = vld [vmem:[%s15 + $0x18] sm:$0xff]
      %v1652 = vld [vmem:[%s15 + $0x20] sm:$0xff]
      %v1653 = vld [vmem:[%s15 + $0x28] sm:$0xff]
      %v1654 = vld [vmem:[%s15 + $0x30] sm:$0xff]
      %v1655 = vld [vmem:[%s15 + $0x38] sm:$0xff]
      %v1656 = vld [vmem:[%s15 + $0x40] sm:$0xff]
      %v1657 = vld [vmem:[%s15 + $0x48] sm:$0xff]
      %v1658 = vld [vmem:[%s15 + $0x50] sm:$0xff]
      %v1659 = vld [vmem:[%s15 + $0x58] sm:$0xff]
      %v1660 = vld [vmem:[%s15 + $0x60] sm:$0xff]
      %v1661 = vld [vmem:[%s15 + $0x68] sm:$0xff]
      %v1662 = vld [vmem:[%s15 + $0x70] sm:$0xff]
      %v1663 = vld [vmem:[%s15 + $0x78] sm:$0xff]
      %v1664 = vld [vmem:[%s15 + $0x80] sm:$0xff]
      %v1665 = vld [vmem:[%s15 + $0x88] sm:$0xff]
      %v1666 = vld [vmem:[%s15 + $0x90] sm:$0xff]
      %v1667 = vld [vmem:[%s15 + $0x98] sm:$0xff]
      %v1668 = vld [vmem:[%s15 + $0xa0] sm:$0xff]
      %v1669 = vld [vmem:[%s15 + $0xa8] sm:$0xff]
      %v1670 = vld [vmem:[%s15 + $0xb0] sm:$0xff]
      %v1671 = vld [vmem:[%s15 + $0xb8] sm:$0xff]
      %v1672 = vld [vmem:[%s15 + $0xc0] sm:$0xff]
      %v1673 = vld [vmem:[%s15 + $0xc8] sm:$0xff]
      %v1674 = vld [vmem:[%s15 + $0xd0] sm:$0xff]
      %v1675 = vld [vmem:[%s15 + $0xd8] sm:$0xff]
      %v1676 = vld [vmem:[%s15 + $0xe0] sm:$0xff]
      %v1677 = vld [vmem:[%s15 + $0xe8] sm:$0xff]
      %v1678 = vld [vmem:[%s15 + $0xf0] sm:$0xff]
      %v1679 = vld [vmem:[%s15 + $0xf8] sm:$0xff]
      %v1712 = vunpack.c.l.b16 %v1648
      %v1713 = vunpack.c.h.b16 %v1648
      %v1714 = vunpack.c.l.b16 %v1649
      %v1715 = vunpack.c.h.b16 %v1649
      %v1716 = vunpack.c.l.b16 %v1650
      %v1717 = vunpack.c.h.b16 %v1650
      %v1718 = vunpack.c.l.b16 %v1651
      %v1719 = vunpack.c.h.b16 %v1651
      %v1720 = vunpack.c.l.b16 %v1652
      %v1721 = vunpack.c.h.b16 %v1652
      %v1722 = vunpack.c.l.b16 %v1653
      %v1723 = vunpack.c.h.b16 %v1653
      %v1724 = vunpack.c.l.b16 %v1654
      %v1725 = vunpack.c.h.b16 %v1654
      %v1726 = vunpack.c.l.b16 %v1655
      %v1727 = vunpack.c.h.b16 %v1655
      %v1728 = vunpack.c.l.b16 %v1656
      %v1729 = vunpack.c.h.b16 %v1656
      %v1730 = vunpack.c.l.b16 %v1657
      %v1731 = vunpack.c.h.b16 %v1657
      %v1732 = vunpack.c.l.b16 %v1658
      %v1733 = vunpack.c.h.b16 %v1658
      %v1734 = vunpack.c.l.b16 %v1659
      %v1735 = vunpack.c.h.b16 %v1659
      %v1736 = vunpack.c.l.b16 %v1660
      %v1737 = vunpack.c.h.b16 %v1660
      %v1738 = vunpack.c.l.b16 %v1661
      %v1739 = vunpack.c.h.b16 %v1661
      %v1740 = vunpack.c.l.b16 %v1662
      %v1741 = vunpack.c.h.b16 %v1662
      %v1742 = vunpack.c.l.b16 %v1663
      %v1743 = vunpack.c.h.b16 %v1663
      %v1744 = vunpack.c.l.b16 %v1664
      %v1745 = vunpack.c.h.b16 %v1664
      %v1746 = vunpack.c.l.b16 %v1665
      %v1747 = vunpack.c.h.b16 %v1665
      %v1748 = vunpack.c.l.b16 %v1666
      %v1749 = vunpack.c.h.b16 %v1666
      %v1750 = vunpack.c.l.b16 %v1667
      %v1751 = vunpack.c.h.b16 %v1667
      %v1752 = vunpack.c.l.b16 %v1668
      %v1753 = vunpack.c.h.b16 %v1668
      %v1754 = vunpack.c.l.b16 %v1669
      %v1755 = vunpack.c.h.b16 %v1669
      %v1756 = vunpack.c.l.b16 %v1670
      %v1757 = vunpack.c.h.b16 %v1670
      %v1758 = vunpack.c.l.b16 %v1671
      %v1759 = vunpack.c.h.b16 %v1671
      %v1760 = vunpack.c.l.b16 %v1672
      %v1761 = vunpack.c.h.b16 %v1672
      %v1762 = vunpack.c.l.b16 %v1673
      %v1763 = vunpack.c.h.b16 %v1673
      %v1764 = vunpack.c.l.b16 %v1674
      %v1765 = vunpack.c.h.b16 %v1674
      %v1766 = vunpack.c.l.b16 %v1675
      %v1767 = vunpack.c.h.b16 %v1675
      %v1768 = vunpack.c.l.b16 %v1676
      %v1769 = vunpack.c.h.b16 %v1676
      %v1770 = vunpack.c.l.b16 %v1677
      %v1771 = vunpack.c.h.b16 %v1677
      %v1772 = vunpack.c.l.b16 %v1678
      %v1773 = vunpack.c.h.b16 %v1678
      %v1774 = vunpack.c.l.b16 %v1679
      %v1775 = vunpack.c.h.b16 %v1679
      %v1776 = vpack.c.b16 %v1714, %v1712
      %v1777 = vpack.c.b16 %v1715, %v1713
      %v1778 = vpack.c.b16 %v1718, %v1716
      %v1779 = vpack.c.b16 %v1719, %v1717
      %v1780 = vpack.c.b16 %v1722, %v1720
      %v1781 = vpack.c.b16 %v1723, %v1721
      %v1782 = vpack.c.b16 %v1726, %v1724
      %v1783 = vpack.c.b16 %v1727, %v1725
      %v1784 = vpack.c.b16 %v1730, %v1728
      %v1785 = vpack.c.b16 %v1731, %v1729
      %v1786 = vpack.c.b16 %v1734, %v1732
      %v1787 = vpack.c.b16 %v1735, %v1733
      %v1788 = vpack.c.b16 %v1738, %v1736
      %v1789 = vpack.c.b16 %v1739, %v1737
      %v1790 = vpack.c.b16 %v1742, %v1740
      %v1791 = vpack.c.b16 %v1743, %v1741
      %v1792 = vpack.c.b16 %v1746, %v1744
      %v1793 = vpack.c.b16 %v1747, %v1745
      %v1794 = vpack.c.b16 %v1750, %v1748
      %v1795 = vpack.c.b16 %v1751, %v1749
      %v1796 = vpack.c.b16 %v1754, %v1752
      %v1797 = vpack.c.b16 %v1755, %v1753
      %v1798 = vpack.c.b16 %v1758, %v1756
      %v1799 = vpack.c.b16 %v1759, %v1757
      %v1800 = vpack.c.b16 %v1762, %v1760
      %v1801 = vpack.c.b16 %v1763, %v1761
      %v1802 = vpack.c.b16 %v1766, %v1764
      %v1803 = vpack.c.b16 %v1767, %v1765
      %v1804 = vpack.c.b16 %v1770, %v1768
      %v1805 = vpack.c.b16 %v1771, %v1769
      %v1806 = vpack.c.b16 %v1774, %v1772
      %v1807 = vpack.c.b16 %v1775, %v1773
      %1840 = vmatprep.subr.bf16.mxu0 %v1777
      %1841 = vmatpush1.bf16.msra.mxu0 %v1776
      %1842 = vmatprep.subr.bf16.mxu0 %v1779
      %1843 = vmatpush1.bf16.msra.mxu0 %v1778
      %1844 = vmatprep.subr.bf16.mxu0 %v1781
      %1845 = vmatpush1.bf16.msra.mxu0 %v1780
      %1846 = vmatprep.subr.bf16.mxu0 %v1783
      %1847 = vmatpush1.bf16.msra.mxu0 %v1782
      %1848 = vmatprep.subr.bf16.mxu0 %v1785
      %1849 = vmatpush1.bf16.msra.mxu0 %v1784
      %1850 = vmatprep.subr.bf16.mxu0 %v1787
      %1851 = vmatpush1.bf16.msra.mxu0 %v1786
      %1852 = vmatprep.subr.bf16.mxu0 %v1789
      %1853 = vmatpush1.bf16.msra.mxu0 %v1788
      %1854 = vmatprep.subr.bf16.mxu0 %v1791
      %1855 = vmatpush1.bf16.msra.mxu0 %v1790
      %1856 = vmatprep.subr.bf16.mxu0 %v1793
      %1857 = vmatpush1.bf16.msra.mxu0 %v1792
      %1858 = vmatprep.subr.bf16.mxu0 %v1795
      %1859 = vmatpush1.bf16.msra.mxu0 %v1794
      %1860 = vmatprep.subr.bf16.mxu0 %v1797
      %1861 = vmatpush1.bf16.msra.mxu0 %v1796
      %1862 = vmatprep.subr.bf16.mxu0 %v1799
      %1863 = vmatpush1.bf16.msra.mxu0 %v1798
      %1864 = vmatprep.subr.bf16.mxu0 %v1801
      %1865 = vmatpush1.bf16.msra.mxu0 %v1800
      %1866 = vmatprep.subr.bf16.mxu0 %v1803
      %1867 = vmatpush1.bf16.msra.mxu0 %v1802
      %1868 = vmatprep.subr.bf16.mxu0 %v1805
      %1869 = vmatpush1.bf16.msra.mxu0 %v1804
      %1870 = vmatprep.subr.bf16.mxu0 %v1807
      %1871 = vmatpush1.bf16.msra.mxu0 %v1806
      %1872 = vmatprep.mubr.bf16.mxu0 %v1647
      %1873 = vmatmul.mubr.bf16.gmra.mrb[0].mxu0 %v1646
      %v1874 = vpop.f32.mrb[0].mxu0
      %v1875 = vadd.f32 0.0, %v1874
      %v1876 = vpop.f32.mrb[0].mxu0
      %v1877 = vadd.f32 0.0, %v1876
      %v1878 = vpop.f32.mrb[0].mxu0
      %v1879 = vadd.f32 0.0, %v1878
      %v1880 = vpop.f32.mrb[0].mxu0
      %v1881 = vadd.f32 0.0, %v1880
      %1882 = vdwg.mxu0
      %v1883 = vadd.f32 %v1601, %v1875
      %v1884 = vadd.f32 %v1602, %v1877
      %v1885 = vadd.f32 %v1601, %v1879
      %v1886 = vadd.f32 %v1602, %v1881
      %1887 = vmatprep.subr.bf16.mxu0 %v1588
      %1888 = vmatpush1.bf16.msra.mxu0 %v1587
      %1889 = vmatprep.subr.bf16.mxu0 0
      %1890 = vmatpush1.bf16.msra.mxu0 0
      %1891 = vmatprep.subr.bf16.mxu0 0
      %1892 = vmatpush1.bf16.msra.mxu0 0
      %1893 = vmatprep.subr.bf16.mxu0 0
      %1894 = vmatpush1.bf16.msra.mxu0 0
      %1895 = vmatprep.subr.bf16.mxu0 0
      %1896 = vmatpush1.bf16.msra.mxu0 0
      %1897 = vmatprep.subr.bf16.mxu0 0
      %1898 = vmatpush1.bf16.msra.mxu0 0
      %1899 = vmatprep.subr.bf16.mxu0 0
      %1900 = vmatpush1.bf16.msra.mxu0 0
      %1901 = vmatprep.subr.bf16.mxu0 0
      %1902 = vmatpush1.bf16.msra.mxu0 0
      %1903 = vmatprep.subr.bf16.mxu0 0
      %1904 = vmatpush1.bf16.msra.mxu0 0
      %1905 = vmatprep.subr.bf16.mxu0 0
      %1906 = vmatpush1.bf16.msra.mxu0 0
      %1907 = vmatprep.subr.bf16.mxu0 0
      %1908 = vmatpush1.bf16.msra.mxu0 0
      %1909 = vmatprep.subr.bf16.mxu0 0
      %1910 = vmatpush1.bf16.msra.mxu0 0
      %1911 = vmatprep.subr.bf16.mxu0 0
      %1912 = vmatpush1.bf16.msra.mxu0 0
      %1913 = vmatprep.subr.bf16.mxu0 0
      %1914 = vmatpush1.bf16.msra.mxu0 0
      %1915 = vmatprep.subr.bf16.mxu0 0
      %1916 = vmatpush1.bf16.msra.mxu0 0
      %1917 = vmatprep.subr.bf16.mxu0 0
      %1918 = vmatpush1.bf16.msra.mxu0 0
      %1919 = vmatprep.mubr.bf16.mxu0 0
      %1920 = vmatmul.mubr.bf16.gmra.mrb[0].mxu0 %v1133
      %v1921 = vpop.f32.mrb[0].mxu0
      %v1922 = vadd.f32 0.0, %v1921
      %v1923 = vpop.f32.mrb[0].mxu0
      %v1924 = vadd.f32 0.0, %v1923
      %v1925 = vpop.f32.mrb[0].mxu0
      %v1926 = vadd.f32 0.0, %v1925
      %v1927 = vpop.f32.mrb[0].mxu0
      %v1928 = vadd.f32 0.0, %v1927
      %1929 = vdwg.mxu0
      %v1930 = vpack.c.bf16 %v1926, %v1922
      %v1931 = vpack.c.bf16 %v1928, %v1924
      %s1932 = scalar_lea.vmem %s15, 256
      %v1933 = vld [vmem:[%s1932] sm:$0xff]
      %v1934 = vld [vmem:[%s1932 + $0x8] sm:$0xff]
      %v1935 = vld [vmem:[%s1932 + $0x10] sm:$0xff]
      %v1936 = vld [vmem:[%s1932 + $0x18] sm:$0xff]
      %v1937 = vld [vmem:[%s1932 + $0x20] sm:$0xff]
      %v1938 = vld [vmem:[%s1932 + $0x28] sm:$0xff]
      %v1939 = vld [vmem:[%s1932 + $0x30] sm:$0xff]
      %v1940 = vld [vmem:[%s1932 + $0x38] sm:$0xff]
      %v1941 = vld [vmem:[%s1932 + $0x40] sm:$0xff]
      %v1942 = vld [vmem:[%s1932 + $0x48] sm:$0xff]
      %v1943 = vld [vmem:[%s1932 + $0x50] sm:$0xff]
      %v1944 = vld [vmem:[%s1932 + $0x58] sm:$0xff]
      %v1945 = vld [vmem:[%s1932 + $0x60] sm:$0xff]
      %v1946 = vld [vmem:[%s1932 + $0x68] sm:$0xff]
      %v1947 = vld [vmem:[%s1932 + $0x70] sm:$0xff]
      %v1948 = vld [vmem:[%s1932 + $0x78] sm:$0xff]
      %v1949 = vld [vmem:[%s1932 + $0x80] sm:$0xff]
      %v1950 = vld [vmem:[%s1932 + $0x88] sm:$0xff]
      %v1951 = vld [vmem:[%s1932 + $0x90] sm:$0xff]
      %v1952 = vld [vmem:[%s1932 + $0x98] sm:$0xff]
      %v1953 = vld [vmem:[%s1932 + $0xa0] sm:$0xff]
      %v1954 = vld [vmem:[%s1932 + $0xa8] sm:$0xff]
      %v1955 = vld [vmem:[%s1932 + $0xb0] sm:$0xff]
      %v1956 = vld [vmem:[%s1932 + $0xb8] sm:$0xff]
      %v1957 = vld [vmem:[%s1932 + $0xc0] sm:$0xff]
      %v1958 = vld [vmem:[%s1932 + $0xc8] sm:$0xff]
      %v1959 = vld [vmem:[%s1932 + $0xd0] sm:$0xff]
      %v1960 = vld [vmem:[%s1932 + $0xd8] sm:$0xff]
      %v1961 = vld [vmem:[%s1932 + $0xe0] sm:$0xff]
      %v1962 = vld [vmem:[%s1932 + $0xe8] sm:$0xff]
      %v1963 = vld [vmem:[%s1932 + $0xf0] sm:$0xff]
      %v1964 = vld [vmem:[%s1932 + $0xf8] sm:$0xff]
      %v1997 = vunpack.c.l.b16 %v1933
      %v1998 = vunpack.c.h.b16 %v1933
      %v1999 = vunpack.c.l.b16 %v1934
      %v2000 = vunpack.c.h.b16 %v1934
      %v2001 = vunpack.c.l.b16 %v1935
      %v2002 = vunpack.c.h.b16 %v1935
      %v2003 = vunpack.c.l.b16 %v1936
      %v2004 = vunpack.c.h.b16 %v1936
      %v2005 = vunpack.c.l.b16 %v1937
      %v2006 = vunpack.c.h.b16 %v1937
      %v2007 = vunpack.c.l.b16 %v1938
      %v2008 = vunpack.c.h.b16 %v1938
      %v2009 = vunpack.c.l.b16 %v1939
      %v2010 = vunpack.c.h.b16 %v1939
      %v2011 = vunpack.c.l.b16 %v1940
      %v2012 = vunpack.c.h.b16 %v1940
      %v2013 = vunpack.c.l.b16 %v1941
      %v2014 = vunpack.c.h.b16 %v1941
      %v2015 = vunpack.c.l.b16 %v1942
      %v2016 = vunpack.c.h.b16 %v1942
      %v2017 = vunpack.c.l.b16 %v1943
      %v2018 = vunpack.c.h.b16 %v1943
      %v2019 = vunpack.c.l.b16 %v1944
      %v2020 = vunpack.c.h.b16 %v1944
      %v2021 = vunpack.c.l.b16 %v1945
      %v2022 = vunpack.c.h.b16 %v1945
      %v2023 = vunpack.c.l.b16 %v1946
      %v2024 = vunpack.c.h.b16 %v1946
      %v2025 = vunpack.c.l.b16 %v1947
      %v2026 = vunpack.c.h.b16 %v1947
      %v2027 = vunpack.c.l.b16 %v1948
      %v2028 = vunpack.c.h.b16 %v1948
      %v2029 = vunpack.c.l.b16 %v1949
      %v2030 = vunpack.c.h.b16 %v1949
      %v2031 = vunpack.c.l.b16 %v1950
      %v2032 = vunpack.c.h.b16 %v1950
      %v2033 = vunpack.c.l.b16 %v1951
      %v2034 = vunpack.c.h.b16 %v1951
      %v2035 = vunpack.c.l.b16 %v1952
      %v2036 = vunpack.c.h.b16 %v1952
      %v2037 = vunpack.c.l.b16 %v1953
      %v2038 = vunpack.c.h.b16 %v1953
      %v2039 = vunpack.c.l.b16 %v1954
      %v2040 = vunpack.c.h.b16 %v1954
      %v2041 = vunpack.c.l.b16 %v1955
      %v2042 = vunpack.c.h.b16 %v1955
      %v2043 = vunpack.c.l.b16 %v1956
      %v2044 = vunpack.c.h.b16 %v1956
      %v2045 = vunpack.c.l.b16 %v1957
      %v2046 = vunpack.c.h.b16 %v1957
      %v2047 = vunpack.c.l.b16 %v1958
      %v2048 = vunpack.c.h.b16 %v1958
      %v2049 = vunpack.c.l.b16 %v1959
      %v2050 = vunpack.c.h.b16 %v1959
      %v2051 = vunpack.c.l.b16 %v1960
      %v2052 = vunpack.c.h.b16 %v1960
      %v2053 = vunpack.c.l.b16 %v1961
      %v2054 = vunpack.c.h.b16 %v1961
      %v2055 = vunpack.c.l.b16 %v1962
      %v2056 = vunpack.c.h.b16 %v1962
      %v2057 = vunpack.c.l.b16 %v1963
      %v2058 = vunpack.c.h.b16 %v1963
      %v2059 = vunpack.c.l.b16 %v1964
      %v2060 = vunpack.c.h.b16 %v1964
      %v2061 = vpack.c.b16 %v1999, %v1997
      %v2062 = vpack.c.b16 %v2000, %v1998
      %v2063 = vpack.c.b16 %v2003, %v2001
      %v2064 = vpack.c.b16 %v2004, %v2002
      %v2065 = vpack.c.b16 %v2007, %v2005
      %v2066 = vpack.c.b16 %v2008, %v2006
      %v2067 = vpack.c.b16 %v2011, %v2009
      %v2068 = vpack.c.b16 %v2012, %v2010
      %v2069 = vpack.c.b16 %v2015, %v2013
      %v2070 = vpack.c.b16 %v2016, %v2014
      %v2071 = vpack.c.b16 %v2019, %v2017
      %v2072 = vpack.c.b16 %v2020, %v2018
      %v2073 = vpack.c.b16 %v2023, %v2021
      %v2074 = vpack.c.b16 %v2024, %v2022
      %v2075 = vpack.c.b16 %v2027, %v2025
      %v2076 = vpack.c.b16 %v2028, %v2026
      %v2077 = vpack.c.b16 %v2031, %v2029
      %v2078 = vpack.c.b16 %v2032, %v2030
      %v2079 = vpack.c.b16 %v2035, %v2033
      %v2080 = vpack.c.b16 %v2036, %v2034
      %v2081 = vpack.c.b16 %v2039, %v2037
      %v2082 = vpack.c.b16 %v2040, %v2038
      %v2083 = vpack.c.b16 %v2043, %v2041
      %v2084 = vpack.c.b16 %v2044, %v2042
      %v2085 = vpack.c.b16 %v2047, %v2045
      %v2086 = vpack.c.b16 %v2048, %v2046
      %v2087 = vpack.c.b16 %v2051, %v2049
      %v2088 = vpack.c.b16 %v2052, %v2050
      %v2089 = vpack.c.b16 %v2055, %v2053
      %v2090 = vpack.c.b16 %v2056, %v2054
      %v2091 = vpack.c.b16 %v2059, %v2057
      %v2092 = vpack.c.b16 %v2060, %v2058
      %2125 = vmatprep.subr.bf16.mxu0 %v2062
      %2126 = vmatpush1.bf16.msra.mxu0 %v2061
      %2127 = vmatprep.subr.bf16.mxu0 %v2064
      %2128 = vmatpush1.bf16.msra.mxu0 %v2063
      %2129 = vmatprep.subr.bf16.mxu0 %v2066
      %2130 = vmatpush1.bf16.msra.mxu0 %v2065
      %2131 = vmatprep.subr.bf16.mxu0 %v2068
      %2132 = vmatpush1.bf16.msra.mxu0 %v2067
      %2133 = vmatprep.subr.bf16.mxu0 %v2070
      %2134 = vmatpush1.bf16.msra.mxu0 %v2069
      %2135 = vmatprep.subr.bf16.mxu0 %v2072
      %2136 = vmatpush1.bf16.msra.mxu0 %v2071
      %2137 = vmatprep.subr.bf16.mxu0 %v2074
      %2138 = vmatpush1.bf16.msra.mxu0 %v2073
      %2139 = vmatprep.subr.bf16.mxu0 %v2076
      %2140 = vmatpush1.bf16.msra.mxu0 %v2075
      %2141 = vmatprep.subr.bf16.mxu0 %v2078
      %2142 = vmatpush1.bf16.msra.mxu0 %v2077
      %2143 = vmatprep.subr.bf16.mxu0 %v2080
      %2144 = vmatpush1.bf16.msra.mxu0 %v2079
      %2145 = vmatprep.subr.bf16.mxu0 %v2082
      %2146 = vmatpush1.bf16.msra.mxu0 %v2081
      %2147 = vmatprep.subr.bf16.mxu0 %v2084
      %2148 = vmatpush1.bf16.msra.mxu0 %v2083
      %2149 = vmatprep.subr.bf16.mxu0 %v2086
      %2150 = vmatpush1.bf16.msra.mxu0 %v2085
      %2151 = vmatprep.subr.bf16.mxu0 %v2088
      %2152 = vmatpush1.bf16.msra.mxu0 %v2087
      %2153 = vmatprep.subr.bf16.mxu0 %v2090
      %2154 = vmatpush1.bf16.msra.mxu0 %v2089
      %2155 = vmatprep.subr.bf16.mxu0 %v2092
      %2156 = vmatpush1.bf16.msra.mxu0 %v2091
      %2157 = vmatprep.mubr.bf16.mxu0 %v1931
      %2158 = vmatmul.mubr.bf16.gmra.mrb[0].mxu0 %v1930
      %v2159 = vpop.f32.mrb[0].mxu0
      %v2160 = vadd.f32 0.0, %v2159
      %v2161 = vpop.f32.mrb[0].mxu0
      %v2162 = vadd.f32 0.0, %v2161
      %v2163 = vpop.f32.mrb[0].mxu0
      %v2164 = vadd.f32 0.0, %v2163
      %v2165 = vpop.f32.mrb[0].mxu0
      %v2166 = vadd.f32 0.0, %v2165
      %2167 = vdwg.mxu0
      %v2168 = vadd.f32 %v1883, %v2160
      %v2169 = vadd.f32 %v1884, %v2162
      %v2170 = vadd.f32 %v1885, %v2164
      %v2171 = vadd.f32 %v1886, %v2166
      %s2172 = scalar_lea.vmem %s15, 512
      %v2173 = vld [vmem:[%s2172] sm:$0xff]
      %v2174 = vld [vmem:[%s2172 + $0x8] sm:$0xff]
      %v2175 = vld [vmem:[%s2172 + $0x10] sm:$0xff]
      %v2176 = vld [vmem:[%s2172 + $0x18] sm:$0xff]
      %v2177 = vld [vmem:[%s2172 + $0x20] sm:$0xff]
      %v2178 = vld [vmem:[%s2172 + $0x28] sm:$0xff]
      %v2179 = vld [vmem:[%s2172 + $0x30] sm:$0xff]
      %v2180 = vld [vmem:[%s2172 + $0x38] sm:$0xff]
      %v2181 = vld [vmem:[%s2172 + $0x40] sm:$0xff]
      %v2182 = vld [vmem:[%s2172 + $0x48] sm:$0xff]
      %v2183 = vld [vmem:[%s2172 + $0x50] sm:$0xff]
      %v2184 = vld [vmem:[%s2172 + $0x58] sm:$0xff]
      %v2185 = vld [vmem:[%s2172 + $0x60] sm:$0xff]
      %v2186 = vld [vmem:[%s2172 + $0x68] sm:$0xff]
      %v2187 = vld [vmem:[%s2172 + $0x70] sm:$0xff]
      %v2188 = vld [vmem:[%s2172 + $0x78] sm:$0xff]
      %v2189 = vld [vmem:[%s2172 + $0x80] sm:$0xff]
      %v2190 = vld [vmem:[%s2172 + $0x88] sm:$0xff]
      %v2191 = vld [vmem:[%s2172 + $0x90] sm:$0xff]
      %v2192 = vld [vmem:[%s2172 + $0x98] sm:$0xff]
      %v2193 = vld [vmem:[%s2172 + $0xa0] sm:$0xff]
      %v2194 = vld [vmem:[%s2172 + $0xa8] sm:$0xff]
      %v2195 = vld [vmem:[%s2172 + $0xb0] sm:$0xff]
      %v2196 = vld [vmem:[%s2172 + $0xb8] sm:$0xff]
      %v2197 = vld [vmem:[%s2172 + $0xc0] sm:$0xff]
      %v2198 = vld [vmem:[%s2172 + $0xc8] sm:$0xff]
      %v2199 = vld [vmem:[%s2172 + $0xd0] sm:$0xff]
      %v2200 = vld [vmem:[%s2172 + $0xd8] sm:$0xff]
      %v2201 = vld [vmem:[%s2172 + $0xe0] sm:$0xff]
      %v2202 = vld [vmem:[%s2172 + $0xe8] sm:$0xff]
      %v2203 = vld [vmem:[%s2172 + $0xf0] sm:$0xff]
      %v2204 = vld [vmem:[%s2172 + $0xf8] sm:$0xff]
      %v2237 = vunpack.c.l.b16 %v2173
      %v2238 = vunpack.c.h.b16 %v2173
      %v2239 = vunpack.c.l.b16 %v2174
      %v2240 = vunpack.c.h.b16 %v2174
      %v2241 = vunpack.c.l.b16 %v2175
      %v2242 = vunpack.c.h.b16 %v2175
      %v2243 = vunpack.c.l.b16 %v2176
      %v2244 = vunpack.c.h.b16 %v2176
      %v2245 = vunpack.c.l.b16 %v2177
      %v2246 = vunpack.c.h.b16 %v2177
      %v2247 = vunpack.c.l.b16 %v2178
      %v2248 = vunpack.c.h.b16 %v2178
      %v2249 = vunpack.c.l.b16 %v2179
      %v2250 = vunpack.c.h.b16 %v2179
      %v2251 = vunpack.c.l.b16 %v2180
      %v2252 = vunpack.c.h.b16 %v2180
      %v2253 = vunpack.c.l.b16 %v2181
      %v2254 = vunpack.c.h.b16 %v2181
      %v2255 = vunpack.c.l.b16 %v2182
      %v2256 = vunpack.c.h.b16 %v2182
      %v2257 = vunpack.c.l.b16 %v2183
      %v2258 = vunpack.c.h.b16 %v2183
      %v2259 = vunpack.c.l.b16 %v2184
      %v2260 = vunpack.c.h.b16 %v2184
      %v2261 = vunpack.c.l.b16 %v2185
      %v2262 = vunpack.c.h.b16 %v2185
      %v2263 = vunpack.c.l.b16 %v2186
      %v2264 = vunpack.c.h.b16 %v2186
      %v2265 = vunpack.c.l.b16 %v2187
      %v2266 = vunpack.c.h.b16 %v2187
      %v2267 = vunpack.c.l.b16 %v2188
      %v2268 = vunpack.c.h.b16 %v2188
      %v2269 = vunpack.c.l.b16 %v2189
      %v2270 = vunpack.c.h.b16 %v2189
      %v2271 = vunpack.c.l.b16 %v2190
      %v2272 = vunpack.c.h.b16 %v2190
      %v2273 = vunpack.c.l.b16 %v2191
      %v2274 = vunpack.c.h.b16 %v2191
      %v2275 = vunpack.c.l.b16 %v2192
      %v2276 = vunpack.c.h.b16 %v2192
      %v2277 = vunpack.c.l.b16 %v2193
      %v2278 = vunpack.c.h.b16 %v2193
      %v2279 = vunpack.c.l.b16 %v2194
      %v2280 = vunpack.c.h.b16 %v2194
      %v2281 = vunpack.c.l.b16 %v2195
      %v2282 = vunpack.c.h.b16 %v2195
      %v2283 = vunpack.c.l.b16 %v2196
      %v2284 = vunpack.c.h.b16 %v2196
      %v2285 = vunpack.c.l.b16 %v2197
      %v2286 = vunpack.c.h.b16 %v2197
      %v2287 = vunpack.c.l.b16 %v2198
      %v2288 = vunpack.c.h.b16 %v2198
      %v2289 = vunpack.c.l.b16 %v2199
      %v2290 = vunpack.c.h.b16 %v2199
      %v2291 = vunpack.c.l.b16 %v2200
      %v2292 = vunpack.c.h.b16 %v2200
      %v2293 = vunpack.c.l.b16 %v2201
      %v2294 = vunpack.c.h.b16 %v2201
      %v2295 = vunpack.c.l.b16 %v2202
      %v2296 = vunpack.c.h.b16 %v2202
      %v2297 = vunpack.c.l.b16 %v2203
      %v2298 = vunpack.c.h.b16 %v2203
      %v2299 = vunpack.c.l.b16 %v2204
      %v2300 = vunpack.c.h.b16 %v2204
      %v2301 = vpack.c.b16 %v2239, %v2237
      %v2302 = vpack.c.b16 %v2240, %v2238
      %v2303 = vpack.c.b16 %v2243, %v2241
      %v2304 = vpack.c.b16 %v2244, %v2242
      %v2305 = vpack.c.b16 %v2247, %v2245
      %v2306 = vpack.c.b16 %v2248, %v2246
      %v2307 = vpack.c.b16 %v2251, %v2249
      %v2308 = vpack.c.b16 %v2252, %v2250
      %v2309 = vpack.c.b16 %v2255, %v2253
      %v2310 = vpack.c.b16 %v2256, %v2254
      %v2311 = vpack.c.b16 %v2259, %v2257
      %v2312 = vpack.c.b16 %v2260, %v2258
      %v2313 = vpack.c.b16 %v2263, %v2261
      %v2314 = vpack.c.b16 %v2264, %v2262
      %v2315 = vpack.c.b16 %v2267, %v2265
      %v2316 = vpack.c.b16 %v2268, %v2266
      %v2317 = vpack.c.b16 %v2271, %v2269
      %v2318 = vpack.c.b16 %v2272, %v2270
      %v2319 = vpack.c.b16 %v2275, %v2273
      %v2320 = vpack.c.b16 %v2276, %v2274
      %v2321 = vpack.c.b16 %v2279, %v2277
      %v2322 = vpack.c.b16 %v2280, %v2278
      %v2323 = vpack.c.b16 %v2283, %v2281
      %v2324 = vpack.c.b16 %v2284, %v2282
      %v2325 = vpack.c.b16 %v2287, %v2285
      %v2326 = vpack.c.b16 %v2288, %v2286
      %v2327 = vpack.c.b16 %v2291, %v2289
      %v2328 = vpack.c.b16 %v2292, %v2290
      %v2329 = vpack.c.b16 %v2295, %v2293
      %v2330 = vpack.c.b16 %v2296, %v2294
      %v2331 = vpack.c.b16 %v2299, %v2297
      %v2332 = vpack.c.b16 %v2300, %v2298
      %2365 = vmatprep.subr.bf16.mxu0 %v2302
      %2366 = vmatpush1.bf16.msra.mxu0 %v2301
      %2367 = vmatprep.subr.bf16.mxu0 %v2304
      %2368 = vmatpush1.bf16.msra.mxu0 %v2303
      %2369 = vmatprep.subr.bf16.mxu0 %v2306
      %2370 = vmatpush1.bf16.msra.mxu0 %v2305
      %2371 = vmatprep.subr.bf16.mxu0 %v2308
      %2372 = vmatpush1.bf16.msra.mxu0 %v2307
      %2373 = vmatprep.subr.bf16.mxu0 %v2310
      %2374 = vmatpush1.bf16.msra.mxu0 %v2309
      %2375 = vmatprep.subr.bf16.mxu0 %v2312
      %2376 = vmatpush1.bf16.msra.mxu0 %v2311
      %2377 = vmatprep.subr.bf16.mxu0 %v2314
      %2378 = vmatpush1.bf16.msra.mxu0 %v2313
      %2379 = vmatprep.subr.bf16.mxu0 %v2316
      %2380 = vmatpush1.bf16.msra.mxu0 %v2315
      %2381 = vmatprep.subr.bf16.mxu0 %v2318
      %2382 = vmatpush1.bf16.msra.mxu0 %v2317
      %2383 = vmatprep.subr.bf16.mxu0 %v2320
      %2384 = vmatpush1.bf16.msra.mxu0 %v2319
      %2385 = vmatprep.subr.bf16.mxu0 %v2322
      %2386 = vmatpush1.bf16.msra.mxu0 %v2321
      %2387 = vmatprep.subr.bf16.mxu0 %v2324
      %2388 = vmatpush1.bf16.msra.mxu0 %v2323
      %2389 = vmatprep.subr.bf16.mxu0 %v2326
      %2390 = vmatpush1.bf16.msra.mxu0 %v2325
      %2391 = vmatprep.subr.bf16.mxu0 %v2328
      %2392 = vmatpush1.bf16.msra.mxu0 %v2327
      %2393 = vmatprep.subr.bf16.mxu0 %v2330
      %2394 = vmatpush1.bf16.msra.mxu0 %v2329
      %2395 = vmatprep.subr.bf16.mxu0 %v2332
      %2396 = vmatpush1.bf16.msra.mxu0 %v2331
      %2397 = vmatprep.mubr.bf16.mxu0 %v1588
      %2398 = vmatmul.mubr.bf16.gmra.mrb[0].mxu0 %v1587
      %v2399 = vpop.f32.mrb[0].mxu0
      %v2400 = vadd.f32 0.0, %v2399
      %v2401 = vpop.f32.mrb[0].mxu0
      %v2402 = vadd.f32 0.0, %v2401
      %v2403 = vpop.f32.mrb[0].mxu0
      %v2404 = vadd.f32 0.0, %v2403
      %v2405 = vpop.f32.mrb[0].mxu0
      %v2406 = vadd.f32 0.0, %v2405
      %2407 = vdwg.mxu0
      %v2408 = vadd.f32 %v2168, %v2400
      %v2409 = vadd.f32 %v2169, %v2402
      %v2410 = vadd.f32 %v2170, %v2404
      %v2411 = vadd.f32 %v2171, %v2406
      %2412 = vmatprep.subr.bf16.mxu0 %v1588
      %2413 = vmatpush1.bf16.msra.mxu0 %v1587
      %2414 = vmatprep.subr.bf16.mxu0 0
      %2415 = vmatpush1.bf16.msra.mxu0 0
      %2416 = vmatprep.subr.bf16.mxu0 0
      %2417 = vmatpush1.bf16.msra.mxu0 0
      %2418 = vmatprep.subr.bf16.mxu0 0
      %2419 = vmatpush1.bf16.msra.mxu0 0
      %2420 = vmatprep.subr.bf16.mxu0 0
      %2421 = vmatpush1.bf16.msra.mxu0 0
      %2422 = vmatprep.subr.bf16.mxu0 0
      %2423 = vmatpush1.bf16.msra.mxu0 0
      %2424 = vmatprep.subr.bf16.mxu0 0
      %2425 = vmatpush1.bf16.msra.mxu0 0
      %2426 = vmatprep.subr.bf16.mxu0 0
      %2427 = vmatpush1.bf16.msra.mxu0 0
      %2428 = vmatprep.subr.bf16.mxu0 0
      %2429 = vmatpush1.bf16.msra.mxu0 0
      %2430 = vmatprep.subr.bf16.mxu0 0
      %2431 = vmatpush1.bf16.msra.mxu0 0
      %2432 = vmatprep.subr.bf16.mxu0 0
      %2433 = vmatpush1.bf16.msra.mxu0 0
      %2434 = vmatprep.subr.bf16.mxu0 0
      %2435 = vmatpush1.bf16.msra.mxu0 0
      %2436 = vmatprep.subr.bf16.mxu0 0
      %2437 = vmatpush1.bf16.msra.mxu0 0
      %2438 = vmatprep.subr.bf16.mxu0 0
      %2439 = vmatpush1.bf16.msra.mxu0 0
      %2440 = vmatprep.subr.bf16.mxu0 0
      %2441 = vmatpush1.bf16.msra.mxu0 0
      %2442 = vmatprep.subr.bf16.mxu0 0
      %2443 = vmatpush1.bf16.msra.mxu0 0
      %2444 = vmatprep.mubr.bf16.mxu0 0
      %2445 = vmatmul.mubr.bf16.gmra.mrb[0].mxu0 %v1336
      %v2446 = vpop.f32.mrb[0].mxu0
      %v2447 = vadd.f32 0.0, %v2446
      %v2448 = vpop.f32.mrb[0].mxu0
      %v2449 = vadd.f32 0.0, %v2448
      %v2450 = vpop.f32.mrb[0].mxu0
      %v2451 = vadd.f32 0.0, %v2450
      %v2452 = vpop.f32.mrb[0].mxu0
      %v2453 = vadd.f32 0.0, %v2452
      %2454 = vdwg.mxu0
      %v2455 = vpack.c.bf16 %v2451, %v2447
      %v2456 = vpack.c.bf16 %v2453, %v2449
      %s2457 = scalar_lea.vmem %s15, 768
      %v2458 = vld [vmem:[%s2457] sm:$0xff]
      %v2459 = vld [vmem:[%s2457 + $0x8] sm:$0xff]
      %v2460 = vld [vmem:[%s2457 + $0x10] sm:$0xff]
      %v2461 = vld [vmem:[%s2457 + $0x18] sm:$0xff]
      %v2462 = vld [vmem:[%s2457 + $0x20] sm:$0xff]
      %v2463 = vld [vmem:[%s2457 + $0x28] sm:$0xff]
      %v2464 = vld [vmem:[%s2457 + $0x30] sm:$0xff]
      %v2465 = vld [vmem:[%s2457 + $0x38] sm:$0xff]
      %v2466 = vld [vmem:[%s2457 + $0x40] sm:$0xff]
      %v2467 = vld [vmem:[%s2457 + $0x48] sm:$0xff]
      %v2468 = vld [vmem:[%s2457 + $0x50] sm:$0xff]
      %v2469 = vld [vmem:[%s2457 + $0x58] sm:$0xff]
      %v2470 = vld [vmem:[%s2457 + $0x60] sm:$0xff]
      %v2471 = vld [vmem:[%s2457 + $0x68] sm:$0xff]
      %v2472 = vld [vmem:[%s2457 + $0x70] sm:$0xff]
      %v2473 = vld [vmem:[%s2457 + $0x78] sm:$0xff]
      %v2474 = vld [vmem:[%s2457 + $0x80] sm:$0xff]
      %v2475 = vld [vmem:[%s2457 + $0x88] sm:$0xff]
      %v2476 = vld [vmem:[%s2457 + $0x90] sm:$0xff]
      %v2477 = vld [vmem:[%s2457 + $0x98] sm:$0xff]
      %v2478 = vld [vmem:[%s2457 + $0xa0] sm:$0xff]
      %v2479 = vld [vmem:[%s2457 + $0xa8] sm:$0xff]
      %v2480 = vld [vmem:[%s2457 + $0xb0] sm:$0xff]
      %v2481 = vld [vmem:[%s2457 + $0xb8] sm:$0xff]
      %v2482 = vld [vmem:[%s2457 + $0xc0] sm:$0xff]
      %v2483 = vld [vmem:[%s2457 + $0xc8] sm:$0xff]
      %v2484 = vld [vmem:[%s2457 + $0xd0] sm:$0xff]
      %v2485 = vld [vmem:[%s2457 + $0xd8] sm:$0xff]
      %v2486 = vld [vmem:[%s2457 + $0xe0] sm:$0xff]
      %v2487 = vld [vmem:[%s2457 + $0xe8] sm:$0xff]
      %v2488 = vld [vmem:[%s2457 + $0xf0] sm:$0xff]
      %v2489 = vld [vmem:[%s2457 + $0xf8] sm:$0xff]
      %v2522 = vunpack.c.l.b16 %v2458
      %v2523 = vunpack.c.h.b16 %v2458
      %v2524 = vunpack.c.l.b16 %v2459
      %v2525 = vunpack.c.h.b16 %v2459
      %v2526 = vunpack.c.l.b16 %v2460
      %v2527 = vunpack.c.h.b16 %v2460
      %v2528 = vunpack.c.l.b16 %v2461
      %v2529 = vunpack.c.h.b16 %v2461
      %v2530 = vunpack.c.l.b16 %v2462
      %v2531 = vunpack.c.h.b16 %v2462
      %v2532 = vunpack.c.l.b16 %v2463
      %v2533 = vunpack.c.h.b16 %v2463
      %v2534 = vunpack.c.l.b16 %v2464
      %v2535 = vunpack.c.h.b16 %v2464
      %v2536 = vunpack.c.l.b16 %v2465
      %v2537 = vunpack.c.h.b16 %v2465
      %v2538 = vunpack.c.l.b16 %v2466
      %v2539 = vunpack.c.h.b16 %v2466
      %v2540 = vunpack.c.l.b16 %v2467
      %v2541 = vunpack.c.h.b16 %v2467
      %v2542 = vunpack.c.l.b16 %v2468
      %v2543 = vunpack.c.h.b16 %v2468
      %v2544 = vunpack.c.l.b16 %v2469
      %v2545 = vunpack.c.h.b16 %v2469
      %v2546 = vunpack.c.l.b16 %v2470
      %v2547 = vunpack.c.h.b16 %v2470
      %v2548 = vunpack.c.l.b16 %v2471
      %v2549 = vunpack.c.h.b16 %v2471
      %v2550 = vunpack.c.l.b16 %v2472
      %v2551 = vunpack.c.h.b16 %v2472
      %v2552 = vunpack.c.l.b16 %v2473
      %v2553 = vunpack.c.h.b16 %v2473
      %v2554 = vunpack.c.l.b16 %v2474
      %v2555 = vunpack.c.h.b16 %v2474
      %v2556 = vunpack.c.l.b16 %v2475
      %v2557 = vunpack.c.h.b16 %v2475
      %v2558 = vunpack.c.l.b16 %v2476
      %v2559 = vunpack.c.h.b16 %v2476
      %v2560 = vunpack.c.l.b16 %v2477
      %v2561 = vunpack.c.h.b16 %v2477
      %v2562 = vunpack.c.l.b16 %v2478
      %v2563 = vunpack.c.h.b16 %v2478
      %v2564 = vunpack.c.l.b16 %v2479
      %v2565 = vunpack.c.h.b16 %v2479
      %v2566 = vunpack.c.l.b16 %v2480
      %v2567 = vunpack.c.h.b16 %v2480
      %v2568 = vunpack.c.l.b16 %v2481
      %v2569 = vunpack.c.h.b16 %v2481
      %v2570 = vunpack.c.l.b16 %v2482
      %v2571 = vunpack.c.h.b16 %v2482
      %v2572 = vunpack.c.l.b16 %v2483
      %v2573 = vunpack.c.h.b16 %v2483
      %v2574 = vunpack.c.l.b16 %v2484
      %v2575 = vunpack.c.h.b16 %v2484
      %v2576 = vunpack.c.l.b16 %v2485
      %v2577 = vunpack.c.h.b16 %v2485
      %v2578 = vunpack.c.l.b16 %v2486
      %v2579 = vunpack.c.h.b16 %v2486
      %v2580 = vunpack.c.l.b16 %v2487
      %v2581 = vunpack.c.h.b16 %v2487
      %v2582 = vunpack.c.l.b16 %v2488
      %v2583 = vunpack.c.h.b16 %v2488
      %v2584 = vunpack.c.l.b16 %v2489
      %v2585 = vunpack.c.h.b16 %v2489
      %v2586 = vpack.c.b16 %v2524, %v2522
      %v2587 = vpack.c.b16 %v2525, %v2523
      %v2588 = vpack.c.b16 %v2528, %v2526
      %v2589 = vpack.c.b16 %v2529, %v2527
      %v2590 = vpack.c.b16 %v2532, %v2530
      %v2591 = vpack.c.b16 %v2533, %v2531
      %v2592 = vpack.c.b16 %v2536, %v2534
      %v2593 = vpack.c.b16 %v2537, %v2535
      %v2594 = vpack.c.b16 %v2540, %v2538
      %v2595 = vpack.c.b16 %v2541, %v2539
      %v2596 = vpack.c.b16 %v2544, %v2542
      %v2597 = vpack.c.b16 %v2545, %v2543
      %v2598 = vpack.c.b16 %v2548, %v2546
      %v2599 = vpack.c.b16 %v2549, %v2547
      %v2600 = vpack.c.b16 %v2552, %v2550
      %v2601 = vpack.c.b16 %v2553, %v2551
      %v2602 = vpack.c.b16 %v2556, %v2554
      %v2603 = vpack.c.b16 %v2557, %v2555
      %v2604 = vpack.c.b16 %v2560, %v2558
      %v2605 = vpack.c.b16 %v2561, %v2559
      %v2606 = vpack.c.b16 %v2564, %v2562
      %v2607 = vpack.c.b16 %v2565, %v2563
      %v2608 = vpack.c.b16 %v2568, %v2566
      %v2609 = vpack.c.b16 %v2569, %v2567
      %v2610 = vpack.c.b16 %v2572, %v2570
      %v2611 = vpack.c.b16 %v2573, %v2571
      %v2612 = vpack.c.b16 %v2576, %v2574
      %v2613 = vpack.c.b16 %v2577, %v2575
      %v2614 = vpack.c.b16 %v2580, %v2578
      %v2615 = vpack.c.b16 %v2581, %v2579
      %v2616 = vpack.c.b16 %v2584, %v2582
      %v2617 = vpack.c.b16 %v2585, %v2583
      %2650 = vmatprep.subr.bf16.mxu0 %v2587
      %2651 = vmatpush1.bf16.msra.mxu0 %v2586
      %2652 = vmatprep.subr.bf16.mxu0 %v2589
      %2653 = vmatpush1.bf16.msra.mxu0 %v2588
      %2654 = vmatprep.subr.bf16.mxu0 %v2591
      %2655 = vmatpush1.bf16.msra.mxu0 %v2590
      %2656 = vmatprep.subr.bf16.mxu0 %v2593
      %2657 = vmatpush1.bf16.msra.mxu0 %v2592
      %2658 = vmatprep.subr.bf16.mxu0 %v2595
      %2659 = vmatpush1.bf16.msra.mxu0 %v2594
      %2660 = vmatprep.subr.bf16.mxu0 %v2597
      %2661 = vmatpush1.bf16.msra.mxu0 %v2596
      %2662 = vmatprep.subr.bf16.mxu0 %v2599
      %2663 = vmatpush1.bf16.msra.mxu0 %v2598
      %2664 = vmatprep.subr.bf16.mxu0 %v2601
      %2665 = vmatpush1.bf16.msra.mxu0 %v2600
      %2666 = vmatprep.subr.bf16.mxu0 %v2603
      %2667 = vmatpush1.bf16.msra.mxu0 %v2602
      %2668 = vmatprep.subr.bf16.mxu0 %v2605
      %2669 = vmatpush1.bf16.msra.mxu0 %v2604
      %2670 = vmatprep.subr.bf16.mxu0 %v2607
      %2671 = vmatpush1.bf16.msra.mxu0 %v2606
      %2672 = vmatprep.subr.bf16.mxu0 %v2609
      %2673 = vmatpush1.bf16.msra.mxu0 %v2608
      %2674 = vmatprep.subr.bf16.mxu0 %v2611
      %2675 = vmatpush1.bf16.msra.mxu0 %v2610
      %2676 = vmatprep.subr.bf16.mxu0 %v2613
      %2677 = vmatpush1.bf16.msra.mxu0 %v2612
      %2678 = vmatprep.subr.bf16.mxu0 %v2615
      %2679 = vmatpush1.bf16.msra.mxu0 %v2614
      %2680 = vmatprep.subr.bf16.mxu0 %v2617
      %2681 = vmatpush1.bf16.msra.mxu0 %v2616
      %2682 = vmatprep.mubr.bf16.mxu0 %v2456
      %2683 = vmatmul.mubr.bf16.gmra.mrb[0].mxu0 %v2455
      %v2684 = vpop.f32.mrb[0].mxu0
      %v2685 = vadd.f32 0.0, %v2684
      %v2686 = vpop.f32.mrb[0].mxu0
      %v2687 = vadd.f32 0.0, %v2686
      %v2688 = vpop.f32.mrb[0].mxu0
      %v2689 = vadd.f32 0.0, %v2688
      %v2690 = vpop.f32.mrb[0].mxu0
      %v2691 = vadd.f32 0.0, %v2690
      %2692 = vdwg.mxu0
      %v2693 = vadd.f32 %v2408, %v2685
      %v2694 = vadd.f32 %v2409, %v2687
      %v2695 = vadd.f32 %v2410, %v2689
      %v2696 = vadd.f32 %v2411, %v2691
      %2697 = vmatprep.subr.bf16.mxu0 %v1588
      %2698 = vmatpush1.bf16.msra.mxu0 %v1587
      %2699 = vmatprep.subr.bf16.mxu0 0
      %2700 = vmatpush1.bf16.msra.mxu0 0
      %2701 = vmatprep.subr.bf16.mxu0 0
      %2702 = vmatpush1.bf16.msra.mxu0 0
      %2703 = vmatprep.subr.bf16.mxu0 0
      %2704 = vmatpush1.bf16.msra.mxu0 0
      %2705 = vmatprep.subr.bf16.mxu0 0
      %2706 = vmatpush1.bf16.msra.mxu0 0
      %2707 = vmatprep.subr.bf16.mxu0 0
      %2708 = vmatpush1.bf16.msra.mxu0 0
      %2709 = vmatprep.subr.bf16.mxu0 0
      %2710 = vmatpush1.bf16.msra.mxu0 0
      %2711 = vmatprep.subr.bf16.mxu0 0
      %2712 = vmatpush1.bf16.msra.mxu0 0
      %2713 = vmatprep.subr.bf16.mxu0 0
      %2714 = vmatpush1.bf16.msra.mxu0 0
      %2715 = vmatprep.subr.bf16.mxu0 0
      %2716 = vmatpush1.bf16.msra.mxu0 0
      %2717 = vmatprep.subr.bf16.mxu0 0
      %2718 = vmatpush1.bf16.msra.mxu0 0
      %2719 = vmatprep.subr.bf16.mxu0 0
      %2720 = vmatpush1.bf16.msra.mxu0 0
      %2721 = vmatprep.subr.bf16.mxu0 0
      %2722 = vmatpush1.bf16.msra.mxu0 0
      %2723 = vmatprep.subr.bf16.mxu0 0
      %2724 = vmatpush1.bf16.msra.mxu0 0
      %2725 = vmatprep.subr.bf16.mxu0 0
      %2726 = vmatpush1.bf16.msra.mxu0 0
      %2727 = vmatprep.subr.bf16.mxu0 0
      %2728 = vmatpush1.bf16.msra.mxu0 0
      %2729 = vmatprep.mubr.bf16.mxu0 0
      %2730 = vmatmul.mubr.bf16.gmra.mrb[0].mxu0 %v1464
      %v2731 = vpop.f32.mrb[0].mxu0
      %v2732 = vadd.f32 0.0, %v2731
      %v2733 = vpop.f32.mrb[0].mxu0
      %v2734 = vadd.f32 0.0, %v2733
      %v2735 = vpop.f32.mrb[0].mxu0
      %v2736 = vadd.f32 0.0, %v2735
      %v2737 = vpop.f32.mrb[0].mxu0
      %v2738 = vadd.f32 0.0, %v2737
      %2739 = vdwg.mxu0
      %v2740 = vpack.c.bf16 %v2736, %v2732
      %v2741 = vpack.c.bf16 %v2738, %v2734
      %s2742 = scalar_lea.vmem %s15, 1024
      %v2743 = vld [vmem:[%s2742] sm:$0xff]
      %v2744 = vld [vmem:[%s2742 + $0x8] sm:$0xff]
      %v2745 = vld [vmem:[%s2742 + $0x10] sm:$0xff]
      %v2746 = vld [vmem:[%s2742 + $0x18] sm:$0xff]
      %v2747 = vld [vmem:[%s2742 + $0x20] sm:$0xff]
      %v2748 = vld [vmem:[%s2742 + $0x28] sm:$0xff]
      %v2749 = vld [vmem:[%s2742 + $0x30] sm:$0xff]
      %v2750 = vld [vmem:[%s2742 + $0x38] sm:$0xff]
      %v2751 = vld [vmem:[%s2742 + $0x40] sm:$0xff]
      %v2752 = vld [vmem:[%s2742 + $0x48] sm:$0xff]
      %v2753 = vld [vmem:[%s2742 + $0x50] sm:$0xff]
      %v2754 = vld [vmem:[%s2742 + $0x58] sm:$0xff]
      %v2755 = vld [vmem:[%s2742 + $0x60] sm:$0xff]
      %v2756 = vld [vmem:[%s2742 + $0x68] sm:$0xff]
      %v2757 = vld [vmem:[%s2742 + $0x70] sm:$0xff]
      %v2758 = vld [vmem:[%s2742 + $0x78] sm:$0xff]
      %v2759 = vld [vmem:[%s2742 + $0x80] sm:$0xff]
      %v2760 = vld [vmem:[%s2742 + $0x88] sm:$0xff]
      %v2761 = vld [vmem:[%s2742 + $0x90] sm:$0xff]
      %v2762 = vld [vmem:[%s2742 + $0x98] sm:$0xff]
      %v2763 = vld [vmem:[%s2742 + $0xa0] sm:$0xff]
      %v2764 = vld [vmem:[%s2742 + $0xa8] sm:$0xff]
      %v2765 = vld [vmem:[%s2742 + $0xb0] sm:$0xff]
      %v2766 = vld [vmem:[%s2742 + $0xb8] sm:$0xff]
      %v2767 = vld [vmem:[%s2742 + $0xc0] sm:$0xff]
      %v2768 = vld [vmem:[%s2742 + $0xc8] sm:$0xff]
      %v2769 = vld [vmem:[%s2742 + $0xd0] sm:$0xff]
      %v2770 = vld [vmem:[%s2742 + $0xd8] sm:$0xff]
      %v2771 = vld [vmem:[%s2742 + $0xe0] sm:$0xff]
      %v2772 = vld [vmem:[%s2742 + $0xe8] sm:$0xff]
      %v2773 = vld [vmem:[%s2742 + $0xf0] sm:$0xff]
      %v2774 = vld [vmem:[%s2742 + $0xf8] sm:$0xff]
      %v2807 = vunpack.c.l.b16 %v2743
      %v2808 = vunpack.c.h.b16 %v2743
      %v2809 = vunpack.c.l.b16 %v2744
      %v2810 = vunpack.c.h.b16 %v2744
      %v2811 = vunpack.c.l.b16 %v2745
      %v2812 = vunpack.c.h.b16 %v2745
      %v2813 = vunpack.c.l.b16 %v2746
      %v2814 = vunpack.c.h.b16 %v2746
      %v2815 = vunpack.c.l.b16 %v2747
      %v2816 = vunpack.c.h.b16 %v2747
      %v2817 = vunpack.c.l.b16 %v2748
      %v2818 = vunpack.c.h.b16 %v2748
      %v2819 = vunpack.c.l.b16 %v2749
      %v2820 = vunpack.c.h.b16 %v2749
      %v2821 = vunpack.c.l.b16 %v2750
      %v2822 = vunpack.c.h.b16 %v2750
      %v2823 = vunpack.c.l.b16 %v2751
      %v2824 = vunpack.c.h.b16 %v2751
      %v2825 = vunpack.c.l.b16 %v2752
      %v2826 = vunpack.c.h.b16 %v2752
      %v2827 = vunpack.c.l.b16 %v2753
      %v2828 = vunpack.c.h.b16 %v2753
      %v2829 = vunpack.c.l.b16 %v2754
      %v2830 = vunpack.c.h.b16 %v2754
      %v2831 = vunpack.c.l.b16 %v2755
      %v2832 = vunpack.c.h.b16 %v2755
      %v2833 = vunpack.c.l.b16 %v2756
      %v2834 = vunpack.c.h.b16 %v2756
      %v2835 = vunpack.c.l.b16 %v2757
      %v2836 = vunpack.c.h.b16 %v2757
      %v2837 = vunpack.c.l.b16 %v2758
      %v2838 = vunpack.c.h.b16 %v2758
      %v2839 = vunpack.c.l.b16 %v2759
      %v2840 = vunpack.c.h.b16 %v2759
      %v2841 = vunpack.c.l.b16 %v2760
      %v2842 = vunpack.c.h.b16 %v2760
      %v2843 = vunpack.c.l.b16 %v2761
      %v2844 = vunpack.c.h.b16 %v2761
      %v2845 = vunpack.c.l.b16 %v2762
      %v2846 = vunpack.c.h.b16 %v2762
      %v2847 = vunpack.c.l.b16 %v2763
      %v2848 = vunpack.c.h.b16 %v2763
      %v2849 = vunpack.c.l.b16 %v2764
      %v2850 = vunpack.c.h.b16 %v2764
      %v2851 = vunpack.c.l.b16 %v2765
      %v2852 = vunpack.c.h.b16 %v2765
      %v2853 = vunpack.c.l.b16 %v2766
      %v2854 = vunpack.c.h.b16 %v2766
      %v2855 = vunpack.c.l.b16 %v2767
      %v2856 = vunpack.c.h.b16 %v2767
      %v2857 = vunpack.c.l.b16 %v2768
      %v2858 = vunpack.c.h.b16 %v2768
      %v2859 = vunpack.c.l.b16 %v2769
      %v2860 = vunpack.c.h.b16 %v2769
      %v2861 = vunpack.c.l.b16 %v2770
      %v2862 = vunpack.c.h.b16 %v2770
      %v2863 = vunpack.c.l.b16 %v2771
      %v2864 = vunpack.c.h.b16 %v2771
      %v2865 = vunpack.c.l.b16 %v2772
      %v2866 = vunpack.c.h.b16 %v2772
      %v2867 = vunpack.c.l.b16 %v2773
      %v2868 = vunpack.c.h.b16 %v2773
      %v2869 = vunpack.c.l.b16 %v2774
      %v2870 = vunpack.c.h.b16 %v2774
      %v2871 = vpack.c.b16 %v2809, %v2807
      %v2872 = vpack.c.b16 %v2810, %v2808
      %v2873 = vpack.c.b16 %v2813, %v2811
      %v2874 = vpack.c.b16 %v2814, %v2812
      %v2875 = vpack.c.b16 %v2817, %v2815
      %v2876 = vpack.c.b16 %v2818, %v2816
      %v2877 = vpack.c.b16 %v2821, %v2819
      %v2878 = vpack.c.b16 %v2822, %v2820
      %v2879 = vpack.c.b16 %v2825, %v2823
      %v2880 = vpack.c.b16 %v2826, %v2824
      %v2881 = vpack.c.b16 %v2829, %v2827
      %v2882 = vpack.c.b16 %v2830, %v2828
      %v2883 = vpack.c.b16 %v2833, %v2831
      %v2884 = vpack.c.b16 %v2834, %v2832
      %v2885 = vpack.c.b16 %v2837, %v2835
      %v2886 = vpack.c.b16 %v2838, %v2836
      %v2887 = vpack.c.b16 %v2841, %v2839
      %v2888 = vpack.c.b16 %v2842, %v2840
      %v2889 = vpack.c.b16 %v2845, %v2843
      %v2890 = vpack.c.b16 %v2846, %v2844
      %v2891 = vpack.c.b16 %v2849, %v2847
      %v2892 = vpack.c.b16 %v2850, %v2848
      %v2893 = vpack.c.b16 %v2853, %v2851
      %v2894 = vpack.c.b16 %v2854, %v2852
      %v2895 = vpack.c.b16 %v2857, %v2855
      %v2896 = vpack.c.b16 %v2858, %v2856
      %v2897 = vpack.c.b16 %v2861, %v2859
      %v2898 = vpack.c.b16 %v2862, %v2860
      %v2899 = vpack.c.b16 %v2865, %v2863
      %v2900 = vpack.c.b16 %v2866, %v2864
      %v2901 = vpack.c.b16 %v2869, %v2867
      %v2902 = vpack.c.b16 %v2870, %v2868
      %2935 = vmatprep.subr.bf16.mxu0 %v2872
      %2936 = vmatpush1.bf16.msra.mxu0 %v2871
      %2937 = vmatprep.subr.bf16.mxu0 %v2874
      %2938 = vmatpush1.bf16.msra.mxu0 %v2873
      %2939 = vmatprep.subr.bf16.mxu0 %v2876
      %2940 = vmatpush1.bf16.msra.mxu0 %v2875
      %2941 = vmatprep.subr.bf16.mxu0 %v2878
      %2942 = vmatpush1.bf16.msra.mxu0 %v2877
      %2943 = vmatprep.subr.bf16.mxu0 %v2880
      %2944 = vmatpush1.bf16.msra.mxu0 %v2879
      %2945 = vmatprep.subr.bf16.mxu0 %v2882
      %2946 = vmatpush1.bf16.msra.mxu0 %v2881
      %2947 = vmatprep.subr.bf16.mxu0 %v2884
      %2948 = vmatpush1.bf16.msra.mxu0 %v2883
      %2949 = vmatprep.subr.bf16.mxu0 %v2886
      %2950 = vmatpush1.bf16.msra.mxu0 %v2885
      %2951 = vmatprep.subr.bf16.mxu0 %v2888
      %2952 = vmatpush1.bf16.msra.mxu0 %v2887
      %2953 = vmatprep.subr.bf16.mxu0 %v2890
      %2954 = vmatpush1.bf16.msra.mxu0 %v2889
      %2955 = vmatprep.subr.bf16.mxu0 %v2892
      %2956 = vmatpush1.bf16.msra.mxu0 %v2891
      %2957 = vmatprep.subr.bf16.mxu0 %v2894
      %2958 = vmatpush1.bf16.msra.mxu0 %v2893
      %2959 = vmatprep.subr.bf16.mxu0 %v2896
      %2960 = vmatpush1.bf16.msra.mxu0 %v2895
      %2961 = vmatprep.subr.bf16.mxu0 %v2898
      %2962 = vmatpush1.bf16.msra.mxu0 %v2897
      %2963 = vmatprep.subr.bf16.mxu0 %v2900
      %2964 = vmatpush1.bf16.msra.mxu0 %v2899
      %2965 = vmatprep.subr.bf16.mxu0 %v2902
      %2966 = vmatpush1.bf16.msra.mxu0 %v2901
      %2967 = vmatprep.mubr.bf16.mxu0 %v2741
      %2968 = vmatmul.mubr.bf16.gmra.mrb[0].mxu0 %v2740
      %v2969 = vpop.f32.mrb[0].mxu0
      %v2970 = vadd.f32 0.0, %v2969
      %v2971 = vpop.f32.mrb[0].mxu0
      %v2972 = vadd.f32 0.0, %v2971
      %v2973 = vpop.f32.mrb[0].mxu0
      %v2974 = vadd.f32 0.0, %v2973
      %v2975 = vpop.f32.mrb[0].mxu0
      %v2976 = vadd.f32 0.0, %v2975
      %2977 = vdwg.mxu0
      %v2978 = vadd.f32 %v2693, %v2970
      %v2979 = vadd.f32 %v2694, %v2972
      %v2980 = vadd.f32 %v2695, %v2974
      %v2981 = vadd.f32 %v2696, %v2976
      %v2982 = vmax.f32 %v2978, 0.0
      %v2983 = vmax.f32 %v2979, 0.0
      %v2984 = vmax.f32 %v2980, 0.0
      %v2985 = vmax.f32 %v2981, 0.0
      %v2986 = vadd.f32 %v2982, %v2984
      %v2987 = vrot.slane %v2986, 4
      %v2988 = vadd.f32 %v2986, %v2987
      %v2989 = vrot.slane %v2988, 2
      %v2990 = vadd.f32 %v2988, %v2989
      %v2991 = vrot.slane %v2990, 1
      %v2992 = vadd.f32 %v2990, %v2991
      %v2993 = vadd.f32 %v2983, %v2985
      %v2994 = vrot.slane %v2993, 4
      %v2995 = vadd.f32 %v2993, %v2994
      %v2996 = vrot.slane %v2995, 2
      %v2997 = vadd.f32 %v2995, %v2996
      %v2998 = vrot.slane %v2997, 1
      %v2999 = vadd.f32 %v2997, %v2998
      %v3000 = vrcp.pop 16.0
      %v3001 = vmul.f32 %v2992, %v3000
      %v3002 = vmul.f32 %v2999, %v3000
      %v3003 = vpack.c.bf16 %v3001, %v3001
      %v3004 = vpack.c.bf16 %v3002, %v3002
      %v3005 = vld [vmem:[%s19] sm:$0xff]
      %v3006 = vld [vmem:[%s19 + $0x8] sm:$0xff]
      %v3007 = vld [vmem:[%s19 + $0x10] sm:$0xff]
      %v3008 = vld [vmem:[%s19 + $0x18] sm:$0xff]
      %v3009 = vld [vmem:[%s19 + $0x20] sm:$0xff]
      %v3010 = vld [vmem:[%s19 + $0x28] sm:$0xff]
      %v3011 = vld [vmem:[%s19 + $0x30] sm:$0xff]
      %v3012 = vld [vmem:[%s19 + $0x38] sm:$0xff]
      %v3013 = vld [vmem:[%s19 + $0x40] sm:$0xff]
      %v3014 = vld [vmem:[%s19 + $0x48] sm:$0xff]
      %v3015 = vld [vmem:[%s19 + $0x50] sm:$0xff]
      %v3016 = vld [vmem:[%s19 + $0x58] sm:$0xff]
      %v3017 = vld [vmem:[%s19 + $0x60] sm:$0xff]
      %v3018 = vld [vmem:[%s19 + $0x68] sm:$0xff]
      %v3019 = vld [vmem:[%s19 + $0x70] sm:$0xff]
      %v3020 = vld [vmem:[%s19 + $0x78] sm:$0xff]
      %v3021 = vld [vmem:[%s19 + $0x80] sm:$0xff]
      %v3022 = vld [vmem:[%s19 + $0x88] sm:$0xff]
      %v3023 = vld [vmem:[%s19 + $0x90] sm:$0xff]
      %v3024 = vld [vmem:[%s19 + $0x98] sm:$0xff]
      %v3025 = vld [vmem:[%s19 + $0xa0] sm:$0xff]
      %v3026 = vld [vmem:[%s19 + $0xa8] sm:$0xff]
      %v3027 = vld [vmem:[%s19 + $0xb0] sm:$0xff]
      %v3028 = vld [vmem:[%s19 + $0xb8] sm:$0xff]
      %v3029 = vld [vmem:[%s19 + $0xc0] sm:$0xff]
      %v3030 = vld [vmem:[%s19 + $0xc8] sm:$0xff]
      %v3031 = vld [vmem:[%s19 + $0xd0] sm:$0xff]
      %v3032 = vld [vmem:[%s19 + $0xd8] sm:$0xff]
      %v3033 = vld [vmem:[%s19 + $0xe0] sm:$0xff]
      %v3034 = vld [vmem:[%s19 + $0xe8] sm:$0xff]
      %v3035 = vld [vmem:[%s19 + $0xf0] sm:$0xff]
      %v3036 = vld [vmem:[%s19 + $0xf8] sm:$0xff]
      %v3037 = vld [vmem:[%s21] sm:$0x3]
      %v3070 = vunpack.c.l.b16 %v3005
      %v3071 = vunpack.c.h.b16 %v3005
      %v3072 = vunpack.c.l.b16 %v3006
      %v3073 = vunpack.c.h.b16 %v3006
      %v3074 = vunpack.c.l.b16 %v3007
      %v3075 = vunpack.c.h.b16 %v3007
      %v3076 = vunpack.c.l.b16 %v3008
      %v3077 = vunpack.c.h.b16 %v3008
      %v3078 = vunpack.c.l.b16 %v3009
      %v3079 = vunpack.c.h.b16 %v3009
      %v3080 = vunpack.c.l.b16 %v3010
      %v3081 = vunpack.c.h.b16 %v3010
      %v3082 = vunpack.c.l.b16 %v3011
      %v3083 = vunpack.c.h.b16 %v3011
      %v3084 = vunpack.c.l.b16 %v3012
      %v3085 = vunpack.c.h.b16 %v3012
      %v3086 = vunpack.c.l.b16 %v3013
      %v3087 = vunpack.c.h.b16 %v3013
      %v3088 = vunpack.c.l.b16 %v3014
      %v3089 = vunpack.c.h.b16 %v3014
      %v3090 = vunpack.c.l.b16 %v3015
      %v3091 = vunpack.c.h.b16 %v3015
      %v3092 = vunpack.c.l.b16 %v3016
      %v3093 = vunpack.c.h.b16 %v3016
      %v3094 = vunpack.c.l.b16 %v3017
      %v3095 = vunpack.c.h.b16 %v3017
      %v3096 = vunpack.c.l.b16 %v3018
      %v3097 = vunpack.c.h.b16 %v3018
      %v3098 = vunpack.c.l.b16 %v3019
      %v3099 = vunpack.c.h.b16 %v3019
      %v3100 = vunpack.c.l.b16 %v3020
      %v3101 = vunpack.c.h.b16 %v3020
      %v3102 = vunpack.c.l.b16 %v3021
      %v3103 = vunpack.c.h.b16 %v3021
      %v3104 = vunpack.c.l.b16 %v3022
      %v3105 = vunpack.c.h.b16 %v3022
      %v3106 = vunpack.c.l.b16 %v3023
      %v3107 = vunpack.c.h.b16 %v3023
      %v3108 = vunpack.c.l.b16 %v3024
      %v3109 = vunpack.c.h.b16 %v3024
      %v3110 = vunpack.c.l.b16 %v3025
      %v3111 = vunpack.c.h.b16 %v3025
      %v3112 = vunpack.c.l.b16 %v3026
      %v3113 = vunpack.c.h.b16 %v3026
      %v3114 = vunpack.c.l.b16 %v3027
      %v3115 = vunpack.c.h.b16 %v3027
      %v3116 = vunpack.c.l.b16 %v3028
      %v3117 = vunpack.c.h.b16 %v3028
      %v3118 = vunpack.c.l.b16 %v3029
      %v3119 = vunpack.c.h.b16 %v3029
      %v3120 = vunpack.c.l.b16 %v3030
      %v3121 = vunpack.c.h.b16 %v3030
      %v3122 = vunpack.c.l.b16 %v3031
      %v3123 = vunpack.c.h.b16 %v3031
      %v3124 = vunpack.c.l.b16 %v3032
      %v3125 = vunpack.c.h.b16 %v3032
      %v3126 = vunpack.c.l.b16 %v3033
      %v3127 = vunpack.c.h.b16 %v3033
      %v3128 = vunpack.c.l.b16 %v3034
      %v3129 = vunpack.c.h.b16 %v3034
      %v3130 = vunpack.c.l.b16 %v3035
      %v3131 = vunpack.c.h.b16 %v3035
      %v3132 = vunpack.c.l.b16 %v3036
      %v3133 = vunpack.c.h.b16 %v3036
      %v3134 = vpack.c.b16 %v3072, %v3070
      %v3135 = vpack.c.b16 %v3073, %v3071
      %v3136 = vpack.c.b16 %v3076, %v3074
      %v3137 = vpack.c.b16 %v3077, %v3075
      %v3138 = vpack.c.b16 %v3080, %v3078
      %v3139 = vpack.c.b16 %v3081, %v3079
      %v3140 = vpack.c.b16 %v3084, %v3082
      %v3141 = vpack.c.b16 %v3085, %v3083
      %v3142 = vpack.c.b16 %v3088, %v3086
      %v3143 = vpack.c.b16 %v3089, %v3087
      %v3144 = vpack.c.b16 %v3092, %v3090
      %v3145 = vpack.c.b16 %v3093, %v3091
      %v3146 = vpack.c.b16 %v3096, %v3094
      %v3147 = vpack.c.b16 %v3097, %v3095
      %v3148 = vpack.c.b16 %v3100, %v3098
      %v3149 = vpack.c.b16 %v3101, %v3099
      %v3150 = vpack.c.b16 %v3104, %v3102
      %v3151 = vpack.c.b16 %v3105, %v3103
      %v3152 = vpack.c.b16 %v3108, %v3106
      %v3153 = vpack.c.b16 %v3109, %v3107
      %v3154 = vpack.c.b16 %v3112, %v3110
      %v3155 = vpack.c.b16 %v3113, %v3111
      %v3156 = vpack.c.b16 %v3116, %v3114
      %v3157 = vpack.c.b16 %v3117, %v3115
      %v3158 = vpack.c.b16 %v3120, %v3118
      %v3159 = vpack.c.b16 %v3121, %v3119
      %v3160 = vpack.c.b16 %v3124, %v3122
      %v3161 = vpack.c.b16 %v3125, %v3123
      %v3162 = vpack.c.b16 %v3128, %v3126
      %v3163 = vpack.c.b16 %v3129, %v3127
      %v3164 = vpack.c.b16 %v3132, %v3130
      %v3165 = vpack.c.b16 %v3133, %v3131
      %v3199 = vlaneseq
      %v3200 = vshrl.u32 %v3199, 7
      %v3201 = vsub.s32 0, %v3200
      %v3202 = vrot.slane %v3037, %v3201
      %v3203 = vlaneseq
      %v3204 = vshrl.u32 %v3203, 7
      %v3205 = vsub.s32 1, %v3204
      %v3206 = vrot.slane %v3037, %v3205
      %3209 = vmatprep.subr.bf16.mxu0 %v3135
      %3210 = vmatpush1.bf16.msra.mxu0 %v3134
      %3211 = vmatprep.subr.bf16.mxu0 %v3137
      %3212 = vmatpush1.bf16.msra.mxu0 %v3136
      %3213 = vmatprep.subr.bf16.mxu0 %v3139
      %3214 = vmatpush1.bf16.msra.mxu0 %v3138
      %3215 = vmatprep.subr.bf16.mxu0 %v3141
      %3216 = vmatpush1.bf16.msra.mxu0 %v3140
      %3217 = vmatprep.subr.bf16.mxu0 %v3143
      %3218 = vmatpush1.bf16.msra.mxu0 %v3142
      %3219 = vmatprep.subr.bf16.mxu0 %v3145
      %3220 = vmatpush1.bf16.msra.mxu0 %v3144
      %3221 = vmatprep.subr.bf16.mxu0 %v3147
      %3222 = vmatpush1.bf16.msra.mxu0 %v3146
      %3223 = vmatprep.subr.bf16.mxu0 %v3149
      %3224 = vmatpush1.bf16.msra.mxu0 %v3148
      %3225 = vmatprep.subr.bf16.mxu0 %v3151
      %3226 = vmatpush1.bf16.msra.mxu0 %v3150
      %3227 = vmatprep.subr.bf16.mxu0 %v3153
      %3228 = vmatpush1.bf16.msra.mxu0 %v3152
      %3229 = vmatprep.subr.bf16.mxu0 %v3155
      %3230 = vmatpush1.bf16.msra.mxu0 %v3154
      %3231 = vmatprep.subr.bf16.mxu0 %v3157
      %3232 = vmatpush1.bf16.msra.mxu0 %v3156
      %3233 = vmatprep.subr.bf16.mxu0 %v3159
      %3234 = vmatpush1.bf16.msra.mxu0 %v3158
      %3235 = vmatprep.subr.bf16.mxu0 %v3161
      %3236 = vmatpush1.bf16.msra.mxu0 %v3160
      %3237 = vmatprep.subr.bf16.mxu0 %v3163
      %3238 = vmatpush1.bf16.msra.mxu0 %v3162
      %3239 = vmatprep.subr.bf16.mxu0 %v3165
      %3240 = vmatpush1.bf16.msra.mxu0 %v3164
      %3241 = vmatprep.mubr.bf16.mxu0 %v3004
      %3242 = vmatmul.mubr.bf16.gmra.mrb[0].mxu0 %v3003
      %v3243 = vpop.f32.mrb[0].mxu0
      %v3244 = vadd.f32 %v3202, %v3243
      %v3245 = vpop.f32.mrb[0].mxu0
      %v3246 = vadd.f32 %v3206, %v3245
      %v3247 = vpop.f32.mrb[0].mxu0
      %v3248 = vpop.f32.mrb[0].mxu0
      %3249 = vdwg.mxu0
      %v3252 = vcombine.low %v3244, %v3246
      %v3254 = vunpack.c.l.s4 1966171168
      %v3255 = vunpack.c.0.s8 %v3254
      %v3256 = vlaneseq
      %v3257 = vshrl.u32 %v3256, 7
      %v3258 = vsub.s32 %v3255, %v3257
      %v3259 = vrot.slane %v3252, %v3258
      %v3261 = vunpack.c.l.s4 1966171168
      %v3262 = vunpack.c.0.s8 %v3261
      %v3263 = vlaneseq
      %v3264 = vshrl.u32 %v3263, 7
      %v3265 = vsub.s32 %v3262, %v3264
      %v3266 = vrot.slane %v3259, %v3265
      %v3268 = vlaneseq
      %vm3269 = vcmp.ge.s32.totalorder %v3268, 0
      %vm3270 = vcmp.lt.s32.totalorder %v3268, 256
      %vm3271 = vmand %vm3269, %vm3270
      %3272 = vst.msk [vmem:[%s972] sm:$0x3] %vm3271, %v3266
      %v3273 = vld [vmem:[%s960] sm:$0x1]
      %v3274 = vpack.c.bf16 %v3273, %v3273
      %v3275 = vld [vmem:[%s23] sm:$0xf]
      %v3276 = vld [vmem:[%s23 + $0x4] sm:$0xf]
      %v3277 = vld [vmem:[%s23 + $0x8] sm:$0xf]
      %v3278 = vld [vmem:[%s23 + $0xc] sm:$0xf]
      %v3279 = vld [vmem:[%s23 + $0x10] sm:$0xf]
      %v3280 = vld [vmem:[%s23 + $0x14] sm:$0xf]
      %v3281 = vld [vmem:[%s23 + $0x18] sm:$0xf]
      %v3282 = vld [vmem:[%s23 + $0x1c] sm:$0xf]
      %v3283 = vld [vmem:[%s23 + $0x20] sm:$0xf]
      %v3284 = vld [vmem:[%s23 + $0x24] sm:$0xf]
      %v3285 = vld [vmem:[%s23 + $0x28] sm:$0xf]
      %v3286 = vld [vmem:[%s23 + $0x2c] sm:$0xf]
      %v3287 = vld [vmem:[%s23 + $0x30] sm:$0xf]
      %v3288 = vld [vmem:[%s23 + $0x34] sm:$0xf]
      %v3289 = vld [vmem:[%s23 + $0x38] sm:$0xf]
      %v3290 = vld [vmem:[%s23 + $0x3c] sm:$0xf]
      %v3291 = vld [vmem:[%s25] sm:$0x1]
      %v3308 = vunpack.c.l.b16 %v3275
      %v3309 = vunpack.c.l.b16 %v3276
      %v3310 = vunpack.c.l.b16 %v3277
      %v3311 = vunpack.c.l.b16 %v3278
      %v3312 = vunpack.c.l.b16 %v3279
      %v3313 = vunpack.c.l.b16 %v3280
      %v3314 = vunpack.c.l.b16 %v3281
      %v3315 = vunpack.c.l.b16 %v3282
      %v3316 = vunpack.c.l.b16 %v3283
      %v3317 = vunpack.c.l.b16 %v3284
      %v3318 = vunpack.c.l.b16 %v3285
      %v3319 = vunpack.c.l.b16 %v3286
      %v3320 = vunpack.c.l.b16 %v3287
      %v3321 = vunpack.c.l.b16 %v3288
      %v3322 = vunpack.c.l.b16 %v3289
      %v3323 = vunpack.c.l.b16 %v3290
      %v3324 = vpack.c.b16 %v3309, %v3308
      %v3325 = vpack.c.b16 %v3311, %v3310
      %v3326 = vpack.c.b16 %v3313, %v3312
      %v3327 = vpack.c.b16 %v3315, %v3314
      %v3328 = vpack.c.b16 %v3317, %v3316
      %v3329 = vpack.c.b16 %v3319, %v3318
      %v3330 = vpack.c.b16 %v3321, %v3320
      %v3331 = vpack.c.b16 %v3323, %v3322
      %3340 = vmatprep.subr.bf16.mxu0 0
      %3341 = vmatpush1.bf16.msra.mxu0 %v3324
      %3342 = vmatprep.subr.bf16.mxu0 0
      %3343 = vmatpush1.bf16.msra.mxu0 %v3325
      %3344 = vmatprep.subr.bf16.mxu0 0
      %3345 = vmatpush1.bf16.msra.mxu0 %v3326
      %3346 = vmatprep.subr.bf16.mxu0 0
      %3347 = vmatpush1.bf16.msra.mxu0 %v3327
      %3348 = vmatprep.subr.bf16.mxu0 0
      %3349 = vmatpush1.bf16.msra.mxu0 %v3328
      %3350 = vmatprep.subr.bf16.mxu0 0
      %3351 = vmatpush1.bf16.msra.mxu0 %v3329
      %3352 = vmatprep.subr.bf16.mxu0 0
      %3353 = vmatpush1.bf16.msra.mxu0 %v3330
      %3354 = vmatprep.subr.bf16.mxu0 0
      %3355 = vmatpush1.bf16.msra.mxu0 %v3331
      %3356 = vmatprep.subr.bf16.mxu0 0
      %3357 = vmatpush1.bf16.msra.mxu0 0
      %3358 = vmatprep.subr.bf16.mxu0 0
      %3359 = vmatpush1.bf16.msra.mxu0 0
      %3360 = vmatprep.subr.bf16.mxu0 0
      %3361 = vmatpush1.bf16.msra.mxu0 0
      %3362 = vmatprep.subr.bf16.mxu0 0
      %3363 = vmatpush1.bf16.msra.mxu0 0
      %3364 = vmatprep.subr.bf16.mxu0 0
      %3365 = vmatpush1.bf16.msra.mxu0 0
      %3366 = vmatprep.subr.bf16.mxu0 0
      %3367 = vmatpush1.bf16.msra.mxu0 0
      %3368 = vmatprep.subr.bf16.mxu0 0
      %3369 = vmatpush1.bf16.msra.mxu0 0
      %3370 = vmatprep.subr.bf16.mxu0 0
      %3371 = vmatpush1.bf16.msra.mxu0 0
      %3372 = vmatprep.mubr.bf16.mxu0 0
      %3373 = vmatmul.mubr.bf16.gmra.mrb[0].mxu0 %v3274
      %v3374 = vpop.f32.mrb[0].mxu0
      %v3375 = vadd.f32 %v3291, %v3374
      %v3376 = vpop.f32.mrb[0].mxu0
      %v3377 = vpop.f32.mrb[0].mxu0
      %v3378 = vpop.f32.mrb[0].mxu0
      %3379 = vdwg.mxu0
      %v3380 = vlaneseq
      %v3381 = vshrl.u32 %v3380, 7
      %v3382 = vsub.s32 0, %v3381
      %v3383 = vrot.slane %v3375, %v3382
      %v3384 = vadd.f32 %v2982, %v3383
      %v3385 = vadd.f32 %v2984, %v3383
      %v3386 = vpack.c.bf16 %v3385, %v3384
      %v3387 = vld [vmem:[%s27] sm:$0xff]
      %v3388 = vld [vmem:[%s27 + $0x8] sm:$0xff]
      %v3389 = vld [vmem:[%s27 + $0x10] sm:$0xff]
      %v3390 = vld [vmem:[%s27 + $0x18] sm:$0xff]
      %v3391 = vld [vmem:[%s27 + $0x20] sm:$0xff]
      %v3392 = vld [vmem:[%s27 + $0x28] sm:$0xff]
      %v3393 = vld [vmem:[%s27 + $0x30] sm:$0xff]
      %v3394 = vld [vmem:[%s27 + $0x38] sm:$0xff]
      %v3395 = vld [vmem:[%s27 + $0x40] sm:$0xff]
      %v3396 = vld [vmem:[%s27 + $0x48] sm:$0xff]
      %v3397 = vld [vmem:[%s27 + $0x50] sm:$0xff]
      %v3398 = vld [vmem:[%s27 + $0x58] sm:$0xff]
      %v3399 = vld [vmem:[%s27 + $0x60] sm:$0xff]
      %v3400 = vld [vmem:[%s27 + $0x68] sm:$0xff]
      %v3401 = vld [vmem:[%s27 + $0x70] sm:$0xff]
      %v3402 = vld [vmem:[%s27 + $0x78] sm:$0xff]
      %v3403 = vld [vmem:[%s27 + $0x80] sm:$0xff]
      %v3404 = vld [vmem:[%s27 + $0x88] sm:$0xff]
      %v3405 = vld [vmem:[%s27 + $0x90] sm:$0xff]
      %v3406 = vld [vmem:[%s27 + $0x98] sm:$0xff]
      %v3407 = vld [vmem:[%s27 + $0xa0] sm:$0xff]
      %v3408 = vld [vmem:[%s27 + $0xa8] sm:$0xff]
      %v3409 = vld [vmem:[%s27 + $0xb0] sm:$0xff]
      %v3410 = vld [vmem:[%s27 + $0xb8] sm:$0xff]
      %v3411 = vld [vmem:[%s27 + $0xc0] sm:$0xff]
      %v3412 = vld [vmem:[%s27 + $0xc8] sm:$0xff]
      %v3413 = vld [vmem:[%s27 + $0xd0] sm:$0xff]
      %v3414 = vld [vmem:[%s27 + $0xd8] sm:$0xff]
      %v3415 = vld [vmem:[%s27 + $0xe0] sm:$0xff]
      %v3416 = vld [vmem:[%s27 + $0xe8] sm:$0xff]
      %v3417 = vld [vmem:[%s27 + $0xf0] sm:$0xff]
      %v3418 = vld [vmem:[%s27 + $0xf8] sm:$0xff]
      %v3419 = vld [vmem:[%s29] sm:$0xf]
      %v3421 = vlaneseq
      %v3422 = vshrl.u32 %v3421, 7
      %v3423 = vsub.s32 0, %v3422
      %v3424 = vrot.slane %v3419, %v3423
      %v3425 = vlaneseq
      %v3426 = vshrl.u32 %v3425, 7
      %v3427 = vsub.s32 1, %v3426
      %v3428 = vrot.slane %v3419, %v3427
      %v3429 = vlaneseq
      %v3430 = vshrl.u32 %v3429, 7
      %v3431 = vsub.s32 2, %v3430
      %v3432 = vrot.slane %v3419, %v3431
      %v3433 = vlaneseq
      %v3434 = vshrl.u32 %v3433, 7
      %v3435 = vsub.s32 3, %v3434
      %v3436 = vrot.slane %v3419, %v3435
      %v3473 = vunpack.c.l.b16 %v3387
      %v3474 = vunpack.c.h.b16 %v3387
      %v3475 = vunpack.c.l.b16 %v3388
      %v3476 = vunpack.c.h.b16 %v3388
      %v3477 = vunpack.c.l.b16 %v3389
      %v3478 = vunpack.c.h.b16 %v3389
      %v3479 = vunpack.c.l.b16 %v3390
      %v3480 = vunpack.c.h.b16 %v3390
      %v3481 = vunpack.c.l.b16 %v3391
      %v3482 = vunpack.c.h.b16 %v3391
      %v3483 = vunpack.c.l.b16 %v3392
      %v3484 = vunpack.c.h.b16 %v3392
      %v3485 = vunpack.c.l.b16 %v3393
      %v3486 = vunpack.c.h.b16 %v3393
      %v3487 = vunpack.c.l.b16 %v3394
      %v3488 = vunpack.c.h.b16 %v3394
      %v3489 = vunpack.c.l.b16 %v3395
      %v3490 = vunpack.c.h.b16 %v3395
      %v3491 = vunpack.c.l.b16 %v3396
      %v3492 = vunpack.c.h.b16 %v3396
      %v3493 = vunpack.c.l.b16 %v3397
      %v3494 = vunpack.c.h.b16 %v3397
      %v3495 = vunpack.c.l.b16 %v3398
      %v3496 = vunpack.c.h.b16 %v3398
      %v3497 = vunpack.c.l.b16 %v3399
      %v3498 = vunpack.c.h.b16 %v3399
      %v3499 = vunpack.c.l.b16 %v3400
      %v3500 = vunpack.c.h.b16 %v3400
      %v3501 = vunpack.c.l.b16 %v3401
      %v3502 = vunpack.c.h.b16 %v3401
      %v3503 = vunpack.c.l.b16 %v3402
      %v3504 = vunpack.c.h.b16 %v3402
      %v3505 = vunpack.c.l.b16 %v3403
      %v3506 = vunpack.c.h.b16 %v3403
      %v3507 = vunpack.c.l.b16 %v3404
      %v3508 = vunpack.c.h.b16 %v3404
      %v3509 = vunpack.c.l.b16 %v3405
      %v3510 = vunpack.c.h.b16 %v3405
      %v3511 = vunpack.c.l.b16 %v3406
      %v3512 = vunpack.c.h.b16 %v3406
      %v3513 = vunpack.c.l.b16 %v3407
      %v3514 = vunpack.c.h.b16 %v3407
      %v3515 = vunpack.c.l.b16 %v3408
      %v3516 = vunpack.c.h.b16 %v3408
      %v3517 = vunpack.c.l.b16 %v3409
      %v3518 = vunpack.c.h.b16 %v3409
      %v3519 = vunpack.c.l.b16 %v3410
      %v3520 = vunpack.c.h.b16 %v3410
      %v3521 = vunpack.c.l.b16 %v3411
      %v3522 = vunpack.c.h.b16 %v3411
      %v3523 = vunpack.c.l.b16 %v3412
      %v3524 = vunpack.c.h.b16 %v3412
      %v3525 = vunpack.c.l.b16 %v3413
      %v3526 = vunpack.c.h.b16 %v3413
      %v3527 = vunpack.c.l.b16 %v3414
      %v3528 = vunpack.c.h.b16 %v3414
      %v3529 = vunpack.c.l.b16 %v3415
      %v3530 = vunpack.c.h.b16 %v3415
      %v3531 = vunpack.c.l.b16 %v3416
      %v3532 = vunpack.c.h.b16 %v3416
      %v3533 = vunpack.c.l.b16 %v3417
      %v3534 = vunpack.c.h.b16 %v3417
      %v3535 = vunpack.c.l.b16 %v3418
      %v3536 = vunpack.c.h.b16 %v3418
      %v3537 = vpack.c.b16 %v3477, %v3473
      %v3538 = vpack.c.b16 %v3478, %v3474
      %v3539 = vpack.c.b16 %v3479, %v3475
      %v3540 = vpack.c.b16 %v3480, %v3476
      %v3541 = vpack.c.b16 %v3485, %v3481
      %v3542 = vpack.c.b16 %v3486, %v3482
      %v3543 = vpack.c.b16 %v3487, %v3483
      %v3544 = vpack.c.b16 %v3488, %v3484
      %v3545 = vpack.c.b16 %v3493, %v3489
      %v3546 = vpack.c.b16 %v3494, %v3490
      %v3547 = vpack.c.b16 %v3495, %v3491
      %v3548 = vpack.c.b16 %v3496, %v3492
      %v3549 = vpack.c.b16 %v3501, %v3497
      %v3550 = vpack.c.b16 %v3502, %v3498
      %v3551 = vpack.c.b16 %v3503, %v3499
      %v3552 = vpack.c.b16 %v3504, %v3500
      %v3553 = vpack.c.b16 %v3509, %v3505
      %v3554 = vpack.c.b16 %v3510, %v3506
      %v3555 = vpack.c.b16 %v3511, %v3507
      %v3556 = vpack.c.b16 %v3512, %v3508
      %v3557 = vpack.c.b16 %v3517, %v3513
      %v3558 = vpack.c.b16 %v3518, %v3514
      %v3559 = vpack.c.b16 %v3519, %v3515
      %v3560 = vpack.c.b16 %v3520, %v3516
      %v3561 = vpack.c.b16 %v3525, %v3521
      %v3562 = vpack.c.b16 %v3526, %v3522
      %v3563 = vpack.c.b16 %v3527, %v3523
      %v3564 = vpack.c.b16 %v3528, %v3524
      %v3565 = vpack.c.b16 %v3533, %v3529
      %v3566 = vpack.c.b16 %v3534, %v3530
      %v3567 = vpack.c.b16 %v3535, %v3531
      %v3568 = vpack.c.b16 %v3536, %v3532
      %3601 = vmatprep.subr.bf16.mxu0 %v3538
      %3602 = vmatpush1.bf16.msra.mxu0 %v3537
      %3603 = vmatprep.subr.bf16.mxu0 %v3542
      %3604 = vmatpush1.bf16.msra.mxu0 %v3541
      %3605 = vmatprep.subr.bf16.mxu0 %v3546
      %3606 = vmatpush1.bf16.msra.mxu0 %v3545
      %3607 = vmatprep.subr.bf16.mxu0 %v3550
      %3608 = vmatpush1.bf16.msra.mxu0 %v3549
      %3609 = vmatprep.subr.bf16.mxu0 %v3554
      %3610 = vmatpush1.bf16.msra.mxu0 %v3553
      %3611 = vmatprep.subr.bf16.mxu0 %v3558
      %3612 = vmatpush1.bf16.msra.mxu0 %v3557
      %3613 = vmatprep.subr.bf16.mxu0 %v3562
      %3614 = vmatpush1.bf16.msra.mxu0 %v3561
      %3615 = vmatprep.subr.bf16.mxu0 %v3566
      %3616 = vmatpush1.bf16.msra.mxu0 %v3565
      %3617 = vmatprep.subr.bf16.mxu0 0
      %3618 = vmatpush1.bf16.msra.mxu0 0
      %3619 = vmatprep.subr.bf16.mxu0 0
      %3620 = vmatpush1.bf16.msra.mxu0 0
      %3621 = vmatprep.subr.bf16.mxu0 0
      %3622 = vmatpush1.bf16.msra.mxu0 0
      %3623 = vmatprep.subr.bf16.mxu0 0
      %3624 = vmatpush1.bf16.msra.mxu0 0
      %3625 = vmatprep.subr.bf16.mxu0 0
      %3626 = vmatpush1.bf16.msra.mxu0 0
      %3627 = vmatprep.subr.bf16.mxu0 0
      %3628 = vmatpush1.bf16.msra.mxu0 0
      %3629 = vmatprep.subr.bf16.mxu0 0
      %3630 = vmatpush1.bf16.msra.mxu0 0
      %3631 = vmatprep.subr.bf16.mxu0 0
      %3632 = vmatpush1.bf16.msra.mxu0 0
      %3633 = vmatprep.mubr.bf16.mxu0 0
      %3634 = vmatmul.mubr.bf16.gmra.mrb[0].mxu0 %v3386
      %v3635 = vpop.f32.mrb[0].mxu0
      %v3636 = vadd.f32 %v3424, %v3635
      %v3637 = vpop.f32.mrb[0].mxu0
      %v3638 = vadd.f32 %v3428, %v3637
      %v3639 = vpop.f32.mrb[0].mxu0
      %v3640 = vadd.f32 %v3424, %v3639
      %v3641 = vpop.f32.mrb[0].mxu0
      %v3642 = vadd.f32 %v3428, %v3641
      %3643 = vdwg.mxu0
      %3644 = vmatprep.subr.bf16.mxu0 %v3540
      %3645 = vmatpush1.bf16.msra.mxu0 %v3539
      %3646 = vmatprep.subr.bf16.mxu0 %v3544
      %3647 = vmatpush1.bf16.msra.mxu0 %v3543
      %3648 = vmatprep.subr.bf16.mxu0 %v3548
      %3649 = vmatpush1.bf16.msra.mxu0 %v3547
      %3650 = vmatprep.subr.bf16.mxu0 %v3552
      %3651 = vmatpush1.bf16.msra.mxu0 %v3551
      %3652 = vmatprep.subr.bf16.mxu0 %v3556
      %3653 = vmatpush1.bf16.msra.mxu0 %v3555
      %3654 = vmatprep.subr.bf16.mxu0 %v3560
      %3655 = vmatpush1.bf16.msra.mxu0 %v3559
      %3656 = vmatprep.subr.bf16.mxu0 %v3564
      %3657 = vmatpush1.bf16.msra.mxu0 %v3563
      %3658 = vmatprep.subr.bf16.mxu0 %v3568
      %3659 = vmatpush1.bf16.msra.mxu0 %v3567
      %3660 = vmatprep.subr.bf16.mxu0 0
      %3661 = vmatpush1.bf16.msra.mxu0 0
      %3662 = vmatprep.subr.bf16.mxu0 0
      %3663 = vmatpush1.bf16.msra.mxu0 0
      %3664 = vmatprep.subr.bf16.mxu0 0
      %3665 = vmatpush1.bf16.msra.mxu0 0
      %3666 = vmatprep.subr.bf16.mxu0 0
      %3667 = vmatpush1.bf16.msra.mxu0 0
      %3668 = vmatprep.subr.bf16.mxu0 0
      %3669 = vmatpush1.bf16.msra.mxu0 0
      %3670 = vmatprep.subr.bf16.mxu0 0
      %3671 = vmatpush1.bf16.msra.mxu0 0
      %3672 = vmatprep.subr.bf16.mxu0 0
      %3673 = vmatpush1.bf16.msra.mxu0 0
      %3674 = vmatprep.subr.bf16.mxu0 0
      %3675 = vmatpush1.bf16.msra.mxu0 0
      %3676 = vmatprep.mubr.bf16.mxu0 0
      %3677 = vmatmul.mubr.bf16.gmra.mrb[0].mxu0 %v3386
      %v3678 = vpop.f32.mrb[0].mxu0
      %v3679 = vadd.f32 %v3432, %v3678
      %v3680 = vpop.f32.mrb[0].mxu0
      %v3681 = vadd.f32 %v3436, %v3680
      %v3682 = vpop.f32.mrb[0].mxu0
      %v3683 = vadd.f32 %v3432, %v3682
      %v3684 = vpop.f32.mrb[0].mxu0
      %v3685 = vadd.f32 %v3436, %v3684
      %3686 = vdwg.mxu0
      %3687 = vxpose.xlu0.b32.start [1/16] %v3636, 128
      %3688 = vxpose.xlu0.b32.cont [2/16] %v3640, 128
      %3689 = vxpose.xlu0.b32.cont [3/16] 0.0, 128
      %3690 = vxpose.xlu0.b32.cont [4/16] 0.0, 128
      %3691 = vxpose.xlu0.b32.cont [5/16] 0.0, 128
      %3692 = vxpose.xlu0.b32.cont [6/16] 0.0, 128
      %3693 = vxpose.xlu0.b32.cont [7/16] 0.0, 128
      %3694 = vxpose.xlu0.b32.cont [8/16] 0.0, 128
      %3695 = vxpose.xlu0.b32.cont [9/16] 0.0, 128
      %3696 = vxpose.xlu0.b32.cont [10/16] 0.0, 128
      %3697 = vxpose.xlu0.b32.cont [11/16] 0.0, 128
      %3698 = vxpose.xlu0.b32.cont [12/16] 0.0, 128
      %3699 = vxpose.xlu0.b32.cont [13/16] 0.0, 128
      %3700 = vxpose.xlu0.b32.cont [14/16] 0.0, 128
      %3701 = vxpose.xlu0.b32.cont [15/16] 0.0, 128
      %3702 = vxpose.xlu0.b32.end [16/16] 0.0, 128
      %v3703 = vpop.trf.xlu0
      %v3704 = vpop.trf.xlu0
      %v3705 = vpop.trf.xlu0
      %v3706 = vpop.trf.xlu0
      %v3707 = vpop.trf.xlu0
      %v3708 = vpop.trf.xlu0
      %v3709 = vpop.trf.xlu0
      %v3710 = vpop.trf.xlu0
      %v3711 = vpop.trf.xlu0
      %v3712 = vpop.trf.xlu0
      %v3713 = vpop.trf.xlu0
      %v3714 = vpop.trf.xlu0
      %v3715 = vpop.trf.xlu0
      %v3716 = vpop.trf.xlu0
      %v3717 = vpop.trf.xlu0
      %v3718 = vpop.trf.xlu0
      %3719 = vxpose.xlu0.b32.start [1/16] %v3638, 128
      %3720 = vxpose.xlu0.b32.cont [2/16] %v3642, 128
      %3721 = vxpose.xlu0.b32.cont [3/16] 0.0, 128
      %3722 = vxpose.xlu0.b32.cont [4/16] 0.0, 128
      %3723 = vxpose.xlu0.b32.cont [5/16] 0.0, 128
      %3724 = vxpose.xlu0.b32.cont [6/16] 0.0, 128
      %3725 = vxpose.xlu0.b32.cont [7/16] 0.0, 128
      %3726 = vxpose.xlu0.b32.cont [8/16] 0.0, 128
      %3727 = vxpose.xlu0.b32.cont [9/16] 0.0, 128
      %3728 = vxpose.xlu0.b32.cont [10/16] 0.0, 128
      %3729 = vxpose.xlu0.b32.cont [11/16] 0.0, 128
      %3730 = vxpose.xlu0.b32.cont [12/16] 0.0, 128
      %3731 = vxpose.xlu0.b32.cont [13/16] 0.0, 128
      %3732 = vxpose.xlu0.b32.cont [14/16] 0.0, 128
      %3733 = vxpose.xlu0.b32.cont [15/16] 0.0, 128
      %3734 = vxpose.xlu0.b32.end [16/16] 0.0, 128
      %v3735 = vpop.trf.xlu0
      %v3736 = vpop.trf.xlu0
      %v3737 = vpop.trf.xlu0
      %v3738 = vpop.trf.xlu0
      %v3739 = vpop.trf.xlu0
      %v3740 = vpop.trf.xlu0
      %v3741 = vpop.trf.xlu0
      %v3742 = vpop.trf.xlu0
      %v3743 = vpop.trf.xlu0
      %v3744 = vpop.trf.xlu0
      %v3745 = vpop.trf.xlu0
      %v3746 = vpop.trf.xlu0
      %v3747 = vpop.trf.xlu0
      %v3748 = vpop.trf.xlu0
      %v3749 = vpop.trf.xlu0
      %v3750 = vpop.trf.xlu0
      %v3751 = vpack.c.bf16 %v3704, %v3703
      %v3752 = vpack.c.bf16 %v3706, %v3705
      %v3753 = vpack.c.bf16 %v3708, %v3707
      %v3754 = vpack.c.bf16 %v3710, %v3709
      %v3755 = vpack.c.bf16 %v3712, %v3711
      %v3756 = vpack.c.bf16 %v3714, %v3713
      %v3757 = vpack.c.bf16 %v3716, %v3715
      %v3758 = vpack.c.bf16 %v3718, %v3717
      %v3759 = vpack.c.bf16 %v3736, %v3735
      %v3760 = vpack.c.bf16 %v3738, %v3737
      %v3761 = vpack.c.bf16 %v3740, %v3739
      %v3762 = vpack.c.bf16 %v3742, %v3741
      %v3763 = vpack.c.bf16 %v3744, %v3743
      %v3764 = vpack.c.bf16 %v3746, %v3745
      %v3765 = vpack.c.bf16 %v3748, %v3747
      %v3766 = vpack.c.bf16 %v3750, %v3749
      %v3767 = vpack.c.bf16 %v3683, %v3679
      %v3768 = vpack.c.bf16 %v3685, %v3681
      %v3769 = vld [vmem:[%s964] sm:$0xff]
      %v3770 = vpack.c.bf16 %v3769, %v3769
      %v3771 = vld [vmem:[%s31] sm:$0xff]
      %v3772 = vld [vmem:[%s31 + $0x8] sm:$0xff]
      %v3773 = vld [vmem:[%s31 + $0x10] sm:$0xff]
      %v3774 = vld [vmem:[%s31 + $0x18] sm:$0xff]
      %v3775 = vld [vmem:[%s31 + $0x20] sm:$0xff]
      %v3776 = vld [vmem:[%s31 + $0x28] sm:$0xff]
      %v3777 = vld [vmem:[%s31 + $0x30] sm:$0xff]
      %v3778 = vld [vmem:[%s31 + $0x38] sm:$0xff]
      %v3779 = vld [vmem:[%s31 + $0x40] sm:$0xff]
      %v3780 = vld [vmem:[%s31 + $0x48] sm:$0xff]
      %v3781 = vld [vmem:[%s31 + $0x50] sm:$0xff]
      %v3782 = vld [vmem:[%s31 + $0x58] sm:$0xff]
      %v3783 = vld [vmem:[%s31 + $0x60] sm:$0xff]
      %v3784 = vld [vmem:[%s31 + $0x68] sm:$0xff]
      %v3785 = vld [vmem:[%s31 + $0x70] sm:$0xff]
      %v3786 = vld [vmem:[%s31 + $0x78] sm:$0xff]
      %v3787 = vld [vmem:[%s33] sm:$0x3]
      %v3789 = vlaneseq
      %v3790 = vshrl.u32 %v3789, 7
      %v3791 = vsub.s32 0, %v3790
      %v3792 = vrot.slane %v3787, %v3791
      %v3793 = vlaneseq
      %v3794 = vshrl.u32 %v3793, 7
      %v3795 = vsub.s32 1, %v3794
      %v3796 = vrot.slane %v3787, %v3795
      %v3815 = vunpack.c.l.b16 %v3771
      %v3816 = vunpack.c.h.b16 %v3771
      %v3817 = vunpack.c.l.b16 %v3772
      %v3818 = vunpack.c.h.b16 %v3772
      %v3819 = vunpack.c.l.b16 %v3773
      %v3820 = vunpack.c.h.b16 %v3773
      %v3821 = vunpack.c.l.b16 %v3774
      %v3822 = vunpack.c.h.b16 %v3774
      %v3823 = vunpack.c.l.b16 %v3775
      %v3824 = vunpack.c.h.b16 %v3775
      %v3825 = vunpack.c.l.b16 %v3776
      %v3826 = vunpack.c.h.b16 %v3776
      %v3827 = vunpack.c.l.b16 %v3777
      %v3828 = vunpack.c.h.b16 %v3777
      %v3829 = vunpack.c.l.b16 %v3778
      %v3830 = vunpack.c.h.b16 %v3778
      %v3831 = vunpack.c.l.b16 %v3779
      %v3832 = vunpack.c.h.b16 %v3779
      %v3833 = vunpack.c.l.b16 %v3780
      %v3834 = vunpack.c.h.b16 %v3780
      %v3835 = vunpack.c.l.b16 %v3781
      %v3836 = vunpack.c.h.b16 %v3781
      %v3837 = vunpack.c.l.b16 %v3782
      %v3838 = vunpack.c.h.b16 %v3782
      %v3839 = vunpack.c.l.b16 %v3783
      %v3840 = vunpack.c.h.b16 %v3783
      %v3841 = vunpack.c.l.b16 %v3784
      %v3842 = vunpack.c.h.b16 %v3784
      %v3843 = vunpack.c.l.b16 %v3785
      %v3844 = vunpack.c.h.b16 %v3785
      %v3845 = vunpack.c.l.b16 %v3786
      %v3846 = vunpack.c.h.b16 %v3786
      %v3847 = vpack.c.b16 %v3817, %v3815
      %v3848 = vpack.c.b16 %v3818, %v3816
      %v3849 = vpack.c.b16 %v3821, %v3819
      %v3850 = vpack.c.b16 %v3822, %v3820
      %v3851 = vpack.c.b16 %v3825, %v3823
      %v3852 = vpack.c.b16 %v3826, %v3824
      %v3853 = vpack.c.b16 %v3829, %v3827
      %v3854 = vpack.c.b16 %v3830, %v3828
      %v3855 = vpack.c.b16 %v3833, %v3831
      %v3856 = vpack.c.b16 %v3834, %v3832
      %v3857 = vpack.c.b16 %v3837, %v3835
      %v3858 = vpack.c.b16 %v3838, %v3836
      %v3859 = vpack.c.b16 %v3841, %v3839
      %v3860 = vpack.c.b16 %v3842, %v3840
      %v3861 = vpack.c.b16 %v3845, %v3843
      %v3862 = vpack.c.b16 %v3846, %v3844
      %3879 = vmatprep.subr.bf16.mxu0 %v3848
      %3880 = vmatpush1.bf16.msra.mxu0 %v3847
      %3881 = vmatprep.subr.bf16.mxu0 %v3850
      %3882 = vmatpush1.bf16.msra.mxu0 %v3849
      %3883 = vmatprep.subr.bf16.mxu0 %v3852
      %3884 = vmatpush1.bf16.msra.mxu0 %v3851
      %3885 = vmatprep.subr.bf16.mxu0 %v3854
      %3886 = vmatpush1.bf16.msra.mxu0 %v3853
      %3887 = vmatprep.subr.bf16.mxu0 %v3856
      %3888 = vmatpush1.bf16.msra.mxu0 %v3855
      %3889 = vmatprep.subr.bf16.mxu0 %v3858
      %3890 = vmatpush1.bf16.msra.mxu0 %v3857
      %3891 = vmatprep.subr.bf16.mxu0 %v3860
      %3892 = vmatpush1.bf16.msra.mxu0 %v3859
      %3893 = vmatprep.subr.bf16.mxu0 %v3862
      %3894 = vmatpush1.bf16.msra.mxu0 %v3861
      %3895 = vmatprep.subr.bf16.mxu0 0
      %3896 = vmatpush1.bf16.msra.mxu0 0
      %3897 = vmatprep.subr.bf16.mxu0 0
      %3898 = vmatpush1.bf16.msra.mxu0 0
      %3899 = vmatprep.subr.bf16.mxu0 0
      %3900 = vmatpush1.bf16.msra.mxu0 0
      %3901 = vmatprep.subr.bf16.mxu0 0
      %3902 = vmatpush1.bf16.msra.mxu0 0
      %3903 = vmatprep.subr.bf16.mxu0 0
      %3904 = vmatpush1.bf16.msra.mxu0 0
      %3905 = vmatprep.subr.bf16.mxu0 0
      %3906 = vmatpush1.bf16.msra.mxu0 0
      %3907 = vmatprep.subr.bf16.mxu0 0
      %3908 = vmatpush1.bf16.msra.mxu0 0
      %3909 = vmatprep.subr.bf16.mxu0 0
      %3910 = vmatpush1.bf16.msra.mxu0 0
      %3911 = vmatprep.mubr.bf16.mxu0 0
      %3912 = vmatmul.mubr.bf16.gmra.mrb[0].mxu0 %v3770
      %v3913 = vpop.f32.mrb[0].mxu0
      %v3914 = vadd.f32 %v3792, %v3913
      %v3915 = vpop.f32.mrb[0].mxu0
      %v3916 = vadd.f32 %v3796, %v3915
      %v3917 = vpop.f32.mrb[0].mxu0
      %v3918 = vpop.f32.mrb[0].mxu0
      %3919 = vdwg.mxu0
      %v3920 = vpack.c.bf16 %v3914, %v3914
      %v3921 = vpack.c.bf16 %v3916, %v3916
      %vm3922 = vcmask 523264
      %v3924 = vsel %vm3922, %v3920, 0
      %3926 = vmatprep.subr.bf16.mxu0 0
      %3927 = vmatpush1.bf16.msra.mxu0 %v3751
      %3928 = vmatprep.subr.bf16.mxu0 0
      %3929 = vmatpush1.bf16.msra.mxu0 %v3752
      %3930 = vmatprep.subr.bf16.mxu0 0
      %3931 = vmatpush1.bf16.msra.mxu0 %v3753
      %3932 = vmatprep.subr.bf16.mxu0 0
      %3933 = vmatpush1.bf16.msra.mxu0 %v3754
      %3934 = vmatprep.subr.bf16.mxu0 0
      %3935 = vmatpush1.bf16.msra.mxu0 0
      %3936 = vmatprep.subr.bf16.mxu0 0
      %3937 = vmatpush1.bf16.msra.mxu0 0
      %3938 = vmatprep.subr.bf16.mxu0 0
      %3939 = vmatpush1.bf16.msra.mxu0 0
      %3940 = vmatprep.subr.bf16.mxu0 0
      %3941 = vmatpush1.bf16.msra.mxu0 0
      %3942 = vmatprep.subr.bf16.mxu0 0
      %3943 = vmatpush1.bf16.msra.mxu0 0
      %3944 = vmatprep.subr.bf16.mxu0 0
      %3945 = vmatpush1.bf16.msra.mxu0 0
      %3946 = vmatprep.subr.bf16.mxu0 0
      %3947 = vmatpush1.bf16.msra.mxu0 0
      %3948 = vmatprep.subr.bf16.mxu0 0
      %3949 = vmatpush1.bf16.msra.mxu0 0
      %3950 = vmatprep.subr.bf16.mxu0 0
      %3951 = vmatpush1.bf16.msra.mxu0 0
      %3952 = vmatprep.subr.bf16.mxu0 0
      %3953 = vmatpush1.bf16.msra.mxu0 0
      %3954 = vmatprep.subr.bf16.mxu0 0
      %3955 = vmatpush1.bf16.msra.mxu0 0
      %3956 = vmatprep.subr.bf16.mxu0 0
      %3957 = vmatpush1.bf16.msra.mxu0 0
      %3958 = vmatprep.mubr.bf16.mxu0 0
      %3959 = vmatmul.mubr.bf16.gmra.mrb[0].mxu0 %v3924
      %v3960 = vpop.f32.mrb[0].mxu0
      %v3961 = vadd.f32 0.0, %v3960
      %v3962 = vpop.f32.mrb[0].mxu0
      %v3963 = vpop.f32.mrb[0].mxu0
      %v3964 = vpop.f32.mrb[0].mxu0
      %3965 = vdwg.mxu0
      %v3966 = vsel %vm1003, %v3961, -inf
      %3967 = vmax.xlane.f32.xlu0 %v3966
      %v3968 = vpop.xlane.xlu0 %3967
      %v3969 = vsub.f32 %v3961, %v3968
      %v3970 = vmul.f32 %v3969, 1.442695
      %v3971 = vpow.pop %v3970
      %v3972 = vsel %vm1003, %v3971, 0.0
      %3973 = vadd.xlane.f32.xlu0 %v3972
      %v3974 = vpop.xlane.xlu0 %3973
      %v3975 = vrcp.pop %v3974
      %v3976 = vmul.f32 %v3971, %v3975
      %v3977 = vpack.c.bf16 %v3976, %v3976
      %v3979 = vsel %vm1003, %v3977, 0
      %3981 = vmatprep.subr.bf16.mxu0 0
      %3982 = vmatpush1.bf16.msra.mxu0 %v3767
      %3983 = vmatprep.subr.bf16.mxu0 0
      %3984 = vmatpush1.bf16.msra.mxu0 0
      %3985 = vmatprep.subr.bf16.mxu0 0
      %3986 = vmatpush1.bf16.msra.mxu0 0
      %3987 = vmatprep.subr.bf16.mxu0 0
      %3988 = vmatpush1.bf16.msra.mxu0 0
      %3989 = vmatprep.subr.bf16.mxu0 0
      %3990 = vmatpush1.bf16.msra.mxu0 0
      %3991 = vmatprep.subr.bf16.mxu0 0
      %3992 = vmatpush1.bf16.msra.mxu0 0
      %3993 = vmatprep.subr.bf16.mxu0 0
      %3994 = vmatpush1.bf16.msra.mxu0 0
      %3995 = vmatprep.subr.bf16.mxu0 0
      %3996 = vmatpush1.bf16.msra.mxu0 0
      %3997 = vmatprep.subr.bf16.mxu0 0
      %3998 = vmatpush1.bf16.msra.mxu0 0
      %3999 = vmatprep.subr.bf16.mxu0 0
      %4000 = vmatpush1.bf16.msra.mxu0 0
      %4001 = vmatprep.subr.bf16.mxu0 0
      %4002 = vmatpush1.bf16.msra.mxu0 0
      %4003 = vmatprep.subr.bf16.mxu0 0
      %4004 = vmatpush1.bf16.msra.mxu0 0
      %4005 = vmatprep.subr.bf16.mxu0 0
      %4006 = vmatpush1.bf16.msra.mxu0 0
      %4007 = vmatprep.subr.bf16.mxu0 0
      %4008 = vmatpush1.bf16.msra.mxu0 0
      %4009 = vmatprep.subr.bf16.mxu0 0
      %4010 = vmatpush1.bf16.msra.mxu0 0
      %4011 = vmatprep.subr.bf16.mxu0 0
      %4012 = vmatpush1.bf16.msra.mxu0 0
      %4013 = vmatprep.mubr.bf16.mxu0 0
      %4014 = vmatmul.mubr.bf16.gmra.mrb[0].mxu0 %v3979
      %v4015 = vpop.f32.mrb[0].mxu0
      %v4016 = vadd.f32 0.0, %v4015
      %v4017 = vpop.f32.mrb[0].mxu0
      %v4018 = vpop.f32.mrb[0].mxu0
      %v4019 = vpop.f32.mrb[0].mxu0
      %4020 = vdwg.mxu0
      %v4021 = vpack.c.bf16 %v4016, %v4016
      %4023 = vrot.lane.b32.xlu0 %v3920, 64
      %v4024 = vpop.permute.xlu0 %4023
      %v4026 = vsel %vm3922, %v4024, 0
      %4028 = vmatprep.subr.bf16.mxu0 0
      %4029 = vmatpush1.bf16.msra.mxu0 %v3755
      %4030 = vmatprep.subr.bf16.mxu0 0
      %4031 = vmatpush1.bf16.msra.mxu0 %v3756
      %4032 = vmatprep.subr.bf16.mxu0 0
      %4033 = vmatpush1.bf16.msra.mxu0 %v3757
      %4034 = vmatprep.subr.bf16.mxu0 0
      %4035 = vmatpush1.bf16.msra.mxu0 %v3758
      %4036 = vmatprep.subr.bf16.mxu0 0
      %4037 = vmatpush1.bf16.msra.mxu0 0
      %4038 = vmatprep.subr.bf16.mxu0 0
      %4039 = vmatpush1.bf16.msra.mxu0 0
      %4040 = vmatprep.subr.bf16.mxu0 0
      %4041 = vmatpush1.bf16.msra.mxu0 0
      %4042 = vmatprep.subr.bf16.mxu0 0
      %4043 = vmatpush1.bf16.msra.mxu0 0
      %4044 = vmatprep.subr.bf16.mxu0 0
      %4045 = vmatpush1.bf16.msra.mxu0 0
      %4046 = vmatprep.subr.bf16.mxu0 0
      %4047 = vmatpush1.bf16.msra.mxu0 0
      %4048 = vmatprep.subr.bf16.mxu0 0
      %4049 = vmatpush1.bf16.msra.mxu0 0
      %4050 = vmatprep.subr.bf16.mxu0 0
      %4051 = vmatpush1.bf16.msra.mxu0 0
      %4052 = vmatprep.subr.bf16.mxu0 0
      %4053 = vmatpush1.bf16.msra.mxu0 0
      %4054 = vmatprep.subr.bf16.mxu0 0
      %4055 = vmatpush1.bf16.msra.mxu0 0
      %4056 = vmatprep.subr.bf16.mxu0 0
      %4057 = vmatpush1.bf16.msra.mxu0 0
      %4058 = vmatprep.subr.bf16.mxu0 0
      %4059 = vmatpush1.bf16.msra.mxu0 0
      %4060 = vmatprep.mubr.bf16.mxu0 0
      %4061 = vmatmul.mubr.bf16.gmra.mrb[0].mxu0 %v4026
      %v4062 = vpop.f32.mrb[0].mxu0
      %v4063 = vadd.f32 0.0, %v4062
      %v4064 = vpop.f32.mrb[0].mxu0
      %v4065 = vpop.f32.mrb[0].mxu0
      %v4066 = vpop.f32.mrb[0].mxu0
      %4067 = vdwg.mxu0
      %v4068 = vsel %vm1003, %v4063, -inf
      %4069 = vmax.xlane.f32.xlu0 %v4068
      %v4070 = vpop.xlane.xlu0 %4069
      %v4071 = vsub.f32 %v4063, %v4070
      %v4072 = vmul.f32 %v4071, 1.442695
      %v4073 = vpow.pop %v4072
      %v4074 = vsel %vm1003, %v4073, 0.0
      %4075 = vadd.xlane.f32.xlu0 %v4074
      %v4076 = vpop.xlane.xlu0 %4075
      %v4077 = vrcp.pop %v4076
      %v4078 = vmul.f32 %v4073, %v4077
      %v4079 = vpack.c.bf16 %v4078, %v4078
      %4081 = vrot.lane.b32.xlu0 %v3767, 64
      %v4082 = vpop.permute.xlu0 %4081
      %v4085 = vsel %vm1003, %v4079, 0
      %4087 = vmatprep.subr.bf16.mxu0 0
      %4088 = vmatpush1.bf16.msra.mxu0 %v4082
      %4089 = vmatprep.subr.bf16.mxu0 0
      %4090 = vmatpush1.bf16.msra.mxu0 0
      %4091 = vmatprep.subr.bf16.mxu0 0
      %4092 = vmatpush1.bf16.msra.mxu0 0
      %4093 = vmatprep.subr.bf16.mxu0 0
      %4094 = vmatpush1.bf16.msra.mxu0 0
      %4095 = vmatprep.subr.bf16.mxu0 0
      %4096 = vmatpush1.bf16.msra.mxu0 0
      %4097 = vmatprep.subr.bf16.mxu0 0
      %4098 = vmatpush1.bf16.msra.mxu0 0
      %4099 = vmatprep.subr.bf16.mxu0 0
      %4100 = vmatpush1.bf16.msra.mxu0 0
      %4101 = vmatprep.subr.bf16.mxu0 0
      %4102 = vmatpush1.bf16.msra.mxu0 0
      %4103 = vmatprep.subr.bf16.mxu0 0
      %4104 = vmatpush1.bf16.msra.mxu0 0
      %4105 = vmatprep.subr.bf16.mxu0 0
      %4106 = vmatpush1.bf16.msra.mxu0 0
      %4107 = vmatprep.subr.bf16.mxu0 0
      %4108 = vmatpush1.bf16.msra.mxu0 0
      %4109 = vmatprep.subr.bf16.mxu0 0
      %4110 = vmatpush1.bf16.msra.mxu0 0
      %4111 = vmatprep.subr.bf16.mxu0 0
      %4112 = vmatpush1.bf16.msra.mxu0 0
      %4113 = vmatprep.subr.bf16.mxu0 0
      %4114 = vmatpush1.bf16.msra.mxu0 0
      %4115 = vmatprep.subr.bf16.mxu0 0
      %4116 = vmatpush1.bf16.msra.mxu0 0
      %4117 = vmatprep.subr.bf16.mxu0 0
      %4118 = vmatpush1.bf16.msra.mxu0 0
      %4119 = vmatprep.mubr.bf16.mxu0 0
      %4120 = vmatmul.mubr.bf16.gmra.mrb[0].mxu0 %v4085
      %v4121 = vpop.f32.mrb[0].mxu0
      %v4122 = vadd.f32 0.0, %v4121
      %v4123 = vpop.f32.mrb[0].mxu0
      %v4124 = vpop.f32.mrb[0].mxu0
      %v4125 = vpop.f32.mrb[0].mxu0
      %4126 = vdwg.mxu0
      %v4127 = vpack.c.bf16 %v4122, %v4122
      %v4129 = vsel %vm3922, %v3921, 0
      %4131 = vmatprep.subr.bf16.mxu0 0
      %4132 = vmatpush1.bf16.msra.mxu0 %v3759
      %4133 = vmatprep.subr.bf16.mxu0 0
      %4134 = vmatpush1.bf16.msra.mxu0 %v3760
      %4135 = vmatprep.subr.bf16.mxu0 0
      %4136 = vmatpush1.bf16.msra.mxu0 %v3761
      %4137 = vmatprep.subr.bf16.mxu0 0
      %4138 = vmatpush1.bf16.msra.mxu0 %v3762
      %4139 = vmatprep.subr.bf16.mxu0 0
      %4140 = vmatpush1.bf16.msra.mxu0 0
      %4141 = vmatprep.subr.bf16.mxu0 0
      %4142 = vmatpush1.bf16.msra.mxu0 0
      %4143 = vmatprep.subr.bf16.mxu0 0
      %4144 = vmatpush1.bf16.msra.mxu0 0
      %4145 = vmatprep.subr.bf16.mxu0 0
      %4146 = vmatpush1.bf16.msra.mxu0 0
      %4147 = vmatprep.subr.bf16.mxu0 0
      %4148 = vmatpush1.bf16.msra.mxu0 0
      %4149 = vmatprep.subr.bf16.mxu0 0
      %4150 = vmatpush1.bf16.msra.mxu0 0
      %4151 = vmatprep.subr.bf16.mxu0 0
      %4152 = vmatpush1.bf16.msra.mxu0 0
      %4153 = vmatprep.subr.bf16.mxu0 0
      %4154 = vmatpush1.bf16.msra.mxu0 0
      %4155 = vmatprep.subr.bf16.mxu0 0
      %4156 = vmatpush1.bf16.msra.mxu0 0
      %4157 = vmatprep.subr.bf16.mxu0 0
      %4158 = vmatpush1.bf16.msra.mxu0 0
      %4159 = vmatprep.subr.bf16.mxu0 0
      %4160 = vmatpush1.bf16.msra.mxu0 0
      %4161 = vmatprep.subr.bf16.mxu0 0
      %4162 = vmatpush1.bf16.msra.mxu0 0
      %4163 = vmatprep.mubr.bf16.mxu0 0
      %4164 = vmatmul.mubr.bf16.gmra.mrb[0].mxu0 %v4129
      %v4165 = vpop.f32.mrb[0].mxu0
      %v4166 = vadd.f32 0.0, %v4165
      %v4167 = vpop.f32.mrb[0].mxu0
      %v4168 = vpop.f32.mrb[0].mxu0
      %v4169 = vpop.f32.mrb[0].mxu0
      %4170 = vdwg.mxu0
      %v4171 = vsel %vm1003, %v4166, -inf
      %4172 = vmax.xlane.f32.xlu0 %v4171
      %v4173 = vpop.xlane.xlu0 %4172
      %v4174 = vsub.f32 %v4166, %v4173
      %v4175 = vmul.f32 %v4174, 1.442695
      %v4176 = vpow.pop %v4175
      %v4177 = vsel %vm1003, %v4176, 0.0
      %4178 = vadd.xlane.f32.xlu0 %v4177
      %v4179 = vpop.xlane.xlu0 %4178
      %v4180 = vrcp.pop %v4179
      %v4181 = vmul.f32 %v4176, %v4180
      %v4182 = vpack.c.bf16 %v4181, %v4181
      %v4184 = vsel %vm1003, %v4182, 0
      %4186 = vmatprep.subr.bf16.mxu0 0
      %4187 = vmatpush1.bf16.msra.mxu0 %v3768
      %4188 = vmatprep.subr.bf16.mxu0 0
      %4189 = vmatpush1.bf16.msra.mxu0 0
      %4190 = vmatprep.subr.bf16.mxu0 0
      %4191 = vmatpush1.bf16.msra.mxu0 0
      %4192 = vmatprep.subr.bf16.mxu0 0
      %4193 = vmatpush1.bf16.msra.mxu0 0
      %4194 = vmatprep.subr.bf16.mxu0 0
      %4195 = vmatpush1.bf16.msra.mxu0 0
      %4196 = vmatprep.subr.bf16.mxu0 0
      %4197 = vmatpush1.bf16.msra.mxu0 0
      %4198 = vmatprep.subr.bf16.mxu0 0
      %4199 = vmatpush1.bf16.msra.mxu0 0
      %4200 = vmatprep.subr.bf16.mxu0 0
      %4201 = vmatpush1.bf16.msra.mxu0 0
      %4202 = vmatprep.subr.bf16.mxu0 0
      %4203 = vmatpush1.bf16.msra.mxu0 0
      %4204 = vmatprep.subr.bf16.mxu0 0
      %4205 = vmatpush1.bf16.msra.mxu0 0
      %4206 = vmatprep.subr.bf16.mxu0 0
      %4207 = vmatpush1.bf16.msra.mxu0 0
      %4208 = vmatprep.subr.bf16.mxu0 0
      %4209 = vmatpush1.bf16.msra.mxu0 0
      %4210 = vmatprep.subr.bf16.mxu0 0
      %4211 = vmatpush1.bf16.msra.mxu0 0
      %4212 = vmatprep.subr.bf16.mxu0 0
      %4213 = vmatpush1.bf16.msra.mxu0 0
      %4214 = vmatprep.subr.bf16.mxu0 0
      %4215 = vmatpush1.bf16.msra.mxu0 0
      %4216 = vmatprep.subr.bf16.mxu0 0
      %4217 = vmatpush1.bf16.msra.mxu0 0
      %4218 = vmatprep.mubr.bf16.mxu0 0
      %4219 = vmatmul.mubr.bf16.gmra.mrb[0].mxu0 %v4184
      %v4220 = vpop.f32.mrb[0].mxu0
      %v4221 = vadd.f32 0.0, %v4220
      %v4222 = vpop.f32.mrb[0].mxu0
      %v4223 = vpop.f32.mrb[0].mxu0
      %v4224 = vpop.f32.mrb[0].mxu0
      %4225 = vdwg.mxu0
      %v4226 = vpack.c.bf16 %v4221, %v4221
      %4228 = vrot.lane.b32.xlu0 %v3921, 64
      %v4229 = vpop.permute.xlu0 %4228
      %v4231 = vsel %vm3922, %v4229, 0
      %4233 = vmatprep.subr.bf16.mxu0 0
      %4234 = vmatpush1.bf16.msra.mxu0 %v3763
      %4235 = vmatprep.subr.bf16.mxu0 0
      %4236 = vmatpush1.bf16.msra.mxu0 %v3764
      %4237 = vmatprep.subr.bf16.mxu0 0
      %4238 = vmatpush1.bf16.msra.mxu0 %v3765
      %4239 = vmatprep.subr.bf16.mxu0 0
      %4240 = vmatpush1.bf16.msra.mxu0 %v3766
      %4241 = vmatprep.subr.bf16.mxu0 0
      %4242 = vmatpush1.bf16.msra.mxu0 0
      %4243 = vmatprep.subr.bf16.mxu0 0
      %4244 = vmatpush1.bf16.msra.mxu0 0
      %4245 = vmatprep.subr.bf16.mxu0 0
      %4246 = vmatpush1.bf16.msra.mxu0 0
      %4247 = vmatprep.subr.bf16.mxu0 0
      %4248 = vmatpush1.bf16.msra.mxu0 0
      %4249 = vmatprep.subr.bf16.mxu0 0
      %4250 = vmatpush1.bf16.msra.mxu0 0
      %4251 = vmatprep.subr.bf16.mxu0 0
      %4252 = vmatpush1.bf16.msra.mxu0 0
      %4253 = vmatprep.subr.bf16.mxu0 0
      %4254 = vmatpush1.bf16.msra.mxu0 0
      %4255 = vmatprep.subr.bf16.mxu0 0
      %4256 = vmatpush1.bf16.msra.mxu0 0
      %4257 = vmatprep.subr.bf16.mxu0 0
      %4258 = vmatpush1.bf16.msra.mxu0 0
      %4259 = vmatprep.subr.bf16.mxu0 0
      %4260 = vmatpush1.bf16.msra.mxu0 0
      %4261 = vmatprep.subr.bf16.mxu0 0
      %4262 = vmatpush1.bf16.msra.mxu0 0
      %4263 = vmatprep.subr.bf16.mxu0 0
      %4264 = vmatpush1.bf16.msra.mxu0 0
      %4265 = vmatprep.mubr.bf16.mxu0 0
      %4266 = vmatmul.mubr.bf16.gmra.mrb[0].mxu0 %v4231
      %v4267 = vpop.f32.mrb[0].mxu0
      %v4268 = vadd.f32 0.0, %v4267
      %v4269 = vpop.f32.mrb[0].mxu0
      %v4270 = vpop.f32.mrb[0].mxu0
      %v4271 = vpop.f32.mrb[0].mxu0
      %4272 = vdwg.mxu0
      %v4273 = vsel %vm1003, %v4268, -inf
      %4274 = vmax.xlane.f32.xlu0 %v4273
      %v4275 = vpop.xlane.xlu0 %4274
      %v4276 = vsub.f32 %v4268, %v4275
      %v4277 = vmul.f32 %v4276, 1.442695
      %v4278 = vpow.pop %v4277
      %v4279 = vsel %vm1003, %v4278, 0.0
      %4280 = vadd.xlane.f32.xlu0 %v4279
      %v4281 = vpop.xlane.xlu0 %4280
      %v4282 = vrcp.pop %v4281
      %v4283 = vmul.f32 %v4278, %v4282
      %v4284 = vpack.c.bf16 %v4283, %v4283
      %4286 = vrot.lane.b32.xlu0 %v3768, 64
      %v4287 = vpop.permute.xlu0 %4286
      %v4290 = vsel %vm1003, %v4284, 0
      %4292 = vmatprep.subr.bf16.mxu0 0
      %4293 = vmatpush1.bf16.msra.mxu0 %v4287
      %4294 = vmatprep.subr.bf16.mxu0 0
      %4295 = vmatpush1.bf16.msra.mxu0 0
      %4296 = vmatprep.subr.bf16.mxu0 0
      %4297 = vmatpush1.bf16.msra.mxu0 0
      %4298 = vmatprep.subr.bf16.mxu0 0
      %4299 = vmatpush1.bf16.msra.mxu0 0
      %4300 = vmatprep.subr.bf16.mxu0 0
      %4301 = vmatpush1.bf16.msra.mxu0 0
      %4302 = vmatprep.subr.bf16.mxu0 0
      %4303 = vmatpush1.bf16.msra.mxu0 0
      %4304 = vmatprep.subr.bf16.mxu0 0
      %4305 = vmatpush1.bf16.msra.mxu0 0
      %4306 = vmatprep.subr.bf16.mxu0 0
      %4307 = vmatpush1.bf16.msra.mxu0 0
      %4308 = vmatprep.subr.bf16.mxu0 0
      %4309 = vmatpush1.bf16.msra.mxu0 0
      %4310 = vmatprep.subr.bf16.mxu0 0
      %4311 = vmatpush1.bf16.msra.mxu0 0
      %4312 = vmatprep.subr.bf16.mxu0 0
      %4313 = vmatpush1.bf16.msra.mxu0 0
      %4314 = vmatprep.subr.bf16.mxu0 0
      %4315 = vmatpush1.bf16.msra.mxu0 0
      %4316 = vmatprep.subr.bf16.mxu0 0
      %4317 = vmatpush1.bf16.msra.mxu0 0
      %4318 = vmatprep.subr.bf16.mxu0 0
      %4319 = vmatpush1.bf16.msra.mxu0 0
      %4320 = vmatprep.subr.bf16.mxu0 0
      %4321 = vmatpush1.bf16.msra.mxu0 0
      %4322 = vmatprep.subr.bf16.mxu0 0
      %4323 = vmatpush1.bf16.msra.mxu0 0
      %4324 = vmatprep.mubr.bf16.mxu0 0
      %4325 = vmatmul.mubr.bf16.gmra.mrb[0].mxu0 %v4290
      %v4326 = vpop.f32.mrb[0].mxu0
      %v4327 = vadd.f32 0.0, %v4326
      %v4328 = vpop.f32.mrb[0].mxu0
      %v4329 = vpop.f32.mrb[0].mxu0
      %v4330 = vpop.f32.mrb[0].mxu0
      %4331 = vdwg.mxu0
      %v4332 = vpack.c.bf16 %v4327, %v4327
      %4334 = vrot.lane.b32.xlu0 %v4127, 64
      %v4335 = vpop.permute.xlu0 %4334
      %4337 = vrot.lane.b32.xlu0 %v4332, 64
      %v4338 = vpop.permute.xlu0 %4337
      %v4341 = vsel %vm3922, %v4021, %v4335
      %v4345 = vsel %vm3922, %v4226, %v4338
      %v4347 = vld [vmem:[%s35] sm:$0xf]
      %v4348 = vld [vmem:[%s35 + $0x4] sm:$0xf]
      %v4349 = vld [vmem:[%s35 + $0x8] sm:$0xf]
      %v4350 = vld [vmem:[%s35 + $0xc] sm:$0xf]
      %v4351 = vld [vmem:[%s35 + $0x10] sm:$0xf]
      %v4352 = vld [vmem:[%s35 + $0x14] sm:$0xf]
      %v4353 = vld [vmem:[%s35 + $0x18] sm:$0xf]
      %v4354 = vld [vmem:[%s35 + $0x1c] sm:$0xf]
      %v4355 = vld [vmem:[%s35 + $0x20] sm:$0xf]
      %v4356 = vld [vmem:[%s35 + $0x24] sm:$0xf]
      %v4357 = vld [vmem:[%s35 + $0x28] sm:$0xf]
      %v4358 = vld [vmem:[%s35 + $0x2c] sm:$0xf]
      %v4359 = vld [vmem:[%s35 + $0x30] sm:$0xf]
      %v4360 = vld [vmem:[%s35 + $0x34] sm:$0xf]
      %v4361 = vld [vmem:[%s35 + $0x38] sm:$0xf]
      %v4362 = vld [vmem:[%s35 + $0x3c] sm:$0xf]
      %v4363 = vld [vmem:[%s35 + $0x40] sm:$0xf]
      %v4364 = vld [vmem:[%s35 + $0x44] sm:$0xf]
      %v4365 = vld [vmem:[%s35 + $0x48] sm:$0xf]
      %v4366 = vld [vmem:[%s35 + $0x4c] sm:$0xf]
      %v4367 = vld [vmem:[%s35 + $0x50] sm:$0xf]
      %v4368 = vld [vmem:[%s35 + $0x54] sm:$0xf]
      %v4369 = vld [vmem:[%s35 + $0x58] sm:$0xf]
      %v4370 = vld [vmem:[%s35 + $0x5c] sm:$0xf]
      %v4371 = vld [vmem:[%s35 + $0x60] sm:$0xf]
      %v4372 = vld [vmem:[%s35 + $0x64] sm:$0xf]
      %v4373 = vld [vmem:[%s35 + $0x68] sm:$0xf]
      %v4374 = vld [vmem:[%s35 + $0x6c] sm:$0xf]
      %v4375 = vld [vmem:[%s35 + $0x70] sm:$0xf]
      %v4376 = vld [vmem:[%s35 + $0x74] sm:$0xf]
      %v4377 = vld [vmem:[%s35 + $0x78] sm:$0xf]
      %v4378 = vld [vmem:[%s35 + $0x7c] sm:$0xf]
      %v4379 = vld [vmem:[%s37] sm:$0x1]
      %v4381 = vlaneseq
      %v4382 = vshrl.u32 %v4381, 7
      %v4383 = vsub.s32 0, %v4382
      %v4384 = vrot.slane %v4379, %v4383
      %v4418 = vunpack.c.l.b16 %v4347
      %v4419 = vunpack.c.l.b16 %v4348
      %v4420 = vunpack.c.l.b16 %v4349
      %v4421 = vunpack.c.l.b16 %v4350
      %v4422 = vunpack.c.l.b16 %v4351
      %v4423 = vunpack.c.l.b16 %v4352
      %v4424 = vunpack.c.l.b16 %v4353
      %v4425 = vunpack.c.l.b16 %v4354
      %v4426 = vunpack.c.l.b16 %v4355
      %v4427 = vunpack.c.l.b16 %v4356
      %v4428 = vunpack.c.l.b16 %v4357
      %v4429 = vunpack.c.l.b16 %v4358
      %v4430 = vunpack.c.l.b16 %v4359
      %v4431 = vunpack.c.l.b16 %v4360
      %v4432 = vunpack.c.l.b16 %v4361
      %v4433 = vunpack.c.l.b16 %v4362
      %v4434 = vunpack.c.l.b16 %v4363
      %v4435 = vunpack.c.l.b16 %v4364
      %v4436 = vunpack.c.l.b16 %v4365
      %v4437 = vunpack.c.l.b16 %v4366
      %v4438 = vunpack.c.l.b16 %v4367
      %v4439 = vunpack.c.l.b16 %v4368
      %v4440 = vunpack.c.l.b16 %v4369
      %v4441 = vunpack.c.l.b16 %v4370
      %v4442 = vunpack.c.l.b16 %v4371
      %v4443 = vunpack.c.l.b16 %v4372
      %v4444 = vunpack.c.l.b16 %v4373
      %v4445 = vunpack.c.l.b16 %v4374
      %v4446 = vunpack.c.l.b16 %v4375
      %v4447 = vunpack.c.l.b16 %v4376
      %v4448 = vunpack.c.l.b16 %v4377
      %v4449 = vunpack.c.l.b16 %v4378
      %v4450 = vpack.c.b16 %v4419, %v4418
      %v4451 = vpack.c.b16 %v4421, %v4420
      %v4452 = vpack.c.b16 %v4423, %v4422
      %v4453 = vpack.c.b16 %v4425, %v4424
      %v4454 = vpack.c.b16 %v4427, %v4426
      %v4455 = vpack.c.b16 %v4429, %v4428
      %v4456 = vpack.c.b16 %v4431, %v4430
      %v4457 = vpack.c.b16 %v4433, %v4432
      %v4458 = vpack.c.b16 %v4435, %v4434
      %v4459 = vpack.c.b16 %v4437, %v4436
      %v4460 = vpack.c.b16 %v4439, %v4438
      %v4461 = vpack.c.b16 %v4441, %v4440
      %v4462 = vpack.c.b16 %v4443, %v4442
      %v4463 = vpack.c.b16 %v4445, %v4444
      %v4464 = vpack.c.b16 %v4447, %v4446
      %v4465 = vpack.c.b16 %v4449, %v4448
      %4482 = vmatprep.subr.bf16.mxu0 0
      %4483 = vmatpush1.bf16.msra.mxu0 %v4450
      %4484 = vmatprep.subr.bf16.mxu0 0
      %4485 = vmatpush1.bf16.msra.mxu0 %v4451
      %4486 = vmatprep.subr.bf16.mxu0 0
      %4487 = vmatpush1.bf16.msra.mxu0 %v4452
      %4488 = vmatprep.subr.bf16.mxu0 0
      %4489 = vmatpush1.bf16.msra.mxu0 %v4453
      %4490 = vmatprep.subr.bf16.mxu0 0
      %4491 = vmatpush1.bf16.msra.mxu0 %v4454
      %4492 = vmatprep.subr.bf16.mxu0 0
      %4493 = vmatpush1.bf16.msra.mxu0 %v4455
      %4494 = vmatprep.subr.bf16.mxu0 0
      %4495 = vmatpush1.bf16.msra.mxu0 %v4456
      %4496 = vmatprep.subr.bf16.mxu0 0
      %4497 = vmatpush1.bf16.msra.mxu0 %v4457
      %4498 = vmatprep.subr.bf16.mxu0 0
      %4499 = vmatpush1.bf16.msra.mxu0 %v4458
      %4500 = vmatprep.subr.bf16.mxu0 0
      %4501 = vmatpush1.bf16.msra.mxu0 %v4459
      %4502 = vmatprep.subr.bf16.mxu0 0
      %4503 = vmatpush1.bf16.msra.mxu0 %v4460
      %4504 = vmatprep.subr.bf16.mxu0 0
      %4505 = vmatpush1.bf16.msra.mxu0 %v4461
      %4506 = vmatprep.subr.bf16.mxu0 0
      %4507 = vmatpush1.bf16.msra.mxu0 %v4462
      %4508 = vmatprep.subr.bf16.mxu0 0
      %4509 = vmatpush1.bf16.msra.mxu0 %v4463
      %4510 = vmatprep.subr.bf16.mxu0 0
      %4511 = vmatpush1.bf16.msra.mxu0 %v4464
      %4512 = vmatprep.subr.bf16.mxu0 0
      %4513 = vmatpush1.bf16.msra.mxu0 %v4465
      %4514 = vmatprep.mubr.bf16.mxu0 %v4345
      %4515 = vmatmul.mubr.bf16.gmra.mrb[0].mxu0 %v4341
      %v4516 = vpop.f32.mrb[0].mxu0
      %v4517 = vadd.f32 %v4384, %v4516
      %v4518 = vpop.f32.mrb[0].mxu0
      %v4519 = vpop.f32.mrb[0].mxu0
      %v4520 = vpop.f32.mrb[0].mxu0
      %4521 = vdwg.mxu0
      %v4522 = vadd.f32 %v4517, %v3769
      %v4523 = vld [vmem:[%s39] sm:$0x1]
      %v4524 = vld [vmem:[%s41] sm:$0x1]
      %v4525 = vmax.f32 %v4522, 0.0
      %4526 = vadd.xlane.f32.xlu0 %v4525
      %v4527 = vpop.xlane.xlu0 %4526
      %v4528 = vrcp.pop 128.0
      %v4529 = vmul.f32 %v4527, %v4528
      %v4530 = vsub.f32 %v4525, %v4529
      %v4531 = vmul.f32 %v4530, %v4530
      %4532 = vadd.xlane.f32.xlu0 %v4531
      %v4533 = vpop.xlane.xlu0 %4532
      %v4534 = vmul.f32 %v4533, %v4528
      %v4535 = vadd.f32 %v4534, 1e-06
      %v4536 = vrsqrt.pop %v4535
      %v4537 = vmul.f32 %v4530, %v4536
      %v4539 = vlaneseq
      %v4540 = vshrl.u32 %v4539, 7
      %v4541 = vsub.s32 0, %v4540
      %v4542 = vrot.slane %v4523, %v4541
      %v4544 = vmul.f32 %v4537, %v4542
      %v4546 = vlaneseq
      %v4547 = vshrl.u32 %v4546, 7
      %v4548 = vsub.s32 0, %v4547
      %v4549 = vrot.slane %v4524, %v4548
      %v4551 = vadd.f32 %v4544, %v4549
      %v4552 = vpack.c.bf16 %v4551, %v4551
      %v4553 = vld [vmem:[%s43] sm:$0xf]
      %v4554 = vld [vmem:[%s43 + $0x4] sm:$0xf]
      %v4555 = vld [vmem:[%s43 + $0x8] sm:$0xf]
      %v4556 = vld [vmem:[%s43 + $0xc] sm:$0xf]
      %v4557 = vld [vmem:[%s43 + $0x10] sm:$0xf]
      %v4558 = vld [vmem:[%s43 + $0x14] sm:$0xf]
      %v4559 = vld [vmem:[%s43 + $0x18] sm:$0xf]
      %v4560 = vld [vmem:[%s43 + $0x1c] sm:$0xf]
      %v4561 = vld [vmem:[%s43 + $0x20] sm:$0xf]
      %v4562 = vld [vmem:[%s43 + $0x24] sm:$0xf]
      %v4563 = vld [vmem:[%s43 + $0x28] sm:$0xf]
      %v4564 = vld [vmem:[%s43 + $0x2c] sm:$0xf]
      %v4565 = vld [vmem:[%s43 + $0x30] sm:$0xf]
      %v4566 = vld [vmem:[%s43 + $0x34] sm:$0xf]
      %v4567 = vld [vmem:[%s43 + $0x38] sm:$0xf]
      %v4568 = vld [vmem:[%s43 + $0x3c] sm:$0xf]
      %v4569 = vld [vmem:[%s45] sm:$0x1]
      %v4571 = vlaneseq
      %v4572 = vshrl.u32 %v4571, 7
      %v4573 = vsub.s32 0, %v4572
      %v4574 = vrot.slane %v4569, %v4573
      %v4592 = vunpack.c.l.b16 %v4553
      %v4593 = vunpack.c.l.b16 %v4554
      %v4594 = vunpack.c.l.b16 %v4555
      %v4595 = vunpack.c.l.b16 %v4556
      %v4596 = vunpack.c.l.b16 %v4557
      %v4597 = vunpack.c.l.b16 %v4558
      %v4598 = vunpack.c.l.b16 %v4559
      %v4599 = vunpack.c.l.b16 %v4560
      %v4600 = vunpack.c.l.b16 %v4561
      %v4601 = vunpack.c.l.b16 %v4562
      %v4602 = vunpack.c.l.b16 %v4563
      %v4603 = vunpack.c.l.b16 %v4564
      %v4604 = vunpack.c.l.b16 %v4565
      %v4605 = vunpack.c.l.b16 %v4566
      %v4606 = vunpack.c.l.b16 %v4567
      %v4607 = vunpack.c.l.b16 %v4568
      %v4608 = vpack.c.b16 %v4593, %v4592
      %v4609 = vpack.c.b16 %v4595, %v4594
      %v4610 = vpack.c.b16 %v4597, %v4596
      %v4611 = vpack.c.b16 %v4599, %v4598
      %v4612 = vpack.c.b16 %v4601, %v4600
      %v4613 = vpack.c.b16 %v4603, %v4602
      %v4614 = vpack.c.b16 %v4605, %v4604
      %v4615 = vpack.c.b16 %v4607, %v4606
      %4624 = vmatprep.subr.bf16.mxu0 0
      %4625 = vmatpush1.bf16.msra.mxu0 %v4608
      %4626 = vmatprep.subr.bf16.mxu0 0
      %4627 = vmatpush1.bf16.msra.mxu0 %v4609
      %4628 = vmatprep.subr.bf16.mxu0 0
      %4629 = vmatpush1.bf16.msra.mxu0 %v4610
      %4630 = vmatprep.subr.bf16.mxu0 0
      %4631 = vmatpush1.bf16.msra.mxu0 %v4611
      %4632 = vmatprep.subr.bf16.mxu0 0
      %4633 = vmatpush1.bf16.msra.mxu0 %v4612
      %4634 = vmatprep.subr.bf16.mxu0 0
      %4635 = vmatpush1.bf16.msra.mxu0 %v4613
      %4636 = vmatprep.subr.bf16.mxu0 0
      %4637 = vmatpush1.bf16.msra.mxu0 %v4614
      %4638 = vmatprep.subr.bf16.mxu0 0
      %4639 = vmatpush1.bf16.msra.mxu0 %v4615
      %4640 = vmatprep.subr.bf16.mxu0 0
      %4641 = vmatpush1.bf16.msra.mxu0 0
      %4642 = vmatprep.subr.bf16.mxu0 0
      %4643 = vmatpush1.bf16.msra.mxu0 0
      %4644 = vmatprep.subr.bf16.mxu0 0
      %4645 = vmatpush1.bf16.msra.mxu0 0
      %4646 = vmatprep.subr.bf16.mxu0 0
      %4647 = vmatpush1.bf16.msra.mxu0 0
      %4648 = vmatprep.subr.bf16.mxu0 0
      %4649 = vmatpush1.bf16.msra.mxu0 0
      %4650 = vmatprep.subr.bf16.mxu0 0
      %4651 = vmatpush1.bf16.msra.mxu0 0
      %4652 = vmatprep.subr.bf16.mxu0 0
      %4653 = vmatpush1.bf16.msra.mxu0 0
      %4654 = vmatprep.subr.bf16.mxu0 0
      %4655 = vmatpush1.bf16.msra.mxu0 0
      %4656 = vmatprep.mubr.bf16.mxu0 0
      %4657 = vmatmul.mubr.bf16.gmra.mrb[0].mxu0 %v4552
      %v4658 = vpop.f32.mrb[0].mxu0
      %v4659 = vadd.f32 %v4574, %v4658
      %v4660 = vpop.f32.mrb[0].mxu0
      %v4661 = vpop.f32.mrb[0].mxu0
      %v4662 = vpop.f32.mrb[0].mxu0
      %4663 = vdwg.mxu0
      %v4664 = vadd.f32 %v4659, %v4551
      %v4665 = vld [vmem:[%s47] sm:$0x1]
      %v4666 = vld [vmem:[%s49] sm:$0x1]
      %v4667 = vmax.f32 %v4664, 0.0
      %4668 = vadd.xlane.f32.xlu0 %v4667
      %v4669 = vpop.xlane.xlu0 %4668
      %v4670 = vmul.f32 %v4669, %v4528
      %v4671 = vsub.f32 %v4667, %v4670
      %v4672 = vmul.f32 %v4671, %v4671
      %4673 = vadd.xlane.f32.xlu0 %v4672
      %v4674 = vpop.xlane.xlu0 %4673
      %v4675 = vmul.f32 %v4674, %v4528
      %v4676 = vadd.f32 %v4675, 1e-06
      %v4677 = vrsqrt.pop %v4676
      %v4678 = vmul.f32 %v4671, %v4677
      %v4680 = vlaneseq
      %v4681 = vshrl.u32 %v4680, 7
      %v4682 = vsub.s32 0, %v4681
      %v4683 = vrot.slane %v4665, %v4682
      %v4685 = vmul.f32 %v4678, %v4683
      %v4687 = vlaneseq
      %v4688 = vshrl.u32 %v4687, 7
      %v4689 = vsub.s32 0, %v4688
      %v4690 = vrot.slane %v4666, %v4689
      %v4692 = vadd.f32 %v4685, %v4690
      %v4693 = vpack.c.bf16 %v4692, %v4692
      %v4694 = vld [vmem:[%s53] sm:$0x1]
      %v4696 = vlaneseq
      %v4697 = vshrl.u32 %v4696, 7
      %v4698 = vsub.s32 0, %v4697
      %v4699 = vrot.slane %v4694, %v4698
      %v4701 = vadd.f32 %v4699, 0.0
      %v4702 = vld [vmem:[%s9] sm:$0xf]
      %vm4703 = vcmask 64512
      %v4705 = vsel %vm4703, %v4702, 0
      %vm4707 = vcmask 1043456
      %v4709 = vsel %vm4707, %v4693, 0
      %4711 = vmatprep.subr.bf16.mxu0 0
      %4712 = vmatpush1.bf16.msra.mxu0 %v4709
      %4713 = vmatprep.subr.bf16.mxu0 0
      %4714 = vmatpush1.bf16.msra.mxu0 0
      %4715 = vmatprep.subr.bf16.mxu0 0
      %4716 = vmatpush1.bf16.msra.mxu0 0
      %4717 = vmatprep.subr.bf16.mxu0 0
      %4718 = vmatpush1.bf16.msra.mxu0 0
      %4719 = vmatprep.subr.bf16.mxu0 0
      %4720 = vmatpush1.bf16.msra.mxu0 0
      %4721 = vmatprep.subr.bf16.mxu0 0
      %4722 = vmatpush1.bf16.msra.mxu0 0
      %4723 = vmatprep.subr.bf16.mxu0 0
      %4724 = vmatpush1.bf16.msra.mxu0 0
      %4725 = vmatprep.subr.bf16.mxu0 0
      %4726 = vmatpush1.bf16.msra.mxu0 0
      %4727 = vmatprep.subr.bf16.mxu0 0
      %4728 = vmatpush1.bf16.msra.mxu0 0
      %4729 = vmatprep.subr.bf16.mxu0 0
      %4730 = vmatpush1.bf16.msra.mxu0 0
      %4731 = vmatprep.subr.bf16.mxu0 0
      %4732 = vmatpush1.bf16.msra.mxu0 0
      %4733 = vmatprep.subr.bf16.mxu0 0
      %4734 = vmatpush1.bf16.msra.mxu0 0
      %4735 = vmatprep.subr.bf16.mxu0 0
      %4736 = vmatpush1.bf16.msra.mxu0 0
      %4737 = vmatprep.subr.bf16.mxu0 0
      %4738 = vmatpush1.bf16.msra.mxu0 0
      %4739 = vmatprep.subr.bf16.mxu0 0
      %4740 = vmatpush1.bf16.msra.mxu0 0
      %4741 = vmatprep.subr.bf16.mxu0 0
      %4742 = vmatpush1.bf16.msra.mxu0 0
      %4743 = vmatprep.mubr.bf16.mxu0 0
      %4744 = vmatmul.mubr.bf16.gmra.mrb[0].mxu0 %v4705
      %v4745 = vpop.f32.mrb[0].mxu0
      %v4746 = vadd.f32 0.0, %v4745
      %v4747 = vpop.f32.mrb[0].mxu0
      %v4748 = vpop.f32.mrb[0].mxu0
      %v4749 = vpop.f32.mrb[0].mxu0
      %4750 = vdwg.mxu0
      %v4751 = vpack.c.bf16 %v4746, %v4746
      %v4752 = vld [vmem:[%s51] sm:$0xf]
      %v4753 = vld [vmem:[%s51 + $0x4] sm:$0xf]
      %v4754 = vld [vmem:[%s51 + $0x8] sm:$0xf]
      %v4755 = vld [vmem:[%s51 + $0xc] sm:$0xf]
      %v4756 = vld [vmem:[%s51 + $0x10] sm:$0xf]
      %v4757 = vld [vmem:[%s51 + $0x14] sm:$0xf]
      %v4758 = vld [vmem:[%s51 + $0x18] sm:$0xf]
      %v4759 = vld [vmem:[%s51 + $0x1c] sm:$0xf]
      %v4760 = vld [vmem:[%s51 + $0x20] sm:$0xf]
      %v4761 = vld [vmem:[%s51 + $0x24] sm:$0xf]
      %v4762 = vld [vmem:[%s51 + $0x28] sm:$0xf]
      %v4763 = vld [vmem:[%s51 + $0x2c] sm:$0xf]
      %v4764 = vld [vmem:[%s51 + $0x30] sm:$0xf]
      %v4765 = vld [vmem:[%s51 + $0x34] sm:$0xf]
      %v4766 = vld [vmem:[%s51 + $0x38] sm:$0xf]
      %v4767 = vld [vmem:[%s51 + $0x3c] sm:$0xf]
      %v4784 = vunpack.c.l.b16 %v4752
      %v4785 = vunpack.c.l.b16 %v4753
      %v4786 = vunpack.c.l.b16 %v4754
      %v4787 = vunpack.c.l.b16 %v4755
      %v4788 = vunpack.c.l.b16 %v4756
      %v4789 = vunpack.c.l.b16 %v4757
      %v4790 = vunpack.c.l.b16 %v4758
      %v4791 = vunpack.c.l.b16 %v4759
      %v4792 = vunpack.c.l.b16 %v4760
      %v4793 = vunpack.c.l.b16 %v4761
      %v4794 = vunpack.c.l.b16 %v4762
      %v4795 = vunpack.c.l.b16 %v4763
      %v4796 = vunpack.c.l.b16 %v4764
      %v4797 = vunpack.c.l.b16 %v4765
      %v4798 = vunpack.c.l.b16 %v4766
      %v4799 = vunpack.c.l.b16 %v4767
      %v4800 = vpack.c.b16 %v4785, %v4784
      %v4801 = vpack.c.b16 %v4787, %v4786
      %v4802 = vpack.c.b16 %v4789, %v4788
      %v4803 = vpack.c.b16 %v4791, %v4790
      %v4804 = vpack.c.b16 %v4793, %v4792
      %v4805 = vpack.c.b16 %v4795, %v4794
      %v4806 = vpack.c.b16 %v4797, %v4796
      %v4807 = vpack.c.b16 %v4799, %v4798
      %4816 = vmatprep.subr.bf16.mxu0 0
      %4817 = vmatpush1.bf16.msra.mxu0 %v4800
      %4818 = vmatprep.subr.bf16.mxu0 0
      %4819 = vmatpush1.bf16.msra.mxu0 %v4801
      %4820 = vmatprep.subr.bf16.mxu0 0
      %4821 = vmatpush1.bf16.msra.mxu0 %v4802
      %4822 = vmatprep.subr.bf16.mxu0 0
      %4823 = vmatpush1.bf16.msra.mxu0 %v4803
      %4824 = vmatprep.subr.bf16.mxu0 0
      %4825 = vmatpush1.bf16.msra.mxu0 %v4804
      %4826 = vmatprep.subr.bf16.mxu0 0
      %4827 = vmatpush1.bf16.msra.mxu0 %v4805
      %4828 = vmatprep.subr.bf16.mxu0 0
      %4829 = vmatpush1.bf16.msra.mxu0 %v4806
      %4830 = vmatprep.subr.bf16.mxu0 0
      %4831 = vmatpush1.bf16.msra.mxu0 %v4807
      %4832 = vmatprep.subr.bf16.mxu0 0
      %4833 = vmatpush1.bf16.msra.mxu0 0
      %4834 = vmatprep.subr.bf16.mxu0 0
      %4835 = vmatpush1.bf16.msra.mxu0 0
      %4836 = vmatprep.subr.bf16.mxu0 0
      %4837 = vmatpush1.bf16.msra.mxu0 0
      %4838 = vmatprep.subr.bf16.mxu0 0
      %4839 = vmatpush1.bf16.msra.mxu0 0
      %4840 = vmatprep.subr.bf16.mxu0 0
      %4841 = vmatpush1.bf16.msra.mxu0 0
      %4842 = vmatprep.subr.bf16.mxu0 0
      %4843 = vmatpush1.bf16.msra.mxu0 0
      %4844 = vmatprep.subr.bf16.mxu0 0
      %4845 = vmatpush1.bf16.msra.mxu0 0
      %4846 = vmatprep.subr.bf16.mxu0 0
      %4847 = vmatpush1.bf16.msra.mxu0 0
      %4848 = vmatprep.mubr.bf16.mxu0 0
      %4849 = vmatmul.mubr.bf16.gmra.mrb[0].mxu0 %v4751
      %v4850 = vpop.f32.mrb[0].mxu0
      %v4851 = vadd.f32 0.0, %v4850
      %v4852 = vpop.f32.mrb[0].mxu0
      %v4853 = vpop.f32.mrb[0].mxu0
      %v4854 = vpop.f32.mrb[0].mxu0
      %4855 = vdwg.mxu0
      %v4856 = vadd.f32 %v4701, %v4851
      %s4857 = scalar_lea.vmem %s51, 64
      %v4858 = vld [vmem:[%s4857] sm:$0xf]
      %v4859 = vld [vmem:[%s4857 + $0x4] sm:$0xf]
      %v4860 = vld [vmem:[%s4857 + $0x8] sm:$0xf]
      %v4861 = vld [vmem:[%s4857 + $0xc] sm:$0xf]
      %v4862 = vld [vmem:[%s4857 + $0x10] sm:$0xf]
      %v4863 = vld [vmem:[%s4857 + $0x14] sm:$0xf]
      %v4864 = vld [vmem:[%s4857 + $0x18] sm:$0xf]
      %v4865 = vld [vmem:[%s4857 + $0x1c] sm:$0xf]
      %v4866 = vld [vmem:[%s4857 + $0x20] sm:$0xf]
      %v4867 = vld [vmem:[%s4857 + $0x24] sm:$0xf]
      %v4868 = vld [vmem:[%s4857 + $0x28] sm:$0xf]
      %v4869 = vld [vmem:[%s4857 + $0x2c] sm:$0xf]
      %v4870 = vld [vmem:[%s4857 + $0x30] sm:$0xf]
      %v4871 = vld [vmem:[%s4857 + $0x34] sm:$0xf]
      %v4872 = vld [vmem:[%s4857 + $0x38] sm:$0xf]
      %v4873 = vld [vmem:[%s4857 + $0x3c] sm:$0xf]
      %v4890 = vunpack.c.l.b16 %v4858
      %v4891 = vunpack.c.l.b16 %v4859
      %v4892 = vunpack.c.l.b16 %v4860
      %v4893 = vunpack.c.l.b16 %v4861
      %v4894 = vunpack.c.l.b16 %v4862
      %v4895 = vunpack.c.l.b16 %v4863
      %v4896 = vunpack.c.l.b16 %v4864
      %v4897 = vunpack.c.l.b16 %v4865
      %v4898 = vunpack.c.l.b16 %v4866
      %v4899 = vunpack.c.l.b16 %v4867
      %v4900 = vunpack.c.l.b16 %v4868
      %v4901 = vunpack.c.l.b16 %v4869
      %v4902 = vunpack.c.l.b16 %v4870
      %v4903 = vunpack.c.l.b16 %v4871
      %v4904 = vunpack.c.l.b16 %v4872
      %v4905 = vunpack.c.l.b16 %v4873
      %v4906 = vpack.c.b16 %v4891, %v4890
      %v4907 = vpack.c.b16 %v4893, %v4892
      %v4908 = vpack.c.b16 %v4895, %v4894
      %v4909 = vpack.c.b16 %v4897, %v4896
      %v4910 = vpack.c.b16 %v4899, %v4898
      %v4911 = vpack.c.b16 %v4901, %v4900
      %v4912 = vpack.c.b16 %v4903, %v4902
      %v4913 = vpack.c.b16 %v4905, %v4904
      %4922 = vmatprep.subr.bf16.mxu0 0
      %4923 = vmatpush1.bf16.msra.mxu0 %v4906
      %4924 = vmatprep.subr.bf16.mxu0 0
      %4925 = vmatpush1.bf16.msra.mxu0 %v4907
      %4926 = vmatprep.subr.bf16.mxu0 0
      %4927 = vmatpush1.bf16.msra.mxu0 %v4908
      %4928 = vmatprep.subr.bf16.mxu0 0
      %4929 = vmatpush1.bf16.msra.mxu0 %v4909
      %4930 = vmatprep.subr.bf16.mxu0 0
      %4931 = vmatpush1.bf16.msra.mxu0 %v4910
      %4932 = vmatprep.subr.bf16.mxu0 0
      %4933 = vmatpush1.bf16.msra.mxu0 %v4911
      %4934 = vmatprep.subr.bf16.mxu0 0
      %4935 = vmatpush1.bf16.msra.mxu0 %v4912
      %4936 = vmatprep.subr.bf16.mxu0 0
      %4937 = vmatpush1.bf16.msra.mxu0 %v4913
      %4938 = vmatprep.subr.bf16.mxu0 0
      %4939 = vmatpush1.bf16.msra.mxu0 0
      %4940 = vmatprep.subr.bf16.mxu0 0
      %4941 = vmatpush1.bf16.msra.mxu0 0
      %4942 = vmatprep.subr.bf16.mxu0 0
      %4943 = vmatpush1.bf16.msra.mxu0 0
      %4944 = vmatprep.subr.bf16.mxu0 0
      %4945 = vmatpush1.bf16.msra.mxu0 0
      %4946 = vmatprep.subr.bf16.mxu0 0
      %4947 = vmatpush1.bf16.msra.mxu0 0
      %4948 = vmatprep.subr.bf16.mxu0 0
      %4949 = vmatpush1.bf16.msra.mxu0 0
      %4950 = vmatprep.subr.bf16.mxu0 0
      %4951 = vmatpush1.bf16.msra.mxu0 0
      %4952 = vmatprep.subr.bf16.mxu0 0
      %4953 = vmatpush1.bf16.msra.mxu0 0
      %4954 = vmatprep.mubr.bf16.mxu0 0
      %4955 = vmatmul.mubr.bf16.gmra.mrb[0].mxu0 %v4693
      %v4956 = vpop.f32.mrb[0].mxu0
      %v4957 = vadd.f32 0.0, %v4956
      %v4958 = vpop.f32.mrb[0].mxu0
      %v4959 = vpop.f32.mrb[0].mxu0
      %v4960 = vpop.f32.mrb[0].mxu0
      %4961 = vdwg.mxu0
      %v4962 = vadd.f32 %v4856, %v4957
      %s4963 = scalar_lea.vmem %s9, 4
      %v4964 = vld [vmem:[%s4963] sm:$0xf]
      %v4966 = vsel %vm4703, %v4964, 0
      %4968 = vmatprep.subr.bf16.mxu0 0
      %4969 = vmatpush1.bf16.msra.mxu0 %v4709
      %4970 = vmatprep.subr.bf16.mxu0 0
      %4971 = vmatpush1.bf16.msra.mxu0 0
      %4972 = vmatprep.subr.bf16.mxu0 0
      %4973 = vmatpush1.bf16.msra.mxu0 0
      %4974 = vmatprep.subr.bf16.mxu0 0
      %4975 = vmatpush1.bf16.msra.mxu0 0
      %4976 = vmatprep.subr.bf16.mxu0 0
      %4977 = vmatpush1.bf16.msra.mxu0 0
      %4978 = vmatprep.subr.bf16.mxu0 0
      %4979 = vmatpush1.bf16.msra.mxu0 0
      %4980 = vmatprep.subr.bf16.mxu0 0
      %4981 = vmatpush1.bf16.msra.mxu0 0
      %4982 = vmatprep.subr.bf16.mxu0 0
      %4983 = vmatpush1.bf16.msra.mxu0 0
      %4984 = vmatprep.subr.bf16.mxu0 0
      %4985 = vmatpush1.bf16.msra.mxu0 0
      %4986 = vmatprep.subr.bf16.mxu0 0
      %4987 = vmatpush1.bf16.msra.mxu0 0
      %4988 = vmatprep.subr.bf16.mxu0 0
      %4989 = vmatpush1.bf16.msra.mxu0 0
      %4990 = vmatprep.subr.bf16.mxu0 0
      %4991 = vmatpush1.bf16.msra.mxu0 0
      %4992 = vmatprep.subr.bf16.mxu0 0
      %4993 = vmatpush1.bf16.msra.mxu0 0
      %4994 = vmatprep.subr.bf16.mxu0 0
      %4995 = vmatpush1.bf16.msra.mxu0 0
      %4996 = vmatprep.subr.bf16.mxu0 0
      %4997 = vmatpush1.bf16.msra.mxu0 0
      %4998 = vmatprep.subr.bf16.mxu0 0
      %4999 = vmatpush1.bf16.msra.mxu0 0
      %5000 = vmatprep.mubr.bf16.mxu0 0
      %5001 = vmatmul.mubr.bf16.gmra.mrb[0].mxu0 %v4966
      %v5002 = vpop.f32.mrb[0].mxu0
      %v5003 = vadd.f32 0.0, %v5002
      %v5004 = vpop.f32.mrb[0].mxu0
      %v5005 = vpop.f32.mrb[0].mxu0
      %v5006 = vpop.f32.mrb[0].mxu0
      %5007 = vdwg.mxu0
      %v5008 = vpack.c.bf16 %v5003, %v5003
      %s5009 = scalar_lea.vmem %s51, 128
      %v5010 = vld [vmem:[%s5009] sm:$0xf]
      %v5011 = vld [vmem:[%s5009 + $0x4] sm:$0xf]
      %v5012 = vld [vmem:[%s5009 + $0x8] sm:$0xf]
      %v5013 = vld [vmem:[%s5009 + $0xc] sm:$0xf]
      %v5014 = vld [vmem:[%s5009 + $0x10] sm:$0xf]
      %v5015 = vld [vmem:[%s5009 + $0x14] sm:$0xf]
      %v5016 = vld [vmem:[%s5009 + $0x18] sm:$0xf]
      %v5017 = vld [vmem:[%s5009 + $0x1c] sm:$0xf]
      %v5018 = vld [vmem:[%s5009 + $0x20] sm:$0xf]
      %v5019 = vld [vmem:[%s5009 + $0x24] sm:$0xf]
      %v5020 = vld [vmem:[%s5009 + $0x28] sm:$0xf]
      %v5021 = vld [vmem:[%s5009 + $0x2c] sm:$0xf]
      %v5022 = vld [vmem:[%s5009 + $0x30] sm:$0xf]
      %v5023 = vld [vmem:[%s5009 + $0x34] sm:$0xf]
      %v5024 = vld [vmem:[%s5009 + $0x38] sm:$0xf]
      %v5025 = vld [vmem:[%s5009 + $0x3c] sm:$0xf]
      %v5042 = vunpack.c.l.b16 %v5010
      %v5043 = vunpack.c.l.b16 %v5011
      %v5044 = vunpack.c.l.b16 %v5012
      %v5045 = vunpack.c.l.b16 %v5013
      %v5046 = vunpack.c.l.b16 %v5014
      %v5047 = vunpack.c.l.b16 %v5015
      %v5048 = vunpack.c.l.b16 %v5016
      %v5049 = vunpack.c.l.b16 %v5017
      %v5050 = vunpack.c.l.b16 %v5018
      %v5051 = vunpack.c.l.b16 %v5019
      %v5052 = vunpack.c.l.b16 %v5020
      %v5053 = vunpack.c.l.b16 %v5021
      %v5054 = vunpack.c.l.b16 %v5022
      %v5055 = vunpack.c.l.b16 %v5023
      %v5056 = vunpack.c.l.b16 %v5024
      %v5057 = vunpack.c.l.b16 %v5025
      %v5058 = vpack.c.b16 %v5043, %v5042
      %v5059 = vpack.c.b16 %v5045, %v5044
      %v5060 = vpack.c.b16 %v5047, %v5046
      %v5061 = vpack.c.b16 %v5049, %v5048
      %v5062 = vpack.c.b16 %v5051, %v5050
      %v5063 = vpack.c.b16 %v5053, %v5052
      %v5064 = vpack.c.b16 %v5055, %v5054
      %v5065 = vpack.c.b16 %v5057, %v5056
      %5074 = vmatprep.subr.bf16.mxu0 0
      %5075 = vmatpush1.bf16.msra.mxu0 %v5058
      %5076 = vmatprep.subr.bf16.mxu0 0
      %5077 = vmatpush1.bf16.msra.mxu0 %v5059
      %5078 = vmatprep.subr.bf16.mxu0 0
      %5079 = vmatpush1.bf16.msra.mxu0 %v5060
      %5080 = vmatprep.subr.bf16.mxu0 0
      %5081 = vmatpush1.bf16.msra.mxu0 %v5061
      %5082 = vmatprep.subr.bf16.mxu0 0
      %5083 = vmatpush1.bf16.msra.mxu0 %v5062
      %5084 = vmatprep.subr.bf16.mxu0 0
      %5085 = vmatpush1.bf16.msra.mxu0 %v5063
      %5086 = vmatprep.subr.bf16.mxu0 0
      %5087 = vmatpush1.bf16.msra.mxu0 %v5064
      %5088 = vmatprep.subr.bf16.mxu0 0
      %5089 = vmatpush1.bf16.msra.mxu0 %v5065
      %5090 = vmatprep.subr.bf16.mxu0 0
      %5091 = vmatpush1.bf16.msra.mxu0 0
      %5092 = vmatprep.subr.bf16.mxu0 0
      %5093 = vmatpush1.bf16.msra.mxu0 0
      %5094 = vmatprep.subr.bf16.mxu0 0
      %5095 = vmatpush1.bf16.msra.mxu0 0
      %5096 = vmatprep.subr.bf16.mxu0 0
      %5097 = vmatpush1.bf16.msra.mxu0 0
      %5098 = vmatprep.subr.bf16.mxu0 0
      %5099 = vmatpush1.bf16.msra.mxu0 0
      %5100 = vmatprep.subr.bf16.mxu0 0
      %5101 = vmatpush1.bf16.msra.mxu0 0
      %5102 = vmatprep.subr.bf16.mxu0 0
      %5103 = vmatpush1.bf16.msra.mxu0 0
      %5104 = vmatprep.subr.bf16.mxu0 0
      %5105 = vmatpush1.bf16.msra.mxu0 0
      %5106 = vmatprep.mubr.bf16.mxu0 0
      %5107 = vmatmul.mubr.bf16.gmra.mrb[0].mxu0 %v5008
      %v5108 = vpop.f32.mrb[0].mxu0
      %v5109 = vadd.f32 0.0, %v5108
      %v5110 = vpop.f32.mrb[0].mxu0
      %v5111 = vpop.f32.mrb[0].mxu0
      %v5112 = vpop.f32.mrb[0].mxu0
      %5113 = vdwg.mxu0
      %v5114 = vadd.f32 %v4962, %v5109
      %vm5115 = vcmp.ge.f32.partialorder %v5114, 0.0
      %v5116 = vmul.f32 %v5114, 0.01
      %v5117 = vsel %vm5115, %v5114, %v5116
      %v5118 = vld [vmem:[%s55] sm:$0x1]
      %v5120 = vlaneseq
      %v5121 = vshrl.u32 %v5120, 7
      %v5122 = vsub.s32 0, %v5121
      %v5123 = vrot.slane %v5118, %v5122
      %v5125 = vmul.f32 %v5117, %v5123
      %5126 = vadd.xlane.f32.xlu0 %v5125
      %v5127 = vpop.xlane.xlu0 %5126
      %v5128 = vld [vmem:[#allocation2] sm:$0x1]
      %v5130 = vlaneseq
      %v5131 = vshrl.u32 %v5130, 7
      %v5132 = vsub.s32 0, %v5131
      %v5133 = vrot.slane %v5128, %v5132
      %v5135 = vadd.f32 %v5127, %v5133
      %vm5136 = vcmask 7168
      %5137 = vst.msk [vmem:[%s968] sm:$0xff] %vm5136, %v5135
      %p5138 = scmp.lt.s32.totalorder %s75, 1
      %s5139 = scalar_select %p5138, %s75, 1
      %s5140 = smul.addr %s5139, 8
      %s5141 = scalar_lea.vmem %s59, %s5140
      %p5142 = scmp.lt.s32.totalorder %s75, 1
      %s5143 = scalar_select %p5142, %s75, 1
      %s5144 = smul.addr %s5143, 2
      %s5145 = scalar_lea.vmem %s61, %s5144
      // Predicated region
      $region137: #{pitch_model_forward.1} parent=135 // pred_check
        %p5146 = pneg %p717
      $region138: #{pitch_model_forward.1} parent=135 // pred_check_branch
        %5148 = sbr.rel (%p5146) target = $region140
      $region139: #{pitch_model_forward.1} parent=135 // pred_region
        _
      $region140: #{pitch_model_forward.1} parent=135 // pred_fallthru
        _
      // Predicated region
      $region141: #{pitch_model_forward.1} parent=135 // pred_check
        %p5149 = pneg %p743
      $region142: #{pitch_model_forward.1} parent=135 // pred_check_branch
        %5151 = sbr.rel (%p5149) target = $region144
      $region143: #{pitch_model_forward.1} parent=135 // pred_region
        _
      $region144: #{pitch_model_forward.1} parent=135 // pred_fallthru
        _
    $region136: #{pitch_model_forward.1} parent=5 // pred_fallthru
      _
    %p5152 = scmp.le.s32.totalorder 2, %s70
    // Predicated region
    $region145: #{pitch_model_forward.1} parent=5 // pred_check
      %p5153 = pneg %p5152
    $region146: #{pitch_model_forward.1} parent=5 // pred_check_branch
      %5155 = sbr.rel (%p5153) target = $region148
    $region147: #{pitch_model_forward.1} parent=5 // pred_region
      %s5156 = ssub.s32 %s70, 2
      // Predicated region
      $region149: #{pitch_model_forward.1} parent=147 // pred_check
        %p5157 = pneg %p723
      $region150: #{pitch_model_forward.1} parent=147 // pred_check_branch
        %5159 = sbr.rel (%p5157) target = $region152
      $region151: #{pitch_model_forward.1} parent=147 // pred_region
        %p5160 = scmp.lt.s32.totalorder %s76, 1
        %s5161 = scalar_select %p5160, %s76, 1
        %s5162 = smul.addr %s5161, 8
        %s5163 = scalar_lea.vmem %s59, %s5162
      $region152: #{pitch_model_forward.1} parent=147 // pred_fallthru
        _
      // Predicated region
      $region153: #{pitch_model_forward.1} parent=147 // pred_check
        %p5164 = pneg %p749
      $region154: #{pitch_model_forward.1} parent=147 // pred_check_branch
        %5166 = sbr.rel (%p5164) target = $region156
      $region155: #{pitch_model_forward.1} parent=147 // pred_region
        %p5167 = scmp.lt.s32.totalorder %s76, 1
        %s5168 = scalar_select %p5167, %s76, 1
        %s5169 = smul.addr %s5168, 2
        %s5170 = scalar_lea.vmem %s61, %s5169
      $region156: #{pitch_model_forward.1} parent=147 // pred_fallthru
        _
    $region148: #{pitch_model_forward.1} parent=5 // pred_fallthru
      _
  $region6: #{pitch_model_forward.1} parent=0 // loop_footer
    %s74 = sadd.s32 1, %s70
  $region7: #{pitch_model_forward.1} parent=0 // loop_footer_branch
    %69 = sbr.rel target = $region3
  $region8: #{pitch_model_forward.1} parent=0 // loop_exit
    _

</llo_original>
